<compile_context>
chip_gen: v5e
topology: v5e:2x2
jax: 0.10.0
libtpu: 0.0.40
codegen_flags: <defaults>
</compile_context>

<pallas_src>
import jax
import jax.numpy as jnp
from jax.experimental import pallas as pl
from jax.experimental.pallas import tpu as pltpu

B = 2             # batch
CIN = 3           # RGB input channels
CH = 8            # hidden_units
NCLASS = 10       # output_shape
H0 = 32           # input spatial size (classifier hard-codes 8*8 after two pools)
L1 = H0 * CH      # 256: lane width of block-1 feature maps
L2 = (H0 // 2) * CH  # 128: lane width of block-2 feature maps


# --------------------------- fused forward kernel ---------------------------
def tinyvgg_kernel(x_ref, w1_ref, b1_ref, w2_ref, b2_ref, s1_ref, s2_ref,
                   e1_ref, e2_ref, fcw_ref, fcb_ref, out_ref,
                   pad1_ref, pad2_ref):
    f32 = jnp.float32

    def conv_relu(src_ref, h, lanes, w_ref, widx, b_ref, bidx):
        """3x3 same-conv+bias+ReLU on a lane-packed (B, h+2, lanes) padded map.

        Three (B*h, lanes)@(lanes, lanes) matmuls against block-banded weights;
        the dy shift is a sublane offset into the padded-H scratch."""
        acc = jnp.zeros((B * h, lanes), f32)
        for dy in range(3):
            tap = src_ref[:, dy:dy + h, :].reshape(B * h, lanes)
            acc = acc + jnp.dot(tap, w_ref[3 * widx + dy],
                                preferred_element_type=f32)
        return jnp.maximum(acc + b_ref[bidx:bidx + 1, :], 0.0)

    def maxpool2x2(a, s_ref, e_ref):
        """2x2 stride-2 pool of a lane-packed (B*h, w*CH) activation.

        Width max = two 0/1 column-selection matmuls; height max = two 0/1
        row-selection matmuls (max commutes with pure selections)."""
        wm = jnp.maximum(jnp.dot(a, s_ref[0], preferred_element_type=f32),
                         jnp.dot(a, s_ref[1], preferred_element_type=f32))
        return jnp.maximum(jnp.dot(e_ref[0], wm, preferred_element_type=f32),
                           jnp.dot(e_ref[1], wm, preferred_element_type=f32))

    # Zero only the halo rows of the padded scratches; the interiors are always
    # fully overwritten before being read (this implements conv padding=1 in H;
    # the W padding is handled inside the banded weights).
    zrow1 = jnp.zeros((B, 1, L1), f32)
    pad1_ref[:, 0:1, :] = zrow1
    pad1_ref[:, H0 + 1:H0 + 2, :] = zrow1
    zrow2 = jnp.zeros((B, 1, L2), f32)
    pad2_ref[:, 0:1, :] = zrow2
    pad2_ref[:, H0 // 2 + 1:H0 // 2 + 2, :] = zrow2

    # ---- conv block 1 (32x32, lane dim 256) ----
    a = conv_relu(x_ref, H0, L1, w1_ref, 0, b1_ref, 0)          # (64, 256)
    pad1_ref[:, 1:H0 + 1, :] = a.reshape(B, H0, L1)
    a = conv_relu(pad1_ref, H0, L1, w1_ref, 1, b1_ref, 1)        # (64, 256)
    p1 = maxpool2x2(a, s1_ref, e1_ref)                           # (32, 128)

    # ---- conv block 2 (16x16, lane dim 128) ----
    pad2_ref[:, 1:H0 // 2 + 1, :] = p1.reshape(B, H0 // 2, L2)
    a = conv_relu(pad2_ref, H0 // 2, L2, w2_ref, 0, b2_ref, 0)   # (32, 128)
    pad2_ref[:, 1:H0 // 2 + 1, :] = a.reshape(B, H0 // 2, L2)
    a = conv_relu(pad2_ref, H0 // 2, L2, w2_ref, 1, b2_ref, 1)   # (32, 128)
    p2 = maxpool2x2(a, s2_ref, e2_ref)                           # (16, 64), rows=(b,i)

    # ---- classifier: logits[b] = sum_i p2[b, i, :] @ fcw[i]  (+ bias) ----
    p2 = p2.reshape(B, 8, 8 * CH)                                # (B, 8, 64)
    acc = jnp.zeros((B, NCLASS), f32)
    for i in range(8):
        acc = acc + jnp.dot(p2[:, i, :], fcw_ref[i], preferred_element_type=f32)
    out_ref[...] = acc + fcb_ref[...]


# ----------------------- host-side parameter repacking -----------------------
def pack_params(params):
    """Repack PyTorch-layout params into lane-dense slabs. Call ONCE (hoisted
    out of the per-call path); only the input transform stays per call."""
    (w1a, b1a, w1b, b1b, w2a, b2a, w2b, b2b, fcw, fcb) = params
    f32 = jnp.float32
    eye_ch = jnp.eye(CH, dtype=f32)

    def band(w, width):
        # (co, ci, 3, 3) -> (3, width*CH, width*CH) block-banded slabs (one per dy):
        # Wb[dy][x_in*CH+ci, x_out*CH+co] = w[co, ci, dy, x_in-x_out+1]  (band of 3).
        ci = w.shape[1]
        wt = jnp.transpose(w, (2, 3, 1, 0)).astype(f32)              # (dy, dx, ci, co)
        wt = jnp.pad(wt, ((0, 0), (0, 0), (0, CH - ci), (0, 0)))     # (3, 3, 8, 8)
        mats = []
        for dy in range(3):
            m = jnp.zeros((width * CH, width * CH), f32)
            for dx in range(3):
                m = m + jnp.kron(jnp.eye(width, k=1 - dx, dtype=f32), wt[dy, dx])
            mats.append(m)
        return jnp.stack(mats)

    def col_sel(width):
        # (2, width*CH, (width//2)*CH): pick even / odd x-groups (width-pool halves).
        e = jnp.eye(width, dtype=f32)
        return jnp.stack([jnp.kron(e[:, 0::2], eye_ch),
                          jnp.kron(e[:, 1::2], eye_ch)])

    def row_sel(h):
        # (2, B*(h//2), B*h): pick even / odd rows per batch (height-pool halves).
        e = jnp.eye(h, dtype=f32)
        eb = jnp.eye(B, dtype=f32)
        return jnp.stack([jnp.kron(eb, e[0::2, :]), jnp.kron(eb, e[1::2, :])])

    w1 = jnp.concatenate([band(w1a, H0), band(w1b, H0)], axis=0)          # (6, 256, 256)
    w2 = jnp.concatenate([band(w2a, H0 // 2), band(w2b, H0 // 2)], axis=0)  # (6, 128, 128)
    b1 = jnp.stack([jnp.tile(b1a, H0), jnp.tile(b1b, H0)]).astype(f32)     # (2, 256)
    b2 = jnp.stack([jnp.tile(b2a, H0 // 2), jnp.tile(b2b, H0 // 2)]).astype(f32)  # (2, 128)

    # PyTorch flattens (c, h, w); the kernel's pooled map is rows=(b,i), lanes=j*CH+c.
    fcw3 = jnp.transpose(fcw.reshape(NCLASS, CH, 8, 8), (2, 3, 1, 0))      # (i, j, c, n)
    fcw3 = fcw3.reshape(8, 8 * CH, NCLASS).astype(f32)                     # (8, 64, 10)
    fcb2 = fcb.reshape(1, NCLASS).astype(f32)

    return dict(w1=w1, b1=b1, w2=w2, b2=b2,
                s1=col_sel(H0), s2=col_sel(H0 // 2),
                e1=row_sel(H0), e2=row_sel(H0 // 2),
                fcw=fcw3, fcb=fcb2)


def tinyvgg_forward(x, packed):
    """x: (B, 3, 32, 32) NCHW float32, packed = pack_params(...). Returns (B, 10)."""
    # NCHW -> lane-packed (B, H+2, W*CH) with zero H-halo and channels padded 3->8.
    xp = jnp.transpose(x, (0, 2, 3, 1))                           # (B, 32, 32, 3)
    xp = jnp.pad(xp, ((0, 0), (1, 1), (0, 0), (0, CH - CIN)))     # (B, 34, 32, 8)
    xp = xp.reshape(B, H0 + 2, L1)                                # (B, 34, 256)

    vmem = pl.BlockSpec(memory_space=pltpu.MemorySpace.VMEM)
    return pl.pallas_call(
        tinyvgg_kernel,
        out_shape=jax.ShapeDtypeStruct((B, NCLASS), jnp.float32),
        in_specs=[vmem] * 11,
        out_specs=vmem,
        scratch_shapes=[
            pltpu.VMEM((B, H0 + 2, L1), jnp.float32),             # padded fmap, block 1
            pltpu.VMEM((B, H0 // 2 + 2, L2), jnp.float32),        # padded fmap, block 2
        ],
        compiler_params=pltpu.CompilerParams(vmem_limit_bytes=32 * 1024 * 1024),
    )(xp, packed["w1"], packed["b1"], packed["w2"], packed["b2"],
      packed["s1"], packed["s2"], packed["e1"], packed["e2"],
      packed["fcw"], packed["fcb"])


# ---------------- pure-JAX reference (mirrors the PyTorch module) ----------------
def reference_forward(x, params):
    (w1a, b1a, w1b, b1b, w2a, b2a, w2b, b2b, fcw, fcb) = params

    def conv(v, w, b):
        y = jax.lax.conv_general_dilated(
            v, w, window_strides=(1, 1), padding="SAME",
            dimension_numbers=("NCHW", "OIHW", "NCHW"))
        return y + b[None, :, None, None]

    def pool(v):
        n, c, hh, ww = v.shape
        return v.reshape(n, c, hh // 2, 2, ww // 2, 2).max(axis=(3, 5))

    h = jax.nn.relu(conv(x, w1a, b1a))
    h = jax.nn.relu(conv(h, w1b, b1b))
    h = pool(h)
    h = jax.nn.relu(conv(h, w2a, b2a))
    h = jax.nn.relu(conv(h, w2b, b2b))
    h = pool(h)
    flat = h.reshape(x.shape[0], -1)                    # (B, C*H*W) in (c, h, w) order
    return flat @ fcw.T + fcb


def make_params(key):
    ks = jax.random.split(key, 10)
    f = jnp.float32

    def cinit(k, co, ci):
        return 0.1 * jax.random.normal(k, (co, ci, 3, 3), f)

    w1a = cinit(ks[0], CH, CIN); b1a = 0.1 * jax.random.normal(ks[1], (CH,), f)
    w1b = cinit(ks[2], CH, CH);  b1b = 0.1 * jax.random.normal(ks[3], (CH,), f)
    w2a = cinit(ks[4], CH, CH);  b2a = 0.1 * jax.random.normal(ks[5], (CH,), f)
    w2b = cinit(ks[6], CH, CH);  b2b = 0.1 * jax.random.normal(ks[7], (CH,), f)
    fcw = 0.05 * jax.random.normal(ks[8], (NCLASS, CH * 8 * 8), f)
    fcb = 0.05 * jax.random.normal(ks[9], (NCLASS,), f)
    return (w1a, b1a, w1b, b1b, w2a, b2a, w2b, b2b, fcw, fcb)


if __name__ == "__main__":
    key = jax.random.PRNGKey(0)
    kx, kp = jax.random.split(key)
    x = jax.random.normal(kx, (B, CIN, H0, H0), jnp.float32)
    params = make_params(kp)

    packed = pack_params(params)          # one-time, hoisted out of the call path
    fwd = jax.jit(tinyvgg_forward)
    out = jax.block_until_ready(fwd(x, packed))

    ref = reference_forward(x, params)
    assert out.shape == (B, NCLASS)
    max_err = float(jnp.max(jnp.abs(out - ref)))
    assert jnp.allclose(out, ref, atol=1e-4, rtol=1e-4), max_err
    print("KERNEL_OK")
</pallas_src>

<mosaic_0001>
module attributes {stable_mosaic.version = 11 : i64} {
  func.func @tinyvgg_kernel(%arg0: memref<2x34x256xf32, #tpu.memory_space<vmem>>, %arg1: memref<6x256x256xf32, #tpu.memory_space<vmem>>, %arg2: memref<2x256xf32, #tpu.memory_space<vmem>>, %arg3: memref<6x128x128xf32, #tpu.memory_space<vmem>>, %arg4: memref<2x128xf32, #tpu.memory_space<vmem>>, %arg5: memref<2x256x128xf32, #tpu.memory_space<vmem>>, %arg6: memref<2x128x64xf32, #tpu.memory_space<vmem>>, %arg7: memref<2x32x64xf32, #tpu.memory_space<vmem>>, %arg8: memref<2x16x32xf32, #tpu.memory_space<vmem>>, %arg9: memref<8x64x10xf32, #tpu.memory_space<vmem>>, %arg10: memref<1x10xf32, #tpu.memory_space<vmem>>, %arg11: memref<2x10xf32, #tpu.memory_space<vmem>>, %arg12: memref<2x34x256xf32, #tpu.memory_space<vmem>>, %arg13: memref<2x18x128xf32, #tpu.memory_space<vmem>>) attributes {dimension_semantics = [], scalar_prefetch = 0 : i64, scratch_operands = 2 : i64, tpu.core_type = #tpu.core_type<tc>} {
    %cst = arith.constant 0.000000e+00 : f32
    %0 = vector.broadcast %cst : f32 to vector<2x1x256xf32>
    %c0 = arith.constant 0 : index
    %c0_0 = arith.constant 0 : index
    %c0_1 = arith.constant 0 : index
    %1 = vector.load %arg12[%c0, %c0_0, %c0_1] : memref<2x34x256xf32, #tpu.memory_space<vmem>>, vector<2x1x256xf32>
    tpu.vector_store %arg12[%c0, %c0_0, %c0_1], %0 {strides = array<i32>} : memref<2x34x256xf32, #tpu.memory_space<vmem>>, vector<2x1x256xf32>,
    %c0_2 = arith.constant 0 : index
    %c33 = arith.constant 33 : index
    %c0_3 = arith.constant 0 : index
    %2 = vector.load %arg12[%c0_2, %c33, %c0_3] : memref<2x34x256xf32, #tpu.memory_space<vmem>>, vector<2x1x256xf32>
    tpu.vector_store %arg12[%c0_2, %c33, %c0_3], %0 {strides = array<i32>} : memref<2x34x256xf32, #tpu.memory_space<vmem>>, vector<2x1x256xf32>,
    %cst_4 = arith.constant 0.000000e+00 : f32
    %3 = vector.broadcast %cst_4 : f32 to vector<2x1x128xf32>
    %c0_5 = arith.constant 0 : index
    %c0_6 = arith.constant 0 : index
    %c0_7 = arith.constant 0 : index
    %4 = vector.load %arg13[%c0_5, %c0_6, %c0_7] : memref<2x18x128xf32, #tpu.memory_space<vmem>>, vector<2x1x128xf32>
    tpu.vector_store %arg13[%c0_5, %c0_6, %c0_7], %3 {strides = array<i32>} : memref<2x18x128xf32, #tpu.memory_space<vmem>>, vector<2x1x128xf32>,
    %c0_8 = arith.constant 0 : index
    %c17 = arith.constant 17 : index
    %c0_9 = arith.constant 0 : index
    %5 = vector.load %arg13[%c0_8, %c17, %c0_9] : memref<2x18x128xf32, #tpu.memory_space<vmem>>, vector<2x1x128xf32>
    tpu.vector_store %arg13[%c0_8, %c17, %c0_9], %3 {strides = array<i32>} : memref<2x18x128xf32, #tpu.memory_space<vmem>>, vector<2x1x128xf32>,
    %cst_10 = arith.constant 0.000000e+00 : f32
    %6 = vector.broadcast %cst_10 : f32 to vector<64x256xf32>
    %c0_11 = arith.constant 0 : index
    %c0_12 = arith.constant 0 : index
    %c0_13 = arith.constant 0 : index
    %7 = vector.load %arg0[%c0_11, %c0_12, %c0_13] : memref<2x34x256xf32, #tpu.memory_space<vmem>>, vector<2x32x256xf32>
    %8 = vector.shape_cast %7 : vector<2x32x256xf32> to vector<64x256xf32>
    %c0_14 = arith.constant 0 : index
    %c0_15 = arith.constant 0 : index
    %c0_16 = arith.constant 0 : index
    %9 = vector.load %arg1[%c0_14, %c0_15, %c0_16] : memref<6x256x256xf32, #tpu.memory_space<vmem>>, vector<1x256x256xf32>
    %10 = vector.shape_cast %9 : vector<1x256x256xf32> to vector<256x256xf32>
    %cst_17 = arith.constant dense<0.000000e+00> : vector<64x256xf32>
    %11 = tpu.matmul %8, %10, %cst_17 {dimension_numbers = #tpu.dot_dimension_numbers<[1], [0], [0], [1], [0, 0, 1, 1], [], []>} : vector<64x256xf32>, vector<256x256xf32>, vector<64x256xf32> -> vector<64x256xf32>
    %12 = arith.addf %6, %11 : vector<64x256xf32>
    %c0_18 = arith.constant 0 : index
    %c1 = arith.constant 1 : index
    %c0_19 = arith.constant 0 : index
    %13 = vector.load %arg0[%c0_18, %c1, %c0_19] : memref<2x34x256xf32, #tpu.memory_space<vmem>>, vector<2x32x256xf32>
    %14 = vector.shape_cast %13 : vector<2x32x256xf32> to vector<64x256xf32>
    %c1_20 = arith.constant 1 : index
    %c0_21 = arith.constant 0 : index
    %c0_22 = arith.constant 0 : index
    %15 = vector.load %arg1[%c1_20, %c0_21, %c0_22] : memref<6x256x256xf32, #tpu.memory_space<vmem>>, vector<1x256x256xf32>
    %16 = vector.shape_cast %15 : vector<1x256x256xf32> to vector<256x256xf32>
    %cst_23 = arith.constant dense<0.000000e+00> : vector<64x256xf32>
    %17 = tpu.matmul %14, %16, %cst_23 {dimension_numbers = #tpu.dot_dimension_numbers<[1], [0], [0], [1], [0, 0, 1, 1], [], []>} : vector<64x256xf32>, vector<256x256xf32>, vector<64x256xf32> -> vector<64x256xf32>
    %18 = arith.addf %12, %17 : vector<64x256xf32>
    %c0_24 = arith.constant 0 : index
    %c2 = arith.constant 2 : index
    %c0_25 = arith.constant 0 : index
    %19 = vector.load %arg0[%c0_24, %c2, %c0_25] : memref<2x34x256xf32, #tpu.memory_space<vmem>>, vector<2x32x256xf32>
    %20 = vector.shape_cast %19 : vector<2x32x256xf32> to vector<64x256xf32>
    %c2_26 = arith.constant 2 : index
    %c0_27 = arith.constant 0 : index
    %c0_28 = arith.constant 0 : index
    %21 = vector.load %arg1[%c2_26, %c0_27, %c0_28] : memref<6x256x256xf32, #tpu.memory_space<vmem>>, vector<1x256x256xf32>
    %22 = vector.shape_cast %21 : vector<1x256x256xf32> to vector<256x256xf32>
    %cst_29 = arith.constant dense<0.000000e+00> : vector<64x256xf32>
    %23 = tpu.matmul %20, %22, %cst_29 {dimension_numbers = #tpu.dot_dimension_numbers<[1], [0], [0], [1], [0, 0, 1, 1], [], []>} : vector<64x256xf32>, vector<256x256xf32>, vector<64x256xf32> -> vector<64x256xf32>
    %24 = arith.addf %18, %23 : vector<64x256xf32>
    %c0_30 = arith.constant 0 : index
    %c0_31 = arith.constant 0 : index
    %25 = vector.load %arg2[%c0_30, %c0_31] : memref<2x256xf32, #tpu.memory_space<vmem>>, vector<1x256xf32>
    %26 = vector.broadcast %25 : vector<1x256xf32> to vector<64x256xf32>
    %27 = arith.addf %24, %26 : vector<64x256xf32>
    %cst_32 = arith.constant 0.000000e+00 : f32
    %28 = vector.broadcast %cst_32 : f32 to vector<64x256xf32>
    %29 = arith.maximumf %27, %28 : vector<64x256xf32>
    %30 = vector.shape_cast %29 : vector<64x256xf32> to vector<2x32x256xf32>
    %c0_33 = arith.constant 0 : index
    %c1_34 = arith.constant 1 : index
    %c0_35 = arith.constant 0 : index
    %31 = vector.load %arg12[%c0_33, %c1_34, %c0_35] : memref<2x34x256xf32, #tpu.memory_space<vmem>>, vector<2x32x256xf32>
    tpu.vector_store %arg12[%c0_33, %c1_34, %c0_35], %30 {strides = array<i32>} : memref<2x34x256xf32, #tpu.memory_space<vmem>>, vector<2x32x256xf32>,
    %cst_36 = arith.constant 0.000000e+00 : f32
    %32 = vector.broadcast %cst_36 : f32 to vector<64x256xf32>
    %c0_37 = arith.constant 0 : index
    %c0_38 = arith.constant 0 : index
    %c0_39 = arith.constant 0 : index
    %33 = vector.load %arg12[%c0_37, %c0_38, %c0_39] : memref<2x34x256xf32, #tpu.memory_space<vmem>>, vector<2x32x256xf32>
    %34 = vector.shape_cast %33 : vector<2x32x256xf32> to vector<64x256xf32>
    %c3 = arith.constant 3 : index
    %c0_40 = arith.constant 0 : index
    %c0_41 = arith.constant 0 : index
    %35 = vector.load %arg1[%c3, %c0_40, %c0_41] : memref<6x256x256xf32, #tpu.memory_space<vmem>>, vector<1x256x256xf32>
    %36 = vector.shape_cast %35 : vector<1x256x256xf32> to vector<256x256xf32>
    %cst_42 = arith.constant dense<0.000000e+00> : vector<64x256xf32>
    %37 = tpu.matmul %34, %36, %cst_42 {dimension_numbers = #tpu.dot_dimension_numbers<[1], [0], [0], [1], [0, 0, 1, 1], [], []>} : vector<64x256xf32>, vector<256x256xf32>, vector<64x256xf32> -> vector<64x256xf32>
    %38 = arith.addf %32, %37 : vector<64x256xf32>
    %c0_43 = arith.constant 0 : index
    %c1_44 = arith.constant 1 : index
    %c0_45 = arith.constant 0 : index
    %39 = vector.load %arg12[%c0_43, %c1_44, %c0_45] : memref<2x34x256xf32, #tpu.memory_space<vmem>>, vector<2x32x256xf32>
    %40 = vector.shape_cast %39 : vector<2x32x256xf32> to vector<64x256xf32>
    %c4 = arith.constant 4 : index
    %c0_46 = arith.constant 0 : index
    %c0_47 = arith.constant 0 : index
    %41 = vector.load %arg1[%c4, %c0_46, %c0_47] : memref<6x256x256xf32, #tpu.memory_space<vmem>>, vector<1x256x256xf32>
    %42 = vector.shape_cast %41 : vector<1x256x256xf32> to vector<256x256xf32>
    %cst_48 = arith.constant dense<0.000000e+00> : vector<64x256xf32>
    %43 = tpu.matmul %40, %42, %cst_48 {dimension_numbers = #tpu.dot_dimension_numbers<[1], [0], [0], [1], [0, 0, 1, 1], [], []>} : vector<64x256xf32>, vector<256x256xf32>, vector<64x256xf32> -> vector<64x256xf32>
    %44 = arith.addf %38, %43 : vector<64x256xf32>
    %c0_49 = arith.constant 0 : index
    %c2_50 = arith.constant 2 : index
    %c0_51 = arith.constant 0 : index
    %45 = vector.load %arg12[%c0_49, %c2_50, %c0_51] : memref<2x34x256xf32, #tpu.memory_space<vmem>>, vector<2x32x256xf32>
    %46 = vector.shape_cast %45 : vector<2x32x256xf32> to vector<64x256xf32>
    %c5 = arith.constant 5 : index
    %c0_52 = arith.constant 0 : index
    %c0_53 = arith.constant 0 : index
    %47 = vector.load %arg1[%c5, %c0_52, %c0_53] : memref<6x256x256xf32, #tpu.memory_space<vmem>>, vector<1x256x256xf32>
    %48 = vector.shape_cast %47 : vector<1x256x256xf32> to vector<256x256xf32>
    %cst_54 = arith.constant dense<0.000000e+00> : vector<64x256xf32>
    %49 = tpu.matmul %46, %48, %cst_54 {dimension_numbers = #tpu.dot_dimension_numbers<[1], [0], [0], [1], [0, 0, 1, 1], [], []>} : vector<64x256xf32>, vector<256x256xf32>, vector<64x256xf32> -> vector<64x256xf32>
    %50 = arith.addf %44, %49 : vector<64x256xf32>
    %c1_55 = arith.constant 1 : index
    %c0_56 = arith.constant 0 : index
    %51 = vector.load %arg2[%c1_55, %c0_56] : memref<2x256xf32, #tpu.memory_space<vmem>>, vector<1x256xf32>
    %52 = vector.broadcast %51 : vector<1x256xf32> to vector<64x256xf32>
    %53 = arith.addf %50, %52 : vector<64x256xf32>
    %cst_57 = arith.constant 0.000000e+00 : f32
    %54 = vector.broadcast %cst_57 : f32 to vector<64x256xf32>
    %55 = arith.maximumf %53, %54 : vector<64x256xf32>
    %c0_58 = arith.constant 0 : index
    %c0_59 = arith.constant 0 : index
    %c0_60 = arith.constant 0 : index
    %56 = vector.load %arg5[%c0_58, %c0_59, %c0_60] : memref<2x256x128xf32, #tpu.memory_space<vmem>>, vector<1x256x128xf32>
    %57 = vector.shape_cast %56 : vector<1x256x128xf32> to vector<256x128xf32>
    %cst_61 = arith.constant dense<0.000000e+00> : vector<64x128xf32>
    %58 = tpu.matmul %55, %57, %cst_61 {dimension_numbers = #tpu.dot_dimension_numbers<[1], [0], [0], [1], [0, 0, 1, 1], [], []>} : vector<64x256xf32>, vector<256x128xf32>, vector<64x128xf32> -> vector<64x128xf32>
    %c1_62 = arith.constant 1 : index
    %c0_63 = arith.constant 0 : index
    %c0_64 = arith.constant 0 : index
    %59 = vector.load %arg5[%c1_62, %c0_63, %c0_64] : memref<2x256x128xf32, #tpu.memory_space<vmem>>, vector<1x256x128xf32>
    %60 = vector.shape_cast %59 : vector<1x256x128xf32> to vector<256x128xf32>
    %cst_65 = arith.constant dense<0.000000e+00> : vector<64x128xf32>
    %61 = tpu.matmul %55, %60, %cst_65 {dimension_numbers = #tpu.dot_dimension_numbers<[1], [0], [0], [1], [0, 0, 1, 1], [], []>} : vector<64x256xf32>, vector<256x128xf32>, vector<64x128xf32> -> vector<64x128xf32>
    %62 = arith.maximumf %58, %61 : vector<64x128xf32>
    %c0_66 = arith.constant 0 : index
    %c0_67 = arith.constant 0 : index
    %c0_68 = arith.constant 0 : index
    %63 = vector.load %arg7[%c0_66, %c0_67, %c0_68] : memref<2x32x64xf32, #tpu.memory_space<vmem>>, vector<1x32x64xf32>
    %64 = vector.shape_cast %63 : vector<1x32x64xf32> to vector<32x64xf32>
    %cst_69 = arith.constant dense<0.000000e+00> : vector<32x128xf32>
    %65 = tpu.matmul %64, %62, %cst_69 {dimension_numbers = #tpu.dot_dimension_numbers<[1], [0], [0], [1], [0, 0, 1, 1], [], []>} : vector<32x64xf32>, vector<64x128xf32>, vector<32x128xf32> -> vector<32x128xf32>
    %c1_70 = arith.constant 1 : index
    %c0_71 = arith.constant 0 : index
    %c0_72 = arith.constant 0 : index
    %66 = vector.load %arg7[%c1_70, %c0_71, %c0_72] : memref<2x32x64xf32, #tpu.memory_space<vmem>>, vector<1x32x64xf32>
    %67 = vector.shape_cast %66 : vector<1x32x64xf32> to vector<32x64xf32>
    %cst_73 = arith.constant dense<0.000000e+00> : vector<32x128xf32>
    %68 = tpu.matmul %67, %62, %cst_73 {dimension_numbers = #tpu.dot_dimension_numbers<[1], [0], [0], [1], [0, 0, 1, 1], [], []>} : vector<32x64xf32>, vector<64x128xf32>, vector<32x128xf32> -> vector<32x128xf32>
    %69 = arith.maximumf %65, %68 : vector<32x128xf32>
    %70 = vector.shape_cast %69 : vector<32x128xf32> to vector<2x16x128xf32>
    %c0_74 = arith.constant 0 : index
    %c1_75 = arith.constant 1 : index
    %c0_76 = arith.constant 0 : index
    %71 = vector.load %arg13[%c0_74, %c1_75, %c0_76] : memref<2x18x128xf32, #tpu.memory_space<vmem>>, vector<2x16x128xf32>
    tpu.vector_store %arg13[%c0_74, %c1_75, %c0_76], %70 {strides = array<i32>} : memref<2x18x128xf32, #tpu.memory_space<vmem>>, vector<2x16x128xf32>,
    %cst_77 = arith.constant 0.000000e+00 : f32
    %72 = vector.broadcast %cst_77 : f32 to vector<32x128xf32>
    %c0_78 = arith.constant 0 : index
    %c0_79 = arith.constant 0 : index
    %c0_80 = arith.constant 0 : index
    %73 = vector.load %arg13[%c0_78, %c0_79, %c0_80] : memref<2x18x128xf32, #tpu.memory_space<vmem>>, vector<2x16x128xf32>
    %74 = vector.shape_cast %73 : vector<2x16x128xf32> to vector<32x128xf32>
    %c0_81 = arith.constant 0 : index
    %c0_82 = arith.constant 0 : index
    %c0_83 = arith.constant 0 : index
    %75 = vector.load %arg3[%c0_81, %c0_82, %c0_83] : memref<6x128x128xf32, #tpu.memory_space<vmem>>, vector<1x128x128xf32>
    %76 = vector.shape_cast %75 : vector<1x128x128xf32> to vector<128x128xf32>
    %cst_84 = arith.constant dense<0.000000e+00> : vector<32x128xf32>
    %77 = tpu.matmul %74, %76, %cst_84 {dimension_numbers = #tpu.dot_dimension_numbers<[1], [0], [0], [1], [0, 0, 1, 1], [], []>} : vector<32x128xf32>, vector<128x128xf32>, vector<32x128xf32> -> vector<32x128xf32>
    %78 = arith.addf %72, %77 : vector<32x128xf32>
    %c0_85 = arith.constant 0 : index
    %c1_86 = arith.constant 1 : index
    %c0_87 = arith.constant 0 : index
    %79 = vector.load %arg13[%c0_85, %c1_86, %c0_87] : memref<2x18x128xf32, #tpu.memory_space<vmem>>, vector<2x16x128xf32>
    %80 = vector.shape_cast %79 : vector<2x16x128xf32> to vector<32x128xf32>
    %c1_88 = arith.constant 1 : index
    %c0_89 = arith.constant 0 : index
    %c0_90 = arith.constant 0 : index
    %81 = vector.load %arg3[%c1_88, %c0_89, %c0_90] : memref<6x128x128xf32, #tpu.memory_space<vmem>>, vector<1x128x128xf32>
    %82 = vector.shape_cast %81 : vector<1x128x128xf32> to vector<128x128xf32>
    %cst_91 = arith.constant dense<0.000000e+00> : vector<32x128xf32>
    %83 = tpu.matmul %80, %82, %cst_91 {dimension_numbers = #tpu.dot_dimension_numbers<[1], [0], [0], [1], [0, 0, 1, 1], [], []>} : vector<32x128xf32>, vector<128x128xf32>, vector<32x128xf32> -> vector<32x128xf32>
    %84 = arith.addf %78, %83 : vector<32x128xf32>
    %c0_92 = arith.constant 0 : index
    %c2_93 = arith.constant 2 : index
    %c0_94 = arith.constant 0 : index
    %85 = vector.load %arg13[%c0_92, %c2_93, %c0_94] : memref<2x18x128xf32, #tpu.memory_space<vmem>>, vector<2x16x128xf32>
    %86 = vector.shape_cast %85 : vector<2x16x128xf32> to vector<32x128xf32>
    %c2_95 = arith.constant 2 : index
    %c0_96 = arith.constant 0 : index
    %c0_97 = arith.constant 0 : index
    %87 = vector.load %arg3[%c2_95, %c0_96, %c0_97] : memref<6x128x128xf32, #tpu.memory_space<vmem>>, vector<1x128x128xf32>
    %88 = vector.shape_cast %87 : vector<1x128x128xf32> to vector<128x128xf32>
    %cst_98 = arith.constant dense<0.000000e+00> : vector<32x128xf32>
    %89 = tpu.matmul %86, %88, %cst_98 {dimension_numbers = #tpu.dot_dimension_numbers<[1], [0], [0], [1], [0, 0, 1, 1], [], []>} : vector<32x128xf32>, vector<128x128xf32>, vector<32x128xf32> -> vector<32x128xf32>
    %90 = arith.addf %84, %89 : vector<32x128xf32>
    %c0_99 = arith.constant 0 : index
    %c0_100 = arith.constant 0 : index
    %91 = vector.load %arg4[%c0_99, %c0_100] : memref<2x128xf32, #tpu.memory_space<vmem>>, vector<1x128xf32>
    %92 = vector.broadcast %91 : vector<1x128xf32> to vector<32x128xf32>
    %93 = arith.addf %90, %92 : vector<32x128xf32>
    %cst_101 = arith.constant 0.000000e+00 : f32
    %94 = vector.broadcast %cst_101 : f32 to vector<32x128xf32>
    %95 = arith.maximumf %93, %94 : vector<32x128xf32>
    %96 = vector.shape_cast %95 : vector<32x128xf32> to vector<2x16x128xf32>
    %c0_102 = arith.constant 0 : index
    %c1_103 = arith.constant 1 : index
    %c0_104 = arith.constant 0 : index
    %97 = vector.load %arg13[%c0_102, %c1_103, %c0_104] : memref<2x18x128xf32, #tpu.memory_space<vmem>>, vector<2x16x128xf32>
    tpu.vector_store %arg13[%c0_102, %c1_103, %c0_104], %96 {strides = array<i32>} : memref<2x18x128xf32, #tpu.memory_space<vmem>>, vector<2x16x128xf32>,
    %cst_105 = arith.constant 0.000000e+00 : f32
    %98 = vector.broadcast %cst_105 : f32 to vector<32x128xf32>
    %c0_106 = arith.constant 0 : index
    %c0_107 = arith.constant 0 : index
    %c0_108 = arith.constant 0 : index
    %99 = vector.load %arg13[%c0_106, %c0_107, %c0_108] : memref<2x18x128xf32, #tpu.memory_space<vmem>>, vector<2x16x128xf32>
    %100 = vector.shape_cast %99 : vector<2x16x128xf32> to vector<32x128xf32>
    %c3_109 = arith.constant 3 : index
    %c0_110 = arith.constant 0 : index
    %c0_111 = arith.constant 0 : index
    %101 = vector.load %arg3[%c3_109, %c0_110, %c0_111] : memref<6x128x128xf32, #tpu.memory_space<vmem>>, vector<1x128x128xf32>
    %102 = vector.shape_cast %101 : vector<1x128x128xf32> to vector<128x128xf32>
    %cst_112 = arith.constant dense<0.000000e+00> : vector<32x128xf32>
    %103 = tpu.matmul %100, %102, %cst_112 {dimension_numbers = #tpu.dot_dimension_numbers<[1], [0], [0], [1], [0, 0, 1, 1], [], []>} : vector<32x128xf32>, vector<128x128xf32>, vector<32x128xf32> -> vector<32x128xf32>
    %104 = arith.addf %98, %103 : vector<32x128xf32>
    %c0_113 = arith.constant 0 : index
    %c1_114 = arith.constant 1 : index
    %c0_115 = arith.constant 0 : index
    %105 = vector.load %arg13[%c0_113, %c1_114, %c0_115] : memref<2x18x128xf32, #tpu.memory_space<vmem>>, vector<2x16x128xf32>
    %106 = vector.shape_cast %105 : vector<2x16x128xf32> to vector<32x128xf32>
    %c4_116 = arith.constant 4 : index
    %c0_117 = arith.constant 0 : index
    %c0_118 = arith.constant 0 : index
    %107 = vector.load %arg3[%c4_116, %c0_117, %c0_118] : memref<6x128x128xf32, #tpu.memory_space<vmem>>, vector<1x128x128xf32>
    %108 = vector.shape_cast %107 : vector<1x128x128xf32> to vector<128x128xf32>
    %cst_119 = arith.constant dense<0.000000e+00> : vector<32x128xf32>
    %109 = tpu.matmul %106, %108, %cst_119 {dimension_numbers = #tpu.dot_dimension_numbers<[1], [0], [0], [1], [0, 0, 1, 1], [], []>} : vector<32x128xf32>, vector<128x128xf32>, vector<32x128xf32> -> vector<32x128xf32>
    %110 = arith.addf %104, %109 : vector<32x128xf32>
    %c0_120 = arith.constant 0 : index
    %c2_121 = arith.constant 2 : index
    %c0_122 = arith.constant 0 : index
    %111 = vector.load %arg13[%c0_120, %c2_121, %c0_122] : memref<2x18x128xf32, #tpu.memory_space<vmem>>, vector<2x16x128xf32>
    %112 = vector.shape_cast %111 : vector<2x16x128xf32> to vector<32x128xf32>
    %c5_123 = arith.constant 5 : index
    %c0_124 = arith.constant 0 : index
    %c0_125 = arith.constant 0 : index
    %113 = vector.load %arg3[%c5_123, %c0_124, %c0_125] : memref<6x128x128xf32, #tpu.memory_space<vmem>>, vector<1x128x128xf32>
    %114 = vector.shape_cast %113 : vector<1x128x128xf32> to vector<128x128xf32>
    %cst_126 = arith.constant dense<0.000000e+00> : vector<32x128xf32>
    %115 = tpu.matmul %112, %114, %cst_126 {dimension_numbers = #tpu.dot_dimension_numbers<[1], [0], [0], [1], [0, 0, 1, 1], [], []>} : vector<32x128xf32>, vector<128x128xf32>, vector<32x128xf32> -> vector<32x128xf32>
    %116 = arith.addf %110, %115 : vector<32x128xf32>
    %c1_127 = arith.constant 1 : index
    %c0_128 = arith.constant 0 : index
    %117 = vector.load %arg4[%c1_127, %c0_128] : memref<2x128xf32, #tpu.memory_space<vmem>>, vector<1x128xf32>
    %118 = vector.broadcast %117 : vector<1x128xf32> to vector<32x128xf32>
    %119 = arith.addf %116, %118 : vector<32x128xf32>
    %cst_129 = arith.constant 0.000000e+00 : f32
    %120 = vector.broadcast %cst_129 : f32 to vector<32x128xf32>
    %121 = arith.maximumf %119, %120 : vector<32x128xf32>
    %c0_130 = arith.constant 0 : index
    %c0_131 = arith.constant 0 : index
    %c0_132 = arith.constant 0 : index
    %122 = vector.load %arg6[%c0_130, %c0_131, %c0_132] : memref<2x128x64xf32, #tpu.memory_space<vmem>>, vector<1x128x64xf32>
    %123 = vector.shape_cast %122 : vector<1x128x64xf32> to vector<128x64xf32>
    %cst_133 = arith.constant dense<0.000000e+00> : vector<32x64xf32>
    %124 = tpu.matmul %121, %123, %cst_133 {dimension_numbers = #tpu.dot_dimension_numbers<[1], [0], [0], [1], [0, 0, 1, 1], [], []>} : vector<32x128xf32>, vector<128x64xf32>, vector<32x64xf32> -> vector<32x64xf32>
    %c1_134 = arith.constant 1 : index
    %c0_135 = arith.constant 0 : index
    %c0_136 = arith.constant 0 : index
    %125 = vector.load %arg6[%c1_134, %c0_135, %c0_136] : memref<2x128x64xf32, #tpu.memory_space<vmem>>, vector<1x128x64xf32>
    %126 = vector.shape_cast %125 : vector<1x128x64xf32> to vector<128x64xf32>
    %cst_137 = arith.constant dense<0.000000e+00> : vector<32x64xf32>
    %127 = tpu.matmul %121, %126, %cst_137 {dimension_numbers = #tpu.dot_dimension_numbers<[1], [0], [0], [1], [0, 0, 1, 1], [], []>} : vector<32x128xf32>, vector<128x64xf32>, vector<32x64xf32> -> vector<32x64xf32>
    %128 = arith.maximumf %124, %127 : vector<32x64xf32>
    %c0_138 = arith.constant 0 : index
    %c0_139 = arith.constant 0 : index
    %c0_140 = arith.constant 0 : index
    %129 = vector.load %arg8[%c0_138, %c0_139, %c0_140] : memref<2x16x32xf32, #tpu.memory_space<vmem>>, vector<1x16x32xf32>
    %130 = vector.shape_cast %129 : vector<1x16x32xf32> to vector<16x32xf32>
    %cst_141 = arith.constant dense<0.000000e+00> : vector<16x64xf32>
    %131 = tpu.matmul %130, %128, %cst_141 {dimension_numbers = #tpu.dot_dimension_numbers<[1], [0], [0], [1], [0, 0, 1, 1], [], []>} : vector<16x32xf32>, vector<32x64xf32>, vector<16x64xf32> -> vector<16x64xf32>
    %c1_142 = arith.constant 1 : index
    %c0_143 = arith.constant 0 : index
    %c0_144 = arith.constant 0 : index
    %132 = vector.load %arg8[%c1_142, %c0_143, %c0_144] : memref<2x16x32xf32, #tpu.memory_space<vmem>>, vector<1x16x32xf32>
    %133 = vector.shape_cast %132 : vector<1x16x32xf32> to vector<16x32xf32>
    %cst_145 = arith.constant dense<0.000000e+00> : vector<16x64xf32>
    %134 = tpu.matmul %133, %128, %cst_145 {dimension_numbers = #tpu.dot_dimension_numbers<[1], [0], [0], [1], [0, 0, 1, 1], [], []>} : vector<16x32xf32>, vector<32x64xf32>, vector<16x64xf32> -> vector<16x64xf32>
    %135 = arith.maximumf %131, %134 : vector<16x64xf32>
    %136 = vector.shape_cast %135 : vector<16x64xf32> to vector<2x8x64xf32>
    %cst_146 = arith.constant 0.000000e+00 : f32
    %137 = vector.broadcast %cst_146 : f32 to vector<2x10xf32>
    %138 = vector.extract_strided_slice %136 {offsets = [0, 0, 0], sizes = [2, 1, 64], strides = [1, 1, 1]} : vector<2x8x64xf32> to vector<2x1x64xf32>
    %139 = vector.shape_cast %138 : vector<2x1x64xf32> to vector<2x64xf32>
    %c0_147 = arith.constant 0 : index
    %c0_148 = arith.constant 0 : index
    %c0_149 = arith.constant 0 : index
    %140 = vector.load %arg9[%c0_147, %c0_148, %c0_149] : memref<8x64x10xf32, #tpu.memory_space<vmem>>, vector<1x64x10xf32>
    %141 = vector.shape_cast %140 : vector<1x64x10xf32> to vector<64x10xf32>
    %cst_150 = arith.constant dense<0.000000e+00> : vector<2x10xf32>
    %142 = tpu.matmul %139, %141, %cst_150 {dimension_numbers = #tpu.dot_dimension_numbers<[1], [0], [0], [1], [0, 0, 1, 1], [], []>} : vector<2x64xf32>, vector<64x10xf32>, vector<2x10xf32> -> vector<2x10xf32>
    %143 = arith.addf %137, %142 : vector<2x10xf32>
    %144 = vector.extract_strided_slice %136 {offsets = [0, 1, 0], sizes = [2, 1, 64], strides = [1, 1, 1]} : vector<2x8x64xf32> to vector<2x1x64xf32>
    %145 = vector.shape_cast %144 : vector<2x1x64xf32> to vector<2x64xf32>
    %c1_151 = arith.constant 1 : index
    %c0_152 = arith.constant 0 : index
    %c0_153 = arith.constant 0 : index
    %146 = vector.load %arg9[%c1_151, %c0_152, %c0_153] : memref<8x64x10xf32, #tpu.memory_space<vmem>>, vector<1x64x10xf32>
    %147 = vector.shape_cast %146 : vector<1x64x10xf32> to vector<64x10xf32>
    %cst_154 = arith.constant dense<0.000000e+00> : vector<2x10xf32>
    %148 = tpu.matmul %145, %147, %cst_154 {dimension_numbers = #tpu.dot_dimension_numbers<[1], [0], [0], [1], [0, 0, 1, 1], [], []>} : vector<2x64xf32>, vector<64x10xf32>, vector<2x10xf32> -> vector<2x10xf32>
    %149 = arith.addf %143, %148 : vector<2x10xf32>
    %150 = vector.extract_strided_slice %136 {offsets = [0, 2, 0], sizes = [2, 1, 64], strides = [1, 1, 1]} : vector<2x8x64xf32> to vector<2x1x64xf32>
    %151 = vector.shape_cast %150 : vector<2x1x64xf32> to vector<2x64xf32>
    %c2_155 = arith.constant 2 : index
    %c0_156 = arith.constant 0 : index
    %c0_157 = arith.constant 0 : index
    %152 = vector.load %arg9[%c2_155, %c0_156, %c0_157] : memref<8x64x10xf32, #tpu.memory_space<vmem>>, vector<1x64x10xf32>
    %153 = vector.shape_cast %152 : vector<1x64x10xf32> to vector<64x10xf32>
    %cst_158 = arith.constant dense<0.000000e+00> : vector<2x10xf32>
    %154 = tpu.matmul %151, %153, %cst_158 {dimension_numbers = #tpu.dot_dimension_numbers<[1], [0], [0], [1], [0, 0, 1, 1], [], []>} : vector<2x64xf32>, vector<64x10xf32>, vector<2x10xf32> -> vector<2x10xf32>
    %155 = arith.addf %149, %154 : vector<2x10xf32>
    %156 = vector.extract_strided_slice %136 {offsets = [0, 3, 0], sizes = [2, 1, 64], strides = [1, 1, 1]} : vector<2x8x64xf32> to vector<2x1x64xf32>
    %157 = vector.shape_cast %156 : vector<2x1x64xf32> to vector<2x64xf32>
    %c3_159 = arith.constant 3 : index
    %c0_160 = arith.constant 0 : index
    %c0_161 = arith.constant 0 : index
    %158 = vector.load %arg9[%c3_159, %c0_160, %c0_161] : memref<8x64x10xf32, #tpu.memory_space<vmem>>, vector<1x64x10xf32>
    %159 = vector.shape_cast %158 : vector<1x64x10xf32> to vector<64x10xf32>
    %cst_162 = arith.constant dense<0.000000e+00> : vector<2x10xf32>
    %160 = tpu.matmul %157, %159, %cst_162 {dimension_numbers = #tpu.dot_dimension_numbers<[1], [0], [0], [1], [0, 0, 1, 1], [], []>} : vector<2x64xf32>, vector<64x10xf32>, vector<2x10xf32> -> vector<2x10xf32>
    %161 = arith.addf %155, %160 : vector<2x10xf32>
    %162 = vector.extract_strided_slice %136 {offsets = [0, 4, 0], sizes = [2, 1, 64], strides = [1, 1, 1]} : vector<2x8x64xf32> to vector<2x1x64xf32>
    %163 = vector.shape_cast %162 : vector<2x1x64xf32> to vector<2x64xf32>
    %c4_163 = arith.constant 4 : index
    %c0_164 = arith.constant 0 : index
    %c0_165 = arith.constant 0 : index
    %164 = vector.load %arg9[%c4_163, %c0_164, %c0_165] : memref<8x64x10xf32, #tpu.memory_space<vmem>>, vector<1x64x10xf32>
    %165 = vector.shape_cast %164 : vector<1x64x10xf32> to vector<64x10xf32>
    %cst_166 = arith.constant dense<0.000000e+00> : vector<2x10xf32>
    %166 = tpu.matmul %163, %165, %cst_166 {dimension_numbers = #tpu.dot_dimension_numbers<[1], [0], [0], [1], [0, 0, 1, 1], [], []>} : vector<2x64xf32>, vector<64x10xf32>, vector<2x10xf32> -> vector<2x10xf32>
    %167 = arith.addf %161, %166 : vector<2x10xf32>
    %168 = vector.extract_strided_slice %136 {offsets = [0, 5, 0], sizes = [2, 1, 64], strides = [1, 1, 1]} : vector<2x8x64xf32> to vector<2x1x64xf32>
    %169 = vector.shape_cast %168 : vector<2x1x64xf32> to vector<2x64xf32>
    %c5_167 = arith.constant 5 : index
    %c0_168 = arith.constant 0 : index
    %c0_169 = arith.constant 0 : index
    %170 = vector.load %arg9[%c5_167, %c0_168, %c0_169] : memref<8x64x10xf32, #tpu.memory_space<vmem>>, vector<1x64x10xf32>
    %171 = vector.shape_cast %170 : vector<1x64x10xf32> to vector<64x10xf32>
    %cst_170 = arith.constant dense<0.000000e+00> : vector<2x10xf32>
    %172 = tpu.matmul %169, %171, %cst_170 {dimension_numbers = #tpu.dot_dimension_numbers<[1], [0], [0], [1], [0, 0, 1, 1], [], []>} : vector<2x64xf32>, vector<64x10xf32>, vector<2x10xf32> -> vector<2x10xf32>
    %173 = arith.addf %167, %172 : vector<2x10xf32>
    %174 = vector.extract_strided_slice %136 {offsets = [0, 6, 0], sizes = [2, 1, 64], strides = [1, 1, 1]} : vector<2x8x64xf32> to vector<2x1x64xf32>
    %175 = vector.shape_cast %174 : vector<2x1x64xf32> to vector<2x64xf32>
    %c6 = arith.constant 6 : index
    %c0_171 = arith.constant 0 : index
    %c0_172 = arith.constant 0 : index
    %176 = vector.load %arg9[%c6, %c0_171, %c0_172] : memref<8x64x10xf32, #tpu.memory_space<vmem>>, vector<1x64x10xf32>
    %177 = vector.shape_cast %176 : vector<1x64x10xf32> to vector<64x10xf32>
    %cst_173 = arith.constant dense<0.000000e+00> : vector<2x10xf32>
    %178 = tpu.matmul %175, %177, %cst_173 {dimension_numbers = #tpu.dot_dimension_numbers<[1], [0], [0], [1], [0, 0, 1, 1], [], []>} : vector<2x64xf32>, vector<64x10xf32>, vector<2x10xf32> -> vector<2x10xf32>
    %179 = arith.addf %173, %178 : vector<2x10xf32>
    %180 = vector.extract_strided_slice %136 {offsets = [0, 7, 0], sizes = [2, 1, 64], strides = [1, 1, 1]} : vector<2x8x64xf32> to vector<2x1x64xf32>
    %181 = vector.shape_cast %180 : vector<2x1x64xf32> to vector<2x64xf32>
    %c7 = arith.constant 7 : index
    %c0_174 = arith.constant 0 : index
    %c0_175 = arith.constant 0 : index
    %182 = vector.load %arg9[%c7, %c0_174, %c0_175] : memref<8x64x10xf32, #tpu.memory_space<vmem>>, vector<1x64x10xf32>
    %183 = vector.shape_cast %182 : vector<1x64x10xf32> to vector<64x10xf32>
    %cst_176 = arith.constant dense<0.000000e+00> : vector<2x10xf32>
    %184 = tpu.matmul %181, %183, %cst_176 {dimension_numbers = #tpu.dot_dimension_numbers<[1], [0], [0], [1], [0, 0, 1, 1], [], []>} : vector<2x64xf32>, vector<64x10xf32>, vector<2x10xf32> -> vector<2x10xf32>
    %185 = arith.addf %179, %184 : vector<2x10xf32>
    %c0_177 = arith.constant 0 : index
    %c0_178 = arith.constant 0 : index
    %186 = vector.load %arg10[%c0_177, %c0_178] : memref<1x10xf32, #tpu.memory_space<vmem>>, vector<1x10xf32>
    %187 = vector.broadcast %186 : vector<1x10xf32> to vector<2x10xf32>
    %188 = arith.addf %185, %187 : vector<2x10xf32>
    %c0_179 = arith.constant 0 : index
    %c0_180 = arith.constant 0 : index
    %189 = vector.load %arg11[%c0_179, %c0_180] : memref<2x10xf32, #tpu.memory_space<vmem>>, vector<2x10xf32>
    tpu.vector_store %arg11[%c0_179, %c0_180], %188 {strides = array<i32>} : memref<2x10xf32, #tpu.memory_space<vmem>>, vector<2x10xf32>,
    return
  }
}

</mosaic_0001>

<llo_original>
// kernel: tinyvgg_forward.1
$region0: #{tinyvgg_forward.1}
  #allocation0 [shape = 'u32[]', space=smem, size = 0x4, offset = 0x4, fixed_abs, tag = 'smem constant byte address 0x4 - core index']
  #allocation1 [shape = 'u32[72,128]{1,0:T(1,128)}', space=vmem, size = 0x9000, scoped, tag = 'internal scratch']
  #allocation2 [shape = 'f32[2,34,256]{2,1,0:T(8,128)}', space=vmem, size = 0x14000, scoped, tag = 'scratch operand']
  #allocation3 [shape = 'f32[2,18,128]{2,1,0:T(8,128)}', space=vmem, size = 0x6000, scoped, tag = 'scratch operand']
  %s0 = inlined_call_operand.vmem [shape: f32[2,34,256], index: 0, kind: input, shape index: {}]
  %s1 = inlined_call_operand.hbm [shape: f32[6,256,256], index: 1, kind: input, shape index: {}]
  %s2 = inlined_call_operand.hbm [shape: f32[2,256], index: 2, kind: input, shape index: {}]
  %s3 = inlined_call_operand.hbm [shape: f32[6,128,128], index: 3, kind: input, shape index: {}]
  %s4 = inlined_call_operand.hbm [shape: f32[2,128], index: 4, kind: input, shape index: {}]
  %s5 = inlined_call_operand.hbm [shape: f32[2,256,128], index: 5, kind: input, shape index: {}]
  %s6 = inlined_call_operand.vmem [shape: f32[2,128,64], index: 6, kind: input, shape index: {}]
  %s7 = inlined_call_operand.hbm [shape: f32[2,32,64], index: 7, kind: input, shape index: {}]
  %s8 = inlined_call_operand.hbm [shape: f32[2,16,32], index: 8, kind: input, shape index: {}]
  %s9 = inlined_call_operand.vmem [shape: f32[8,64,10], index: 9, kind: input, shape index: {}]
  %s10 = inlined_call_operand.hbm [shape: f32[1,10], index: 10, kind: input, shape index: {}]
  %s11 = inlined_call_operand.hbm [shape: f32[2,10], index: 11, kind: output, shape index: {}]
  %s12 = sld [smem:[#allocation0]]
  $region86: #{tinyvgg_forward.1} parent=0
    _
  %s14 = ssub.s32 1, %s12
  %s15 = scalar_select 0, %s14, %s12
  $region1: #{tinyvgg_forward.1} parent=0
    #allocation4 [shape = 'u8[1572864]{0}', space=vmem, size = 0x180000, scoped, tag = 'input window, operand 1, single buffered']
    #allocation5 [shape = 's32[1]{0}', space=sflag, size = 0x4, scoped, tag = 'scoped memory for tinyvgg_forward.1']
    #allocation6 [shape = 's32[1]{0}', space=sflag, size = 0x4, scoped, tag = 'scoped memory for tinyvgg_forward.1']
    #allocation7 [shape = 'u8[2048]{0}', space=vmem, size = 0x800, scoped, tag = 'input window, operand 2, single buffered']
    #allocation8 [shape = 's32[1]{0}', space=sflag, size = 0x4, scoped, tag = 'scoped memory for tinyvgg_forward.1']
    #allocation9 [shape = 'u8[393216]{0}', space=vmem, size = 0x60000, scoped, tag = 'input window, operand 3, single buffered']
    #allocation10 [shape = 'u8[1024]{0}', space=vmem, size = 0x400, scoped, tag = 'input window, operand 4, single buffered']
    #allocation11 [shape = 's32[1]{0}', space=sflag, size = 0x4, scoped, tag = 'scoped memory for tinyvgg_forward.1']
    #allocation12 [shape = 'u8[262144]{0}', space=vmem, size = 0x40000, scoped, tag = 'input window, operand 5, single buffered']
    #allocation13 [shape = 'u8[32768]{0}', space=vmem, size = 0x8000, scoped, tag = 'input window, operand 7, single buffered']
    #allocation14 [shape = 's32[1]{0}', space=sflag, size = 0x4, scoped, tag = 'scoped memory for tinyvgg_forward.1']
    #allocation15 [shape = 'u8[16384]{0}', space=vmem, size = 0x4000, scoped, tag = 'input window, operand 8, single buffered']
    #allocation16 [shape = 'u8[512]{0}', space=vmem, size = 0x400, scoped, tag = 'input window, operand 10, single buffered']
    #allocation17 [shape = 's32[1]{0}', space=sflag, size = 0x4, scoped, tag = 'scoped memory for tinyvgg_forward.1']
    #allocation18 [shape = 'u8[1024]{0}', space=vmem, size = 0x400, scoped, tag = 'output window, operand 0, single buffered']
    %16 = vsyncpa [#allocation5], 0
    %17 = vsyncpa [#allocation8], 0
    %18 = vsyncpa [#allocation11], 0
    %19 = vsyncpa [#allocation14], 0
    %20 = vsyncpa [#allocation17], 0
    %21 = vsyncpa [#allocation6], 0
    // Predicated region
    $region2: #{tinyvgg_forward.1} parent=1 // pred_check
      _
    $region3: #{tinyvgg_forward.1} parent=1 // pred_check_branch
      %23 = sbr.rel (0) target = $region5
    $region4: #{tinyvgg_forward.1} parent=1 // pred_region
      _
    $region5: #{tinyvgg_forward.1} parent=1 // pred_fallthru
      _
    // Predicated region
    $region6: #{tinyvgg_forward.1} parent=1 // pred_check
      _
    $region7: #{tinyvgg_forward.1} parent=1 // pred_check_branch
      %25 = sbr.rel (0) target = $region9
    $region8: #{tinyvgg_forward.1} parent=1 // pred_region
      %27 = vsyncadd [#allocation5], 0
      %s28 = sshll.u32 %s1, 4
      %s29 = int_to_ptr.hbm [resolvable:$true] %s28
      %s30 = sshll.u32 [#allocation4], 4
      %s31 = int_to_ptr.vmem [resolvable:$true] %s30
      %36 = dma.hbm_to_vmem [thread:$0]  %s29, 49152, %s31, [#allocation5], 256, 256, 16
    $region9: #{tinyvgg_forward.1} parent=1 // pred_fallthru
      _
    // Predicated region
    $region10: #{tinyvgg_forward.1} parent=1 // pred_check
      _
    $region11: #{tinyvgg_forward.1} parent=1 // pred_check_branch
      %38 = sbr.rel (0) target = $region13
    $region12: #{tinyvgg_forward.1} parent=1 // pred_region
      %40 = vsyncadd [#allocation8], 0
      %s42 = sshll.u32 %s2, 4
      %s43 = int_to_ptr.hbm [resolvable:$true] %s42
      %s44 = sshll.u32 [#allocation7], 4
      %s45 = int_to_ptr.vmem [resolvable:$true] %s44
      %47 = dma.hbm_to_vmem [thread:$0]  %s43, 64, %s45, [#allocation8]
    $region13: #{tinyvgg_forward.1} parent=1 // pred_fallthru
      _
    // Predicated region
    $region14: #{tinyvgg_forward.1} parent=1 // pred_check
      _
    $region15: #{tinyvgg_forward.1} parent=1 // pred_check_branch
      %49 = sbr.rel (0) target = $region17
    $region16: #{tinyvgg_forward.1} parent=1 // pred_region
      %51 = vsyncadd [#allocation8], 0
      %s52 = sshll.u32 %s3, 4
      %s53 = int_to_ptr.hbm [resolvable:$true] %s52
      %s54 = sshll.u32 [#allocation9], 4
      %s55 = int_to_ptr.vmem [resolvable:$true] %s54
      %60 = dma.hbm_to_vmem [thread:$0]  %s53, 12288, %s55, [#allocation8], 128, 128, 8
    $region17: #{tinyvgg_forward.1} parent=1 // pred_fallthru
      _
    // Predicated region
    $region18: #{tinyvgg_forward.1} parent=1 // pred_check
      _
    $region19: #{tinyvgg_forward.1} parent=1 // pred_check_branch
      %62 = sbr.rel (0) target = $region21
    $region20: #{tinyvgg_forward.1} parent=1 // pred_region
      %64 = vsyncadd [#allocation11], 0
      %s66 = sshll.u32 %s4, 4
      %s67 = int_to_ptr.hbm [resolvable:$true] %s66
      %s68 = sshll.u32 [#allocation10], 4
      %s69 = int_to_ptr.vmem [resolvable:$true] %s68
      %71 = dma.hbm_to_vmem [thread:$0]  %s67, 32, %s69, [#allocation11]
    $region21: #{tinyvgg_forward.1} parent=1 // pred_fallthru
      _
    // Predicated region
    $region22: #{tinyvgg_forward.1} parent=1 // pred_check
      _
    $region23: #{tinyvgg_forward.1} parent=1 // pred_check_branch
      %73 = sbr.rel (0) target = $region25
    $region24: #{tinyvgg_forward.1} parent=1 // pred_region
      %75 = vsyncadd [#allocation11], 0
      %s76 = sshll.u32 %s5, 4
      %s77 = int_to_ptr.hbm [resolvable:$true] %s76
      %s78 = sshll.u32 [#allocation12], 4
      %s79 = int_to_ptr.vmem [resolvable:$true] %s78
      %84 = dma.hbm_to_vmem [thread:$0]  %s77, 8192, %s79, [#allocation11], 128, 128, 8
    $region25: #{tinyvgg_forward.1} parent=1 // pred_fallthru
      _
    // Predicated region
    $region26: #{tinyvgg_forward.1} parent=1 // pred_check
      _
    $region27: #{tinyvgg_forward.1} parent=1 // pred_check_branch
      %86 = sbr.rel (0) target = $region29
    $region28: #{tinyvgg_forward.1} parent=1 // pred_region
      _
    $region29: #{tinyvgg_forward.1} parent=1 // pred_fallthru
      _
    // Predicated region
    $region30: #{tinyvgg_forward.1} parent=1 // pred_check
      _
    $region31: #{tinyvgg_forward.1} parent=1 // pred_check_branch
      %88 = sbr.rel (0) target = $region33
    $region32: #{tinyvgg_forward.1} parent=1 // pred_region
      %90 = vsyncadd [#allocation14], 0
      %s91 = sshll.u32 %s7, 4
      %s92 = int_to_ptr.hbm [resolvable:$true] %s91
      %s93 = sshll.u32 [#allocation13], 4
      %s94 = int_to_ptr.vmem [resolvable:$true] %s93
      %99 = dma.hbm_to_vmem [thread:$0]  %s92, 1024, %s94, [#allocation14], 128, 128, 8
    $region33: #{tinyvgg_forward.1} parent=1 // pred_fallthru
      _
    // Predicated region
    $region34: #{tinyvgg_forward.1} parent=1 // pred_check
      _
    $region35: #{tinyvgg_forward.1} parent=1 // pred_check_branch
      %101 = sbr.rel (0) target = $region37
    $region36: #{tinyvgg_forward.1} parent=1 // pred_region
      %103 = vsyncadd [#allocation14], 0
      %s104 = sshll.u32 %s8, 4
      %s105 = int_to_ptr.hbm [resolvable:$true] %s104
      %s106 = sshll.u32 [#allocation15], 4
      %s107 = int_to_ptr.vmem [resolvable:$true] %s106
      %112 = dma.hbm_to_vmem [thread:$0]  %s105, 512, %s107, [#allocation14], 128, 128, 8
    $region37: #{tinyvgg_forward.1} parent=1 // pred_fallthru
      _
    // Predicated region
    $region38: #{tinyvgg_forward.1} parent=1 // pred_check
      _
    $region39: #{tinyvgg_forward.1} parent=1 // pred_check_branch
      %114 = sbr.rel (0) target = $region41
    $region40: #{tinyvgg_forward.1} parent=1 // pred_region
      _
    $region41: #{tinyvgg_forward.1} parent=1 // pred_fallthru
      _
    // Predicated region
    $region42: #{tinyvgg_forward.1} parent=1 // pred_check
      _
    $region43: #{tinyvgg_forward.1} parent=1 // pred_check_branch
      %116 = sbr.rel (0) target = $region45
    $region44: #{tinyvgg_forward.1} parent=1 // pred_region
      %118 = vsyncadd [#allocation17], 0
      %s120 = sshll.u32 %s10, 4
      %s121 = int_to_ptr.hbm [resolvable:$true] %s120
      %s122 = sshll.u32 [#allocation16], 4
      %s123 = int_to_ptr.vmem [resolvable:$true] %s122
      %125 = dma.hbm_to_vmem [thread:$0]  %s121, 16, %s123, [#allocation17]
    $region45: #{tinyvgg_forward.1} parent=1 // pred_fallthru
      _
    // Predicated region
    $region46: #{tinyvgg_forward.1} parent=1 // pred_check
      _
    $region47: #{tinyvgg_forward.1} parent=1 // pred_check_branch
      %127 = sbr.rel (0) target = $region49
    $region48: #{tinyvgg_forward.1} parent=1 // pred_region
      %129 = dma.done [#allocation5], 49152
    $region49: #{tinyvgg_forward.1} parent=1 // pred_fallthru
      _
    // Predicated region
    $region50: #{tinyvgg_forward.1} parent=1 // pred_check
      _
    $region51: #{tinyvgg_forward.1} parent=1 // pred_check_branch
      %131 = sbr.rel (0) target = $region53
    $region52: #{tinyvgg_forward.1} parent=1 // pred_region
      %133 = dma.done [#allocation8], 64
    $region53: #{tinyvgg_forward.1} parent=1 // pred_fallthru
      _
    // Predicated region
    $region54: #{tinyvgg_forward.1} parent=1 // pred_check
      _
    $region55: #{tinyvgg_forward.1} parent=1 // pred_check_branch
      %135 = sbr.rel (0) target = $region57
    $region56: #{tinyvgg_forward.1} parent=1 // pred_region
      %137 = dma.done [#allocation8], 12288
    $region57: #{tinyvgg_forward.1} parent=1 // pred_fallthru
      _
    // Predicated region
    $region58: #{tinyvgg_forward.1} parent=1 // pred_check
      _
    $region59: #{tinyvgg_forward.1} parent=1 // pred_check_branch
      %139 = sbr.rel (0) target = $region61
    $region60: #{tinyvgg_forward.1} parent=1 // pred_region
      %141 = dma.done [#allocation11], 32
    $region61: #{tinyvgg_forward.1} parent=1 // pred_fallthru
      _
    // Predicated region
    $region62: #{tinyvgg_forward.1} parent=1 // pred_check
      _
    $region63: #{tinyvgg_forward.1} parent=1 // pred_check_branch
      %143 = sbr.rel (0) target = $region65
    $region64: #{tinyvgg_forward.1} parent=1 // pred_region
      %145 = dma.done [#allocation11], 8192
    $region65: #{tinyvgg_forward.1} parent=1 // pred_fallthru
      _
    // Predicated region
    $region66: #{tinyvgg_forward.1} parent=1 // pred_check
      _
    $region67: #{tinyvgg_forward.1} parent=1 // pred_check_branch
      %147 = sbr.rel (0) target = $region69
    $region68: #{tinyvgg_forward.1} parent=1 // pred_region
      %149 = dma.done [#allocation14], 1024
    $region69: #{tinyvgg_forward.1} parent=1 // pred_fallthru
      _
    // Predicated region
    $region70: #{tinyvgg_forward.1} parent=1 // pred_check
      _
    $region71: #{tinyvgg_forward.1} parent=1 // pred_check_branch
      %151 = sbr.rel (0) target = $region73
    $region72: #{tinyvgg_forward.1} parent=1 // pred_region
      %153 = dma.done [#allocation14], 512
    $region73: #{tinyvgg_forward.1} parent=1 // pred_fallthru
      _
    // Predicated region
    $region74: #{tinyvgg_forward.1} parent=1 // pred_check
      _
    $region75: #{tinyvgg_forward.1} parent=1 // pred_check_branch
      %155 = sbr.rel (0) target = $region77
    $region76: #{tinyvgg_forward.1} parent=1 // pred_region
      %157 = dma.done [#allocation17], 16
    $region77: #{tinyvgg_forward.1} parent=1 // pred_fallthru
      _
    %v158 = vlaneseq
    %vm159 = vcmp.ge.s32.totalorder %v158, 0
    %vm160 = vcmp.lt.s32.totalorder %v158, 256
    %vm161 = vmand %vm159, %vm160
    %162 = vst.msk [vmem:[#allocation2] ss:$8 sm:$0x3] %vm161, 0.0
    %163 = vst.msk [vmem:[#allocation2] ss:$8 sm:$0x0] %vm161, 0.0
    %s164 = scalar_lea.vmem [#allocation2], 80
    %165 = vst.msk [vmem:[%s164] ss:$8 sm:$0x3] %vm161, 0.0
    %166 = vst.msk [vmem:[%s164] ss:$8 sm:$0x0] %vm161, 0.0
    %s167 = scalar_lea.vmem [#allocation2], 65
    %168 = vst.msk [vmem:[%s167] ss:$8 sm:$0x3] %vm161, 0.0
    %169 = vst.msk [vmem:[%s167] ss:$8 sm:$0x0] %vm161, 0.0
    %s170 = scalar_lea.vmem [#allocation2], 145
    %171 = vst.msk [vmem:[%s170] ss:$8 sm:$0x3] %vm161, 0.0
    %172 = vst.msk [vmem:[%s170] ss:$8 sm:$0x0] %vm161, 0.0
    %173 = vst [vmem:[#allocation3] sm:$0x1] 0.0
    %174 = vst [vmem:[#allocation3 + $0x18] sm:$0x1] 0.0
    %175 = vst [vmem:[#allocation3 + $0x11] sm:$0x1] 0.0
    %176 = vst [vmem:[#allocation3 + $0x29] sm:$0x1] 0.0
    %v177 = vld [vmem:[%s0] sm:$0xff]
    %v178 = vld [vmem:[%s0 + $0x8] sm:$0xff]
    %v179 = vld [vmem:[%s0 + $0x10] sm:$0xff]
    %v180 = vld [vmem:[%s0 + $0x18] sm:$0xff]
    %v181 = vld [vmem:[%s0 + $0x20] sm:$0xff]
    %v182 = vld [vmem:[%s0 + $0x28] sm:$0xff]
    %v183 = vld [vmem:[%s0 + $0x30] sm:$0xff]
    %v184 = vld [vmem:[%s0 + $0x38] sm:$0xff]
    %v185 = vld [vmem:[%s0 + $0x50] sm:$0xff]
    %v186 = vld [vmem:[%s0 + $0x58] sm:$0xff]
    %v187 = vld [vmem:[%s0 + $0x60] sm:$0xff]
    %v188 = vld [vmem:[%s0 + $0x68] sm:$0xff]
    %v189 = vld [vmem:[%s0 + $0x70] sm:$0xff]
    %v190 = vld [vmem:[%s0 + $0x78] sm:$0xff]
    %v191 = vld [vmem:[%s0 + $0x80] sm:$0xff]
    %v192 = vld [vmem:[%s0 + $0x88] sm:$0xff]
    %v193 = vld [vmem:[#allocation4] sm:$0xff]
    %v194 = vld [vmem:[#allocation4 + $0x8] sm:$0xff]
    %v195 = vld [vmem:[#allocation4 + $0x10] sm:$0xff]
    %v196 = vld [vmem:[#allocation4 + $0x18] sm:$0xff]
    %v197 = vld [vmem:[#allocation4 + $0x20] sm:$0xff]
    %v198 = vld [vmem:[#allocation4 + $0x28] sm:$0xff]
    %v199 = vld [vmem:[#allocation4 + $0x30] sm:$0xff]
    %v200 = vld [vmem:[#allocation4 + $0x38] sm:$0xff]
    %v201 = vld [vmem:[#allocation4 + $0x40] sm:$0xff]
    %v202 = vld [vmem:[#allocation4 + $0x48] sm:$0xff]
    %v203 = vld [vmem:[#allocation4 + $0x50] sm:$0xff]
    %v204 = vld [vmem:[#allocation4 + $0x58] sm:$0xff]
    %v205 = vld [vmem:[#allocation4 + $0x60] sm:$0xff]
    %v206 = vld [vmem:[#allocation4 + $0x68] sm:$0xff]
    %v207 = vld [vmem:[#allocation4 + $0x70] sm:$0xff]
    %v208 = vld [vmem:[#allocation4 + $0x78] sm:$0xff]
    %v209 = vld [vmem:[#allocation4 + $0x80] sm:$0xff]
    %v210 = vld [vmem:[#allocation4 + $0x88] sm:$0xff]
    %v211 = vld [vmem:[#allocation4 + $0x90] sm:$0xff]
    %v212 = vld [vmem:[#allocation4 + $0x98] sm:$0xff]
    %v213 = vld [vmem:[#allocation4 + $0xa0] sm:$0xff]
    %v214 = vld [vmem:[#allocation4 + $0xa8] sm:$0xff]
    %v215 = vld [vmem:[#allocation4 + $0xb0] sm:$0xff]
    %v216 = vld [vmem:[#allocation4 + $0xb8] sm:$0xff]
    %v217 = vld [vmem:[#allocation4 + $0xc0] sm:$0xff]
    %v218 = vld [vmem:[#allocation4 + $0xc8] sm:$0xff]
    %v219 = vld [vmem:[#allocation4 + $0xd0] sm:$0xff]
    %v220 = vld [vmem:[#allocation4 + $0xd8] sm:$0xff]
    %v221 = vld [vmem:[#allocation4 + $0xe0] sm:$0xff]
    %v222 = vld [vmem:[#allocation4 + $0xe8] sm:$0xff]
    %v223 = vld [vmem:[#allocation4 + $0xf0] sm:$0xff]
    %v224 = vld [vmem:[#allocation4 + $0xf8] sm:$0xff]
    %v225 = vld [vmem:[#allocation4 + $0x100] sm:$0xff]
    %v226 = vld [vmem:[#allocation4 + $0x108] sm:$0xff]
    %v227 = vld [vmem:[#allocation4 + $0x110] sm:$0xff]
    %v228 = vld [vmem:[#allocation4 + $0x118] sm:$0xff]
    %v229 = vld [vmem:[#allocation4 + $0x120] sm:$0xff]
    %v230 = vld [vmem:[#allocation4 + $0x128] sm:$0xff]
    %v231 = vld [vmem:[#allocation4 + $0x130] sm:$0xff]
    %v232 = vld [vmem:[#allocation4 + $0x138] sm:$0xff]
    %v233 = vld [vmem:[#allocation4 + $0x140] sm:$0xff]
    %v234 = vld [vmem:[#allocation4 + $0x148] sm:$0xff]
    %v235 = vld [vmem:[#allocation4 + $0x150] sm:$0xff]
    %v236 = vld [vmem:[#allocation4 + $0x158] sm:$0xff]
    %v237 = vld [vmem:[#allocation4 + $0x160] sm:$0xff]
    %v238 = vld [vmem:[#allocation4 + $0x168] sm:$0xff]
    %v239 = vld [vmem:[#allocation4 + $0x170] sm:$0xff]
    %v240 = vld [vmem:[#allocation4 + $0x178] sm:$0xff]
    %v241 = vld [vmem:[#allocation4 + $0x180] sm:$0xff]
    %v242 = vld [vmem:[#allocation4 + $0x188] sm:$0xff]
    %v243 = vld [vmem:[#allocation4 + $0x190] sm:$0xff]
    %v244 = vld [vmem:[#allocation4 + $0x198] sm:$0xff]
    %v245 = vld [vmem:[#allocation4 + $0x1a0] sm:$0xff]
    %v246 = vld [vmem:[#allocation4 + $0x1a8] sm:$0xff]
    %v247 = vld [vmem:[#allocation4 + $0x1b0] sm:$0xff]
    %v248 = vld [vmem:[#allocation4 + $0x1b8] sm:$0xff]
    %v249 = vld [vmem:[#allocation4 + $0x1c0] sm:$0xff]
    %v250 = vld [vmem:[#allocation4 + $0x1c8] sm:$0xff]
    %v251 = vld [vmem:[#allocation4 + $0x1d0] sm:$0xff]
    %v252 = vld [vmem:[#allocation4 + $0x1d8] sm:$0xff]
    %v253 = vld [vmem:[#allocation4 + $0x1e0] sm:$0xff]
    %v254 = vld [vmem:[#allocation4 + $0x1e8] sm:$0xff]
    %v255 = vld [vmem:[#allocation4 + $0x1f0] sm:$0xff]
    %v256 = vld [vmem:[#allocation4 + $0x1f8] sm:$0xff]
    %v257 = vld [vmem:[%s0] sm:$0xfe]
    %v258 = vld [vmem:[%s0 + $0x8] sm:$0xfe]
    %v259 = vld [vmem:[%s0 + $0x40] sm:$0x1]
    %v260 = vld [vmem:[%s0 + $0x48] sm:$0x1]
    %v261 = vld [vmem:[%s0 + $0x50] sm:$0xfe]
    %v262 = vld [vmem:[%s0 + $0x58] sm:$0xfe]
    %v263 = vld [vmem:[%s0 + $0x90] sm:$0x1]
    %v264 = vld [vmem:[%s0 + $0x98] sm:$0x1]
    %vm285 = vcmask 1046528
    %v286 = vrot.slane %v257, 1
    %v287 = vrot.slane %v179, 1
    %v288 = vsel %vm285, %v286, %v287
    %v289 = vrot.slane %v258, 1
    %v290 = vrot.slane %v180, 1
    %v291 = vsel %vm285, %v289, %v290
    %v292 = vrot.slane %v181, 1
    %v293 = vsel %vm285, %v287, %v292
    %v294 = vrot.slane %v182, 1
    %v295 = vsel %vm285, %v290, %v294
    %v296 = vrot.slane %v183, 1
    %v297 = vsel %vm285, %v292, %v296
    %v298 = vrot.slane %v184, 1
    %v299 = vsel %vm285, %v294, %v298
    %v300 = vrot.slane %v259, 1
    %v301 = vsel %vm285, %v296, %v300
    %v302 = vrot.slane %v260, 1
    %v303 = vsel %vm285, %v298, %v302
    %v304 = vrot.slane %v261, 1
    %v305 = vrot.slane %v187, 1
    %v306 = vsel %vm285, %v304, %v305
    %v307 = vrot.slane %v262, 1
    %v308 = vrot.slane %v188, 1
    %v309 = vsel %vm285, %v307, %v308
    %v310 = vrot.slane %v189, 1
    %v311 = vsel %vm285, %v305, %v310
    %v312 = vrot.slane %v190, 1
    %v313 = vsel %vm285, %v308, %v312
    %v314 = vrot.slane %v191, 1
    %v315 = vsel %vm285, %v310, %v314
    %v316 = vrot.slane %v192, 1
    %v317 = vsel %vm285, %v312, %v316
    %v318 = vrot.slane %v263, 1
    %v319 = vsel %vm285, %v314, %v318
    %v320 = vrot.slane %v264, 1
    %v321 = vsel %vm285, %v316, %v320
    %s338 = scalar_lea.vmem [#allocation4], 512
    %v339 = vld [vmem:[%s338] sm:$0xff]
    %v340 = vld [vmem:[%s338 + $0x8] sm:$0xff]
    %v341 = vld [vmem:[%s338 + $0x10] sm:$0xff]
    %v342 = vld [vmem:[%s338 + $0x18] sm:$0xff]
    %v343 = vld [vmem:[%s338 + $0x20] sm:$0xff]
    %v344 = vld [vmem:[%s338 + $0x28] sm:$0xff]
    %v345 = vld [vmem:[%s338 + $0x30] sm:$0xff]
    %v346 = vld [vmem:[%s338 + $0x38] sm:$0xff]
    %v347 = vld [vmem:[%s338 + $0x40] sm:$0xff]
    %v348 = vld [vmem:[%s338 + $0x48] sm:$0xff]
    %v349 = vld [vmem:[%s338 + $0x50] sm:$0xff]
    %v350 = vld [vmem:[%s338 + $0x58] sm:$0xff]
    %v351 = vld [vmem:[%s338 + $0x60] sm:$0xff]
    %v352 = vld [vmem:[%s338 + $0x68] sm:$0xff]
    %v353 = vld [vmem:[%s338 + $0x70] sm:$0xff]
    %v354 = vld [vmem:[%s338 + $0x78] sm:$0xff]
    %v355 = vld [vmem:[%s338 + $0x80] sm:$0xff]
    %v356 = vld [vmem:[%s338 + $0x88] sm:$0xff]
    %v357 = vld [vmem:[%s338 + $0x90] sm:$0xff]
    %v358 = vld [vmem:[%s338 + $0x98] sm:$0xff]
    %v359 = vld [vmem:[%s338 + $0xa0] sm:$0xff]
    %v360 = vld [vmem:[%s338 + $0xa8] sm:$0xff]
    %v361 = vld [vmem:[%s338 + $0xb0] sm:$0xff]
    %v362 = vld [vmem:[%s338 + $0xb8] sm:$0xff]
    %v363 = vld [vmem:[%s338 + $0xc0] sm:$0xff]
    %v364 = vld [vmem:[%s338 + $0xc8] sm:$0xff]
    %v365 = vld [vmem:[%s338 + $0xd0] sm:$0xff]
    %v366 = vld [vmem:[%s338 + $0xd8] sm:$0xff]
    %v367 = vld [vmem:[%s338 + $0xe0] sm:$0xff]
    %v368 = vld [vmem:[%s338 + $0xe8] sm:$0xff]
    %v369 = vld [vmem:[%s338 + $0xf0] sm:$0xff]
    %v370 = vld [vmem:[%s338 + $0xf8] sm:$0xff]
    %v371 = vld [vmem:[%s338 + $0x100] sm:$0xff]
    %v372 = vld [vmem:[%s338 + $0x108] sm:$0xff]
    %v373 = vld [vmem:[%s338 + $0x110] sm:$0xff]
    %v374 = vld [vmem:[%s338 + $0x118] sm:$0xff]
    %v375 = vld [vmem:[%s338 + $0x120] sm:$0xff]
    %v376 = vld [vmem:[%s338 + $0x128] sm:$0xff]
    %v377 = vld [vmem:[%s338 + $0x130] sm:$0xff]
    %v378 = vld [vmem:[%s338 + $0x138] sm:$0xff]
    %v379 = vld [vmem:[%s338 + $0x140] sm:$0xff]
    %v380 = vld [vmem:[%s338 + $0x148] sm:$0xff]
    %v381 = vld [vmem:[%s338 + $0x150] sm:$0xff]
    %v382 = vld [vmem:[%s338 + $0x158] sm:$0xff]
    %v383 = vld [vmem:[%s338 + $0x160] sm:$0xff]
    %v384 = vld [vmem:[%s338 + $0x168] sm:$0xff]
    %v385 = vld [vmem:[%s338 + $0x170] sm:$0xff]
    %v386 = vld [vmem:[%s338 + $0x178] sm:$0xff]
    %v387 = vld [vmem:[%s338 + $0x180] sm:$0xff]
    %v388 = vld [vmem:[%s338 + $0x188] sm:$0xff]
    %v389 = vld [vmem:[%s338 + $0x190] sm:$0xff]
    %v390 = vld [vmem:[%s338 + $0x198] sm:$0xff]
    %v391 = vld [vmem:[%s338 + $0x1a0] sm:$0xff]
    %v392 = vld [vmem:[%s338 + $0x1a8] sm:$0xff]
    %v393 = vld [vmem:[%s338 + $0x1b0] sm:$0xff]
    %v394 = vld [vmem:[%s338 + $0x1b8] sm:$0xff]
    %v395 = vld [vmem:[%s338 + $0x1c0] sm:$0xff]
    %v396 = vld [vmem:[%s338 + $0x1c8] sm:$0xff]
    %v397 = vld [vmem:[%s338 + $0x1d0] sm:$0xff]
    %v398 = vld [vmem:[%s338 + $0x1d8] sm:$0xff]
    %v399 = vld [vmem:[%s338 + $0x1e0] sm:$0xff]
    %v400 = vld [vmem:[%s338 + $0x1e8] sm:$0xff]
    %v401 = vld [vmem:[%s338 + $0x1f0] sm:$0xff]
    %v402 = vld [vmem:[%s338 + $0x1f8] sm:$0xff]
    %403 = vmatpush.msra.mxu0 %v369
    %404 = vmatpush.msra.mxu0 %v367
    %405 = vmatpush.msra.mxu0 %v365
    %406 = vmatpush.msra.mxu0 %v363
    %407 = vmatpush.msra.mxu0 %v361
    %408 = vmatpush.msra.mxu0 %v359
    %409 = vmatpush.msra.mxu0 %v357
    %410 = vmatpush.msra.mxu0 %v355
    %411 = vmatpush.msra.mxu0 %v353
    %412 = vmatpush.msra.mxu0 %v351
    %413 = vmatpush.msra.mxu0 %v349
    %414 = vmatpush.msra.mxu0 %v347
    %415 = vmatpush.msra.mxu0 %v345
    %416 = vmatpush.msra.mxu0 %v343
    %417 = vmatpush.msra.mxu0 %v341
    %418 = vmatpush.msra.mxu0 %v339
    %419 = vmatmul.f32.gmra.mxu0 %v288
    %v420 = vpop.f32.mrf.mxu0
    %v421 = vadd.f32 0.0, %v420
    %422 = vmatmul.f32.gmra.mxu0 %v293
    %v423 = vpop.f32.mrf.mxu0
    %v424 = vadd.f32 0.0, %v423
    %425 = vmatmul.f32.gmra.mxu0 %v297
    %v426 = vpop.f32.mrf.mxu0
    %v427 = vadd.f32 0.0, %v426
    %428 = vmatmul.f32.gmra.mxu0 %v301
    %v429 = vpop.f32.mrf.mxu0
    %v430 = vadd.f32 0.0, %v429
    %431 = vmatmul.f32.gmra.mxu0 %v306
    %v432 = vpop.f32.mrf.mxu0
    %v433 = vadd.f32 0.0, %v432
    %434 = vmatmul.f32.gmra.mxu0 %v311
    %v435 = vpop.f32.mrf.mxu0
    %v436 = vadd.f32 0.0, %v435
    %437 = vmatmul.f32.gmra.mxu0 %v315
    %v438 = vpop.f32.mrf.mxu0
    %v439 = vadd.f32 0.0, %v438
    %440 = vmatmul.f32.gmra.mxu0 %v319
    %v441 = vpop.f32.mrf.mxu0
    %v442 = vadd.f32 0.0, %v441
    %443 = vdwg.mxu0
    %444 = vmatpush.msra.mxu0 %v401
    %445 = vmatpush.msra.mxu0 %v399
    %446 = vmatpush.msra.mxu0 %v397
    %447 = vmatpush.msra.mxu0 %v395
    %448 = vmatpush.msra.mxu0 %v393
    %449 = vmatpush.msra.mxu0 %v391
    %450 = vmatpush.msra.mxu0 %v389
    %451 = vmatpush.msra.mxu0 %v387
    %452 = vmatpush.msra.mxu0 %v385
    %453 = vmatpush.msra.mxu0 %v383
    %454 = vmatpush.msra.mxu0 %v381
    %455 = vmatpush.msra.mxu0 %v379
    %456 = vmatpush.msra.mxu0 %v377
    %457 = vmatpush.msra.mxu0 %v375
    %458 = vmatpush.msra.mxu0 %v373
    %459 = vmatpush.msra.mxu0 %v371
    %460 = vmatmul.f32.gmra.mxu0 %v291
    %v461 = vpop.f32.mrf.mxu0
    %v462 = vadd.f32 %v421, %v461
    %463 = vmatmul.f32.gmra.mxu0 %v295
    %v464 = vpop.f32.mrf.mxu0
    %v465 = vadd.f32 %v424, %v464
    %466 = vmatmul.f32.gmra.mxu0 %v299
    %v467 = vpop.f32.mrf.mxu0
    %v468 = vadd.f32 %v427, %v467
    %469 = vmatmul.f32.gmra.mxu0 %v303
    %v470 = vpop.f32.mrf.mxu0
    %v471 = vadd.f32 %v430, %v470
    %472 = vmatmul.f32.gmra.mxu0 %v309
    %v473 = vpop.f32.mrf.mxu0
    %v474 = vadd.f32 %v433, %v473
    %475 = vmatmul.f32.gmra.mxu0 %v313
    %v476 = vpop.f32.mrf.mxu0
    %v477 = vadd.f32 %v436, %v476
    %478 = vmatmul.f32.gmra.mxu0 %v317
    %v479 = vpop.f32.mrf.mxu0
    %v480 = vadd.f32 %v439, %v479
    %481 = vmatmul.f32.gmra.mxu0 %v321
    %v482 = vpop.f32.mrf.mxu0
    %v483 = vadd.f32 %v442, %v482
    %484 = vdwg.mxu0
    %485 = vmatpush.msra.mxu0 %v370
    %486 = vmatpush.msra.mxu0 %v368
    %487 = vmatpush.msra.mxu0 %v366
    %488 = vmatpush.msra.mxu0 %v364
    %489 = vmatpush.msra.mxu0 %v362
    %490 = vmatpush.msra.mxu0 %v360
    %491 = vmatpush.msra.mxu0 %v358
    %492 = vmatpush.msra.mxu0 %v356
    %493 = vmatpush.msra.mxu0 %v354
    %494 = vmatpush.msra.mxu0 %v352
    %495 = vmatpush.msra.mxu0 %v350
    %496 = vmatpush.msra.mxu0 %v348
    %497 = vmatpush.msra.mxu0 %v346
    %498 = vmatpush.msra.mxu0 %v344
    %499 = vmatpush.msra.mxu0 %v342
    %500 = vmatpush.msra.mxu0 %v340
    %501 = vmatmul.f32.gmra.mxu0 %v288
    %v502 = vpop.f32.mrf.mxu0
    %v503 = vadd.f32 0.0, %v502
    %504 = vmatmul.f32.gmra.mxu0 %v293
    %v505 = vpop.f32.mrf.mxu0
    %v506 = vadd.f32 0.0, %v505
    %507 = vmatmul.f32.gmra.mxu0 %v297
    %v508 = vpop.f32.mrf.mxu0
    %v509 = vadd.f32 0.0, %v508
    %510 = vmatmul.f32.gmra.mxu0 %v301
    %v511 = vpop.f32.mrf.mxu0
    %v512 = vadd.f32 0.0, %v511
    %513 = vmatmul.f32.gmra.mxu0 %v306
    %v514 = vpop.f32.mrf.mxu0
    %v515 = vadd.f32 0.0, %v514
    %516 = vmatmul.f32.gmra.mxu0 %v311
    %v517 = vpop.f32.mrf.mxu0
    %v518 = vadd.f32 0.0, %v517
    %519 = vmatmul.f32.gmra.mxu0 %v315
    %v520 = vpop.f32.mrf.mxu0
    %v521 = vadd.f32 0.0, %v520
    %522 = vmatmul.f32.gmra.mxu0 %v319
    %v523 = vpop.f32.mrf.mxu0
    %v524 = vadd.f32 0.0, %v523
    %525 = vdwg.mxu0
    %526 = vmatpush.msra.mxu0 %v402
    %527 = vmatpush.msra.mxu0 %v400
    %528 = vmatpush.msra.mxu0 %v398
    %529 = vmatpush.msra.mxu0 %v396
    %530 = vmatpush.msra.mxu0 %v394
    %531 = vmatpush.msra.mxu0 %v392
    %532 = vmatpush.msra.mxu0 %v390
    %533 = vmatpush.msra.mxu0 %v388
    %534 = vmatpush.msra.mxu0 %v386
    %535 = vmatpush.msra.mxu0 %v384
    %536 = vmatpush.msra.mxu0 %v382
    %537 = vmatpush.msra.mxu0 %v380
    %538 = vmatpush.msra.mxu0 %v378
    %539 = vmatpush.msra.mxu0 %v376
    %540 = vmatpush.msra.mxu0 %v374
    %541 = vmatpush.msra.mxu0 %v372
    %542 = vmatmul.f32.gmra.mxu0 %v291
    %v543 = vpop.f32.mrf.mxu0
    %v544 = vadd.f32 %v503, %v543
    %545 = vmatmul.f32.gmra.mxu0 %v295
    %v546 = vpop.f32.mrf.mxu0
    %v547 = vadd.f32 %v506, %v546
    %548 = vmatmul.f32.gmra.mxu0 %v299
    %v549 = vpop.f32.mrf.mxu0
    %v550 = vadd.f32 %v509, %v549
    %551 = vmatmul.f32.gmra.mxu0 %v303
    %v552 = vpop.f32.mrf.mxu0
    %v553 = vadd.f32 %v512, %v552
    %554 = vmatmul.f32.gmra.mxu0 %v309
    %v555 = vpop.f32.mrf.mxu0
    %v556 = vadd.f32 %v515, %v555
    %557 = vmatmul.f32.gmra.mxu0 %v313
    %v558 = vpop.f32.mrf.mxu0
    %v559 = vadd.f32 %v518, %v558
    %560 = vmatmul.f32.gmra.mxu0 %v317
    %v561 = vpop.f32.mrf.mxu0
    %v562 = vadd.f32 %v521, %v561
    %563 = vmatmul.f32.gmra.mxu0 %v321
    %v564 = vpop.f32.mrf.mxu0
    %v565 = vadd.f32 %v524, %v564
    %566 = vdwg.mxu0
    %567 = vmatpush.msra.mxu0 %v223
    %568 = vmatpush.msra.mxu0 %v221
    %569 = vmatpush.msra.mxu0 %v219
    %570 = vmatpush.msra.mxu0 %v217
    %571 = vmatpush.msra.mxu0 %v215
    %572 = vmatpush.msra.mxu0 %v213
    %573 = vmatpush.msra.mxu0 %v211
    %574 = vmatpush.msra.mxu0 %v209
    %575 = vmatpush.msra.mxu0 %v207
    %576 = vmatpush.msra.mxu0 %v205
    %577 = vmatpush.msra.mxu0 %v203
    %578 = vmatpush.msra.mxu0 %v201
    %579 = vmatpush.msra.mxu0 %v199
    %580 = vmatpush.msra.mxu0 %v197
    %581 = vmatpush.msra.mxu0 %v195
    %582 = vmatpush.msra.mxu0 %v193
    %583 = vmatmul.f32.gmra.mxu0 %v177
    %v584 = vpop.f32.mrf.mxu0
    %v585 = vadd.f32 %v462, %v584
    %586 = vmatmul.f32.gmra.mxu0 %v179
    %v587 = vpop.f32.mrf.mxu0
    %v588 = vadd.f32 %v465, %v587
    %589 = vmatmul.f32.gmra.mxu0 %v181
    %v590 = vpop.f32.mrf.mxu0
    %v591 = vadd.f32 %v468, %v590
    %592 = vmatmul.f32.gmra.mxu0 %v183
    %v593 = vpop.f32.mrf.mxu0
    %v594 = vadd.f32 %v471, %v593
    %595 = vmatmul.f32.gmra.mxu0 %v185
    %v596 = vpop.f32.mrf.mxu0
    %v597 = vadd.f32 %v474, %v596
    %598 = vmatmul.f32.gmra.mxu0 %v187
    %v599 = vpop.f32.mrf.mxu0
    %v600 = vadd.f32 %v477, %v599
    %601 = vmatmul.f32.gmra.mxu0 %v189
    %v602 = vpop.f32.mrf.mxu0
    %v603 = vadd.f32 %v480, %v602
    %604 = vmatmul.f32.gmra.mxu0 %v191
    %v605 = vpop.f32.mrf.mxu0
    %v606 = vadd.f32 %v483, %v605
    %607 = vdwg.mxu0
    %608 = vmatpush.msra.mxu0 %v255
    %609 = vmatpush.msra.mxu0 %v253
    %610 = vmatpush.msra.mxu0 %v251
    %611 = vmatpush.msra.mxu0 %v249
    %612 = vmatpush.msra.mxu0 %v247
    %613 = vmatpush.msra.mxu0 %v245
    %614 = vmatpush.msra.mxu0 %v243
    %615 = vmatpush.msra.mxu0 %v241
    %616 = vmatpush.msra.mxu0 %v239
    %617 = vmatpush.msra.mxu0 %v237
    %618 = vmatpush.msra.mxu0 %v235
    %619 = vmatpush.msra.mxu0 %v233
    %620 = vmatpush.msra.mxu0 %v231
    %621 = vmatpush.msra.mxu0 %v229
    %622 = vmatpush.msra.mxu0 %v227
    %623 = vmatpush.msra.mxu0 %v225
    %624 = vmatmul.f32.gmra.mxu0 %v178
    %v625 = vpop.f32.mrf.mxu0
    %v626 = vadd.f32 %v585, %v625
    %627 = vmatmul.f32.gmra.mxu0 %v180
    %v628 = vpop.f32.mrf.mxu0
    %v629 = vadd.f32 %v588, %v628
    %630 = vmatmul.f32.gmra.mxu0 %v182
    %v631 = vpop.f32.mrf.mxu0
    %v632 = vadd.f32 %v591, %v631
    %633 = vmatmul.f32.gmra.mxu0 %v184
    %v634 = vpop.f32.mrf.mxu0
    %v635 = vadd.f32 %v594, %v634
    %636 = vmatmul.f32.gmra.mxu0 %v186
    %v637 = vpop.f32.mrf.mxu0
    %v638 = vadd.f32 %v597, %v637
    %639 = vmatmul.f32.gmra.mxu0 %v188
    %v640 = vpop.f32.mrf.mxu0
    %v641 = vadd.f32 %v600, %v640
    %642 = vmatmul.f32.gmra.mxu0 %v190
    %v643 = vpop.f32.mrf.mxu0
    %v644 = vadd.f32 %v603, %v643
    %645 = vmatmul.f32.gmra.mxu0 %v192
    %v646 = vpop.f32.mrf.mxu0
    %v647 = vadd.f32 %v606, %v646
    %648 = vdwg.mxu0
    %649 = vmatpush.msra.mxu0 %v224
    %650 = vmatpush.msra.mxu0 %v222
    %651 = vmatpush.msra.mxu0 %v220
    %652 = vmatpush.msra.mxu0 %v218
    %653 = vmatpush.msra.mxu0 %v216
    %654 = vmatpush.msra.mxu0 %v214
    %655 = vmatpush.msra.mxu0 %v212
    %656 = vmatpush.msra.mxu0 %v210
    %657 = vmatpush.msra.mxu0 %v208
    %658 = vmatpush.msra.mxu0 %v206
    %659 = vmatpush.msra.mxu0 %v204
    %660 = vmatpush.msra.mxu0 %v202
    %661 = vmatpush.msra.mxu0 %v200
    %662 = vmatpush.msra.mxu0 %v198
    %663 = vmatpush.msra.mxu0 %v196
    %664 = vmatpush.msra.mxu0 %v194
    %665 = vmatmul.f32.gmra.mxu0 %v177
    %v666 = vpop.f32.mrf.mxu0
    %v667 = vadd.f32 %v544, %v666
    %668 = vmatmul.f32.gmra.mxu0 %v179
    %v669 = vpop.f32.mrf.mxu0
    %v670 = vadd.f32 %v547, %v669
    %671 = vmatmul.f32.gmra.mxu0 %v181
    %v672 = vpop.f32.mrf.mxu0
    %v673 = vadd.f32 %v550, %v672
    %674 = vmatmul.f32.gmra.mxu0 %v183
    %v675 = vpop.f32.mrf.mxu0
    %v676 = vadd.f32 %v553, %v675
    %677 = vmatmul.f32.gmra.mxu0 %v185
    %v678 = vpop.f32.mrf.mxu0
    %v679 = vadd.f32 %v556, %v678
    %680 = vmatmul.f32.gmra.mxu0 %v187
    %v681 = vpop.f32.mrf.mxu0
    %v682 = vadd.f32 %v559, %v681
    %683 = vmatmul.f32.gmra.mxu0 %v189
    %v684 = vpop.f32.mrf.mxu0
    %v685 = vadd.f32 %v562, %v684
    %686 = vmatmul.f32.gmra.mxu0 %v191
    %v687 = vpop.f32.mrf.mxu0
    %v688 = vadd.f32 %v565, %v687
    %689 = vdwg.mxu0
    %690 = vmatpush.msra.mxu0 %v256
    %691 = vmatpush.msra.mxu0 %v254
    %692 = vmatpush.msra.mxu0 %v252
    %693 = vmatpush.msra.mxu0 %v250
    %694 = vmatpush.msra.mxu0 %v248
    %695 = vmatpush.msra.mxu0 %v246
    %696 = vmatpush.msra.mxu0 %v244
    %697 = vmatpush.msra.mxu0 %v242
    %698 = vmatpush.msra.mxu0 %v240
    %699 = vmatpush.msra.mxu0 %v238
    %700 = vmatpush.msra.mxu0 %v236
    %701 = vmatpush.msra.mxu0 %v234
    %702 = vmatpush.msra.mxu0 %v232
    %703 = vmatpush.msra.mxu0 %v230
    %704 = vmatpush.msra.mxu0 %v228
    %705 = vmatpush.msra.mxu0 %v226
    %706 = vmatmul.f32.gmra.mxu0 %v178
    %v707 = vpop.f32.mrf.mxu0
    %v708 = vadd.f32 %v667, %v707
    %709 = vmatmul.f32.gmra.mxu0 %v180
    %v710 = vpop.f32.mrf.mxu0
    %v711 = vadd.f32 %v670, %v710
    %712 = vmatmul.f32.gmra.mxu0 %v182
    %v713 = vpop.f32.mrf.mxu0
    %v714 = vadd.f32 %v673, %v713
    %715 = vmatmul.f32.gmra.mxu0 %v184
    %v716 = vpop.f32.mrf.mxu0
    %v717 = vadd.f32 %v676, %v716
    %718 = vmatmul.f32.gmra.mxu0 %v186
    %v719 = vpop.f32.mrf.mxu0
    %v720 = vadd.f32 %v679, %v719
    %721 = vmatmul.f32.gmra.mxu0 %v188
    %v722 = vpop.f32.mrf.mxu0
    %v723 = vadd.f32 %v682, %v722
    %724 = vmatmul.f32.gmra.mxu0 %v190
    %v725 = vpop.f32.mrf.mxu0
    %v726 = vadd.f32 %v685, %v725
    %727 = vmatmul.f32.gmra.mxu0 %v192
    %v728 = vpop.f32.mrf.mxu0
    %v729 = vadd.f32 %v688, %v728
    %730 = vdwg.mxu0
    %v731 = vld [vmem:[%s0] sm:$0xfc]
    %v732 = vld [vmem:[%s0 + $0x8] sm:$0xfc]
    %v733 = vld [vmem:[%s0 + $0x40] sm:$0x3]
    %v734 = vld [vmem:[%s0 + $0x48] sm:$0x3]
    %v735 = vld [vmem:[%s0 + $0x50] sm:$0xfc]
    %v736 = vld [vmem:[%s0 + $0x58] sm:$0xfc]
    %v737 = vld [vmem:[%s0 + $0x90] sm:$0x3]
    %v738 = vld [vmem:[%s0 + $0x98] sm:$0x3]
    %vm747 = vcmask 1045504
    %v748 = vrot.slane %v731, 2
    %v749 = vrot.slane %v179, 2
    %v750 = vsel %vm747, %v748, %v749
    %v751 = vrot.slane %v732, 2
    %v752 = vrot.slane %v180, 2
    %v753 = vsel %vm747, %v751, %v752
    %v754 = vrot.slane %v181, 2
    %v755 = vsel %vm747, %v749, %v754
    %v756 = vrot.slane %v182, 2
    %v757 = vsel %vm747, %v752, %v756
    %v758 = vrot.slane %v183, 2
    %v759 = vsel %vm747, %v754, %v758
    %v760 = vrot.slane %v184, 2
    %v761 = vsel %vm747, %v756, %v760
    %v762 = vrot.slane %v733, 2
    %v763 = vsel %vm747, %v758, %v762
    %v764 = vrot.slane %v734, 2
    %v765 = vsel %vm747, %v760, %v764
    %v766 = vrot.slane %v735, 2
    %v767 = vrot.slane %v187, 2
    %v768 = vsel %vm747, %v766, %v767
    %v769 = vrot.slane %v736, 2
    %v770 = vrot.slane %v188, 2
    %v771 = vsel %vm747, %v769, %v770
    %v772 = vrot.slane %v189, 2
    %v773 = vsel %vm747, %v767, %v772
    %v774 = vrot.slane %v190, 2
    %v775 = vsel %vm747, %v770, %v774
    %v776 = vrot.slane %v191, 2
    %v777 = vsel %vm747, %v772, %v776
    %v778 = vrot.slane %v192, 2
    %v779 = vsel %vm747, %v774, %v778
    %v780 = vrot.slane %v737, 2
    %v781 = vsel %vm747, %v776, %v780
    %v782 = vrot.slane %v738, 2
    %v783 = vsel %vm747, %v778, %v782
    %s800 = scalar_lea.vmem [#allocation4], 1024
    %v801 = vld [vmem:[%s800] sm:$0xff]
    %v802 = vld [vmem:[%s800 + $0x8] sm:$0xff]
    %v803 = vld [vmem:[%s800 + $0x10] sm:$0xff]
    %v804 = vld [vmem:[%s800 + $0x18] sm:$0xff]
    %v805 = vld [vmem:[%s800 + $0x20] sm:$0xff]
    %v806 = vld [vmem:[%s800 + $0x28] sm:$0xff]
    %v807 = vld [vmem:[%s800 + $0x30] sm:$0xff]
    %v808 = vld [vmem:[%s800 + $0x38] sm:$0xff]
    %v809 = vld [vmem:[%s800 + $0x40] sm:$0xff]
    %v810 = vld [vmem:[%s800 + $0x48] sm:$0xff]
    %v811 = vld [vmem:[%s800 + $0x50] sm:$0xff]
    %v812 = vld [vmem:[%s800 + $0x58] sm:$0xff]
    %v813 = vld [vmem:[%s800 + $0x60] sm:$0xff]
    %v814 = vld [vmem:[%s800 + $0x68] sm:$0xff]
    %v815 = vld [vmem:[%s800 + $0x70] sm:$0xff]
    %v816 = vld [vmem:[%s800 + $0x78] sm:$0xff]
    %v817 = vld [vmem:[%s800 + $0x80] sm:$0xff]
    %v818 = vld [vmem:[%s800 + $0x88] sm:$0xff]
    %v819 = vld [vmem:[%s800 + $0x90] sm:$0xff]
    %v820 = vld [vmem:[%s800 + $0x98] sm:$0xff]
    %v821 = vld [vmem:[%s800 + $0xa0] sm:$0xff]
    %v822 = vld [vmem:[%s800 + $0xa8] sm:$0xff]
    %v823 = vld [vmem:[%s800 + $0xb0] sm:$0xff]
    %v824 = vld [vmem:[%s800 + $0xb8] sm:$0xff]
    %v825 = vld [vmem:[%s800 + $0xc0] sm:$0xff]
    %v826 = vld [vmem:[%s800 + $0xc8] sm:$0xff]
    %v827 = vld [vmem:[%s800 + $0xd0] sm:$0xff]
    %v828 = vld [vmem:[%s800 + $0xd8] sm:$0xff]
    %v829 = vld [vmem:[%s800 + $0xe0] sm:$0xff]
    %v830 = vld [vmem:[%s800 + $0xe8] sm:$0xff]
    %v831 = vld [vmem:[%s800 + $0xf0] sm:$0xff]
    %v832 = vld [vmem:[%s800 + $0xf8] sm:$0xff]
    %v833 = vld [vmem:[%s800 + $0x100] sm:$0xff]
    %v834 = vld [vmem:[%s800 + $0x108] sm:$0xff]
    %v835 = vld [vmem:[%s800 + $0x110] sm:$0xff]
    %v836 = vld [vmem:[%s800 + $0x118] sm:$0xff]
    %v837 = vld [vmem:[%s800 + $0x120] sm:$0xff]
    %v838 = vld [vmem:[%s800 + $0x128] sm:$0xff]
    %v839 = vld [vmem:[%s800 + $0x130] sm:$0xff]
    %v840 = vld [vmem:[%s800 + $0x138] sm:$0xff]
    %v841 = vld [vmem:[%s800 + $0x140] sm:$0xff]
    %v842 = vld [vmem:[%s800 + $0x148] sm:$0xff]
    %v843 = vld [vmem:[%s800 + $0x150] sm:$0xff]
    %v844 = vld [vmem:[%s800 + $0x158] sm:$0xff]
    %v845 = vld [vmem:[%s800 + $0x160] sm:$0xff]
    %v846 = vld [vmem:[%s800 + $0x168] sm:$0xff]
    %v847 = vld [vmem:[%s800 + $0x170] sm:$0xff]
    %v848 = vld [vmem:[%s800 + $0x178] sm:$0xff]
    %v849 = vld [vmem:[%s800 + $0x180] sm:$0xff]
    %v850 = vld [vmem:[%s800 + $0x188] sm:$0xff]
    %v851 = vld [vmem:[%s800 + $0x190] sm:$0xff]
    %v852 = vld [vmem:[%s800 + $0x198] sm:$0xff]
    %v853 = vld [vmem:[%s800 + $0x1a0] sm:$0xff]
    %v854 = vld [vmem:[%s800 + $0x1a8] sm:$0xff]
    %v855 = vld [vmem:[%s800 + $0x1b0] sm:$0xff]
    %v856 = vld [vmem:[%s800 + $0x1b8] sm:$0xff]
    %v857 = vld [vmem:[%s800 + $0x1c0] sm:$0xff]
    %v858 = vld [vmem:[%s800 + $0x1c8] sm:$0xff]
    %v859 = vld [vmem:[%s800 + $0x1d0] sm:$0xff]
    %v860 = vld [vmem:[%s800 + $0x1d8] sm:$0xff]
    %v861 = vld [vmem:[%s800 + $0x1e0] sm:$0xff]
    %v862 = vld [vmem:[%s800 + $0x1e8] sm:$0xff]
    %v863 = vld [vmem:[%s800 + $0x1f0] sm:$0xff]
    %v864 = vld [vmem:[%s800 + $0x1f8] sm:$0xff]
    %865 = vmatpush.msra.mxu0 %v831
    %866 = vmatpush.msra.mxu0 %v829
    %867 = vmatpush.msra.mxu0 %v827
    %868 = vmatpush.msra.mxu0 %v825
    %869 = vmatpush.msra.mxu0 %v823
    %870 = vmatpush.msra.mxu0 %v821
    %871 = vmatpush.msra.mxu0 %v819
    %872 = vmatpush.msra.mxu0 %v817
    %873 = vmatpush.msra.mxu0 %v815
    %874 = vmatpush.msra.mxu0 %v813
    %875 = vmatpush.msra.mxu0 %v811
    %876 = vmatpush.msra.mxu0 %v809
    %877 = vmatpush.msra.mxu0 %v807
    %878 = vmatpush.msra.mxu0 %v805
    %879 = vmatpush.msra.mxu0 %v803
    %880 = vmatpush.msra.mxu0 %v801
    %881 = vmatmul.f32.gmra.mxu0 %v750
    %v882 = vpop.f32.mrf.mxu0
    %v883 = vadd.f32 0.0, %v882
    %884 = vmatmul.f32.gmra.mxu0 %v755
    %v885 = vpop.f32.mrf.mxu0
    %v886 = vadd.f32 0.0, %v885
    %887 = vmatmul.f32.gmra.mxu0 %v759
    %v888 = vpop.f32.mrf.mxu0
    %v889 = vadd.f32 0.0, %v888
    %890 = vmatmul.f32.gmra.mxu0 %v763
    %v891 = vpop.f32.mrf.mxu0
    %v892 = vadd.f32 0.0, %v891
    %893 = vmatmul.f32.gmra.mxu0 %v768
    %v894 = vpop.f32.mrf.mxu0
    %v895 = vadd.f32 0.0, %v894
    %896 = vmatmul.f32.gmra.mxu0 %v773
    %v897 = vpop.f32.mrf.mxu0
    %v898 = vadd.f32 0.0, %v897
    %899 = vmatmul.f32.gmra.mxu0 %v777
    %v900 = vpop.f32.mrf.mxu0
    %v901 = vadd.f32 0.0, %v900
    %902 = vmatmul.f32.gmra.mxu0 %v781
    %v903 = vpop.f32.mrf.mxu0
    %v904 = vadd.f32 0.0, %v903
    %905 = vdwg.mxu0
    %906 = vmatpush.msra.mxu0 %v863
    %907 = vmatpush.msra.mxu0 %v861
    %908 = vmatpush.msra.mxu0 %v859
    %909 = vmatpush.msra.mxu0 %v857
    %910 = vmatpush.msra.mxu0 %v855
    %911 = vmatpush.msra.mxu0 %v853
    %912 = vmatpush.msra.mxu0 %v851
    %913 = vmatpush.msra.mxu0 %v849
    %914 = vmatpush.msra.mxu0 %v847
    %915 = vmatpush.msra.mxu0 %v845
    %916 = vmatpush.msra.mxu0 %v843
    %917 = vmatpush.msra.mxu0 %v841
    %918 = vmatpush.msra.mxu0 %v839
    %919 = vmatpush.msra.mxu0 %v837
    %920 = vmatpush.msra.mxu0 %v835
    %921 = vmatpush.msra.mxu0 %v833
    %922 = vmatmul.f32.gmra.mxu0 %v753
    %v923 = vpop.f32.mrf.mxu0
    %v924 = vadd.f32 %v883, %v923
    %925 = vmatmul.f32.gmra.mxu0 %v757
    %v926 = vpop.f32.mrf.mxu0
    %v927 = vadd.f32 %v886, %v926
    %928 = vmatmul.f32.gmra.mxu0 %v761
    %v929 = vpop.f32.mrf.mxu0
    %v930 = vadd.f32 %v889, %v929
    %931 = vmatmul.f32.gmra.mxu0 %v765
    %v932 = vpop.f32.mrf.mxu0
    %v933 = vadd.f32 %v892, %v932
    %934 = vmatmul.f32.gmra.mxu0 %v771
    %v935 = vpop.f32.mrf.mxu0
    %v936 = vadd.f32 %v895, %v935
    %937 = vmatmul.f32.gmra.mxu0 %v775
    %v938 = vpop.f32.mrf.mxu0
    %v939 = vadd.f32 %v898, %v938
    %940 = vmatmul.f32.gmra.mxu0 %v779
    %v941 = vpop.f32.mrf.mxu0
    %v942 = vadd.f32 %v901, %v941
    %943 = vmatmul.f32.gmra.mxu0 %v783
    %v944 = vpop.f32.mrf.mxu0
    %v945 = vadd.f32 %v904, %v944
    %946 = vdwg.mxu0
    %947 = vmatpush.msra.mxu0 %v832
    %948 = vmatpush.msra.mxu0 %v830
    %949 = vmatpush.msra.mxu0 %v828
    %950 = vmatpush.msra.mxu0 %v826
    %951 = vmatpush.msra.mxu0 %v824
    %952 = vmatpush.msra.mxu0 %v822
    %953 = vmatpush.msra.mxu0 %v820
    %954 = vmatpush.msra.mxu0 %v818
    %955 = vmatpush.msra.mxu0 %v816
    %956 = vmatpush.msra.mxu0 %v814
    %957 = vmatpush.msra.mxu0 %v812
    %958 = vmatpush.msra.mxu0 %v810
    %959 = vmatpush.msra.mxu0 %v808
    %960 = vmatpush.msra.mxu0 %v806
    %961 = vmatpush.msra.mxu0 %v804
    %962 = vmatpush.msra.mxu0 %v802
    %963 = vmatmul.f32.gmra.mxu0 %v750
    %v964 = vpop.f32.mrf.mxu0
    %v965 = vadd.f32 0.0, %v964
    %966 = vmatmul.f32.gmra.mxu0 %v755
    %v967 = vpop.f32.mrf.mxu0
    %v968 = vadd.f32 0.0, %v967
    %969 = vmatmul.f32.gmra.mxu0 %v759
    %v970 = vpop.f32.mrf.mxu0
    %v971 = vadd.f32 0.0, %v970
    %972 = vmatmul.f32.gmra.mxu0 %v763
    %v973 = vpop.f32.mrf.mxu0
    %v974 = vadd.f32 0.0, %v973
    %975 = vmatmul.f32.gmra.mxu0 %v768
    %v976 = vpop.f32.mrf.mxu0
    %v977 = vadd.f32 0.0, %v976
    %978 = vmatmul.f32.gmra.mxu0 %v773
    %v979 = vpop.f32.mrf.mxu0
    %v980 = vadd.f32 0.0, %v979
    %981 = vmatmul.f32.gmra.mxu0 %v777
    %v982 = vpop.f32.mrf.mxu0
    %v983 = vadd.f32 0.0, %v982
    %984 = vmatmul.f32.gmra.mxu0 %v781
    %v985 = vpop.f32.mrf.mxu0
    %v986 = vadd.f32 0.0, %v985
    %987 = vdwg.mxu0
    %988 = vmatpush.msra.mxu0 %v864
    %989 = vmatpush.msra.mxu0 %v862
    %990 = vmatpush.msra.mxu0 %v860
    %991 = vmatpush.msra.mxu0 %v858
    %992 = vmatpush.msra.mxu0 %v856
    %993 = vmatpush.msra.mxu0 %v854
    %994 = vmatpush.msra.mxu0 %v852
    %995 = vmatpush.msra.mxu0 %v850
    %996 = vmatpush.msra.mxu0 %v848
    %997 = vmatpush.msra.mxu0 %v846
    %998 = vmatpush.msra.mxu0 %v844
    %999 = vmatpush.msra.mxu0 %v842
    %1000 = vmatpush.msra.mxu0 %v840
    %1001 = vmatpush.msra.mxu0 %v838
    %1002 = vmatpush.msra.mxu0 %v836
    %1003 = vmatpush.msra.mxu0 %v834
    %1004 = vmatmul.f32.gmra.mxu0 %v753
    %v1005 = vpop.f32.mrf.mxu0
    %v1006 = vadd.f32 %v965, %v1005
    %1007 = vmatmul.f32.gmra.mxu0 %v757
    %v1008 = vpop.f32.mrf.mxu0
    %v1009 = vadd.f32 %v968, %v1008
    %1010 = vmatmul.f32.gmra.mxu0 %v761
    %v1011 = vpop.f32.mrf.mxu0
    %v1012 = vadd.f32 %v971, %v1011
    %1013 = vmatmul.f32.gmra.mxu0 %v765
    %v1014 = vpop.f32.mrf.mxu0
    %v1015 = vadd.f32 %v974, %v1014
    %1016 = vmatmul.f32.gmra.mxu0 %v771
    %v1017 = vpop.f32.mrf.mxu0
    %v1018 = vadd.f32 %v977, %v1017
    %1019 = vmatmul.f32.gmra.mxu0 %v775
    %v1020 = vpop.f32.mrf.mxu0
    %v1021 = vadd.f32 %v980, %v1020
    %1022 = vmatmul.f32.gmra.mxu0 %v779
    %v1023 = vpop.f32.mrf.mxu0
    %v1024 = vadd.f32 %v983, %v1023
    %1025 = vmatmul.f32.gmra.mxu0 %v783
    %v1026 = vpop.f32.mrf.mxu0
    %v1027 = vadd.f32 %v986, %v1026
    %1028 = vdwg.mxu0
    %v1029 = vadd.f32 %v626, %v924
    %v1030 = vadd.f32 %v708, %v1006
    %v1031 = vadd.f32 %v629, %v927
    %v1032 = vadd.f32 %v711, %v1009
    %v1033 = vadd.f32 %v632, %v930
    %v1034 = vadd.f32 %v714, %v1012
    %v1035 = vadd.f32 %v635, %v933
    %v1036 = vadd.f32 %v717, %v1015
    %v1037 = vadd.f32 %v638, %v936
    %v1038 = vadd.f32 %v720, %v1018
    %v1039 = vadd.f32 %v641, %v939
    %v1040 = vadd.f32 %v723, %v1021
    %v1041 = vadd.f32 %v644, %v942
    %v1042 = vadd.f32 %v726, %v1024
    %v1043 = vadd.f32 %v647, %v945
    %v1044 = vadd.f32 %v729, %v1027
    %v1045 = vld [vmem:[#allocation7] ss:$2 sm:$0x3]
    %v1047 = vperm.slane %v1045, 0
    %v1048 = vperm.slane %v1045, 1
    %v1051 = vadd.f32 %v1029, %v1047
    %v1052 = vadd.f32 %v1030, %v1048
    %v1053 = vadd.f32 %v1031, %v1047
    %v1054 = vadd.f32 %v1032, %v1048
    %v1055 = vadd.f32 %v1033, %v1047
    %v1056 = vadd.f32 %v1034, %v1048
    %v1057 = vadd.f32 %v1035, %v1047
    %v1058 = vadd.f32 %v1036, %v1048
    %v1059 = vadd.f32 %v1037, %v1047
    %v1060 = vadd.f32 %v1038, %v1048
    %v1061 = vadd.f32 %v1039, %v1047
    %v1062 = vadd.f32 %v1040, %v1048
    %v1063 = vadd.f32 %v1041, %v1047
    %v1064 = vadd.f32 %v1042, %v1048
    %v1065 = vadd.f32 %v1043, %v1047
    %v1066 = vadd.f32 %v1044, %v1048
    %v1067 = vmax.f32 %v1051, 0.0
    %v1068 = vmax.f32 %v1052, 0.0
    %v1069 = vmax.f32 %v1053, 0.0
    %v1070 = vmax.f32 %v1054, 0.0
    %v1071 = vmax.f32 %v1055, 0.0
    %v1072 = vmax.f32 %v1056, 0.0
    %v1073 = vmax.f32 %v1057, 0.0
    %v1074 = vmax.f32 %v1058, 0.0
    %v1075 = vmax.f32 %v1059, 0.0
    %v1076 = vmax.f32 %v1060, 0.0
    %v1077 = vmax.f32 %v1061, 0.0
    %v1078 = vmax.f32 %v1062, 0.0
    %v1079 = vmax.f32 %v1063, 0.0
    %v1080 = vmax.f32 %v1064, 0.0
    %v1081 = vmax.f32 %v1065, 0.0
    %v1082 = vmax.f32 %v1066, 0.0
    %vm1099 = vcmask 1040384
    %v1100 = vrot.slane %v1067, 7
    %v1101 = vrot.slane %v1068, 7
    %v1102 = vrot.slane %v1069, 7
    %v1103 = vsel %vm1099, %v1100, %v1102
    %v1104 = vrot.slane %v1070, 7
    %v1105 = vsel %vm1099, %v1101, %v1104
    %v1106 = vrot.slane %v1071, 7
    %v1107 = vsel %vm1099, %v1102, %v1106
    %v1108 = vrot.slane %v1072, 7
    %v1109 = vsel %vm1099, %v1104, %v1108
    %v1110 = vrot.slane %v1073, 7
    %v1111 = vsel %vm1099, %v1106, %v1110
    %v1112 = vrot.slane %v1074, 7
    %v1113 = vsel %vm1099, %v1108, %v1112
    %v1114 = vrot.slane %v1075, 7
    %v1115 = vrot.slane %v1076, 7
    %v1116 = vrot.slane %v1077, 7
    %v1117 = vsel %vm1099, %v1114, %v1116
    %v1118 = vrot.slane %v1078, 7
    %v1119 = vsel %vm1099, %v1115, %v1118
    %v1120 = vrot.slane %v1079, 7
    %v1121 = vsel %vm1099, %v1116, %v1120
    %v1122 = vrot.slane %v1080, 7
    %v1123 = vsel %vm1099, %v1118, %v1122
    %v1124 = vrot.slane %v1081, 7
    %v1125 = vsel %vm1099, %v1120, %v1124
    %v1126 = vrot.slane %v1082, 7
    %v1127 = vsel %vm1099, %v1122, %v1126
    %1148 = vst [vmem:[#allocation2] sm:$0xfe] %v1100
    %1149 = vst [vmem:[#allocation2 + $0x8] sm:$0xfe] %v1101
    %1150 = vst [vmem:[#allocation2 + $0x10] sm:$0xff] %v1103
    %1151 = vst [vmem:[#allocation2 + $0x18] sm:$0xff] %v1105
    %1152 = vst [vmem:[#allocation2 + $0x20] sm:$0xff] %v1107
    %1153 = vst [vmem:[#allocation2 + $0x28] sm:$0xff] %v1109
    %1154 = vst [vmem:[#allocation2 + $0x30] sm:$0xff] %v1111
    %1155 = vst [vmem:[#allocation2 + $0x38] sm:$0xff] %v1113
    %1156 = vst [vmem:[#allocation2 + $0x40] sm:$0x1] %v1110
    %1157 = vst [vmem:[#allocation2 + $0x48] sm:$0x1] %v1112
    %1158 = vst [vmem:[#allocation2 + $0x50] sm:$0xfe] %v1114
    %1159 = vst [vmem:[#allocation2 + $0x58] sm:$0xfe] %v1115
    %1160 = vst [vmem:[#allocation2 + $0x60] sm:$0xff] %v1117
    %1161 = vst [vmem:[#allocation2 + $0x68] sm:$0xff] %v1119
    %1162 = vst [vmem:[#allocation2 + $0x70] sm:$0xff] %v1121
    %1163 = vst [vmem:[#allocation2 + $0x78] sm:$0xff] %v1123
    %1164 = vst [vmem:[#allocation2 + $0x80] sm:$0xff] %v1125
    %1165 = vst [vmem:[#allocation2 + $0x88] sm:$0xff] %v1127
    %1166 = vst [vmem:[#allocation2 + $0x90] sm:$0x1] %v1124
    %1167 = vst [vmem:[#allocation2 + $0x98] sm:$0x1] %v1126
    %v1168 = vld [vmem:[#allocation2] sm:$0xff]
    %v1169 = vld [vmem:[#allocation2 + $0x8] sm:$0xff]
    %v1170 = vld [vmem:[#allocation2 + $0x10] sm:$0xff]
    %v1171 = vld [vmem:[#allocation2 + $0x18] sm:$0xff]
    %v1172 = vld [vmem:[#allocation2 + $0x20] sm:$0xff]
    %v1173 = vld [vmem:[#allocation2 + $0x28] sm:$0xff]
    %v1174 = vld [vmem:[#allocation2 + $0x30] sm:$0xff]
    %v1175 = vld [vmem:[#allocation2 + $0x38] sm:$0xff]
    %v1176 = vld [vmem:[#allocation2 + $0x50] sm:$0xff]
    %v1177 = vld [vmem:[#allocation2 + $0x58] sm:$0xff]
    %v1178 = vld [vmem:[#allocation2 + $0x60] sm:$0xff]
    %v1179 = vld [vmem:[#allocation2 + $0x68] sm:$0xff]
    %v1180 = vld [vmem:[#allocation2 + $0x70] sm:$0xff]
    %v1181 = vld [vmem:[#allocation2 + $0x78] sm:$0xff]
    %v1182 = vld [vmem:[#allocation2 + $0x80] sm:$0xff]
    %v1183 = vld [vmem:[#allocation2 + $0x88] sm:$0xff]
    %s1184 = scalar_lea.vmem [#allocation4], 1536
    %v1185 = vld [vmem:[%s1184] sm:$0xff]
    %v1186 = vld [vmem:[%s1184 + $0x8] sm:$0xff]
    %v1187 = vld [vmem:[%s1184 + $0x10] sm:$0xff]
    %v1188 = vld [vmem:[%s1184 + $0x18] sm:$0xff]
    %v1189 = vld [vmem:[%s1184 + $0x20] sm:$0xff]
    %v1190 = vld [vmem:[%s1184 + $0x28] sm:$0xff]
    %v1191 = vld [vmem:[%s1184 + $0x30] sm:$0xff]
    %v1192 = vld [vmem:[%s1184 + $0x38] sm:$0xff]
    %v1193 = vld [vmem:[%s1184 + $0x40] sm:$0xff]
    %v1194 = vld [vmem:[%s1184 + $0x48] sm:$0xff]
    %v1195 = vld [vmem:[%s1184 + $0x50] sm:$0xff]
    %v1196 = vld [vmem:[%s1184 + $0x58] sm:$0xff]
    %v1197 = vld [vmem:[%s1184 + $0x60] sm:$0xff]
    %v1198 = vld [vmem:[%s1184 + $0x68] sm:$0xff]
    %v1199 = vld [vmem:[%s1184 + $0x70] sm:$0xff]
    %v1200 = vld [vmem:[%s1184 + $0x78] sm:$0xff]
    %v1201 = vld [vmem:[%s1184 + $0x80] sm:$0xff]
    %v1202 = vld [vmem:[%s1184 + $0x88] sm:$0xff]
    %v1203 = vld [vmem:[%s1184 + $0x90] sm:$0xff]
    %v1204 = vld [vmem:[%s1184 + $0x98] sm:$0xff]
    %v1205 = vld [vmem:[%s1184 + $0xa0] sm:$0xff]
    %v1206 = vld [vmem:[%s1184 + $0xa8] sm:$0xff]
    %v1207 = vld [vmem:[%s1184 + $0xb0] sm:$0xff]
    %v1208 = vld [vmem:[%s1184 + $0xb8] sm:$0xff]
    %v1209 = vld [vmem:[%s1184 + $0xc0] sm:$0xff]
    %v1210 = vld [vmem:[%s1184 + $0xc8] sm:$0xff]
    %v1211 = vld [vmem:[%s1184 + $0xd0] sm:$0xff]
    %v1212 = vld [vmem:[%s1184 + $0xd8] sm:$0xff]
    %v1213 = vld [vmem:[%s1184 + $0xe0] sm:$0xff]
    %v1214 = vld [vmem:[%s1184 + $0xe8] sm:$0xff]
    %v1215 = vld [vmem:[%s1184 + $0xf0] sm:$0xff]
    %v1216 = vld [vmem:[%s1184 + $0xf8] sm:$0xff]
    %v1217 = vld [vmem:[%s1184 + $0x100] sm:$0xff]
    %v1218 = vld [vmem:[%s1184 + $0x108] sm:$0xff]
    %v1219 = vld [vmem:[%s1184 + $0x110] sm:$0xff]
    %v1220 = vld [vmem:[%s1184 + $0x118] sm:$0xff]
    %v1221 = vld [vmem:[%s1184 + $0x120] sm:$0xff]
    %v1222 = vld [vmem:[%s1184 + $0x128] sm:$0xff]
    %v1223 = vld [vmem:[%s1184 + $0x130] sm:$0xff]
    %v1224 = vld [vmem:[%s1184 + $0x138] sm:$0xff]
    %v1225 = vld [vmem:[%s1184 + $0x140] sm:$0xff]
    %v1226 = vld [vmem:[%s1184 + $0x148] sm:$0xff]
    %v1227 = vld [vmem:[%s1184 + $0x150] sm:$0xff]
    %v1228 = vld [vmem:[%s1184 + $0x158] sm:$0xff]
    %v1229 = vld [vmem:[%s1184 + $0x160] sm:$0xff]
    %v1230 = vld [vmem:[%s1184 + $0x168] sm:$0xff]
    %v1231 = vld [vmem:[%s1184 + $0x170] sm:$0xff]
    %v1232 = vld [vmem:[%s1184 + $0x178] sm:$0xff]
    %v1233 = vld [vmem:[%s1184 + $0x180] sm:$0xff]
    %v1234 = vld [vmem:[%s1184 + $0x188] sm:$0xff]
    %v1235 = vld [vmem:[%s1184 + $0x190] sm:$0xff]
    %v1236 = vld [vmem:[%s1184 + $0x198] sm:$0xff]
    %v1237 = vld [vmem:[%s1184 + $0x1a0] sm:$0xff]
    %v1238 = vld [vmem:[%s1184 + $0x1a8] sm:$0xff]
    %v1239 = vld [vmem:[%s1184 + $0x1b0] sm:$0xff]
    %v1240 = vld [vmem:[%s1184 + $0x1b8] sm:$0xff]
    %v1241 = vld [vmem:[%s1184 + $0x1c0] sm:$0xff]
    %v1242 = vld [vmem:[%s1184 + $0x1c8] sm:$0xff]
    %v1243 = vld [vmem:[%s1184 + $0x1d0] sm:$0xff]
    %v1244 = vld [vmem:[%s1184 + $0x1d8] sm:$0xff]
    %v1245 = vld [vmem:[%s1184 + $0x1e0] sm:$0xff]
    %v1246 = vld [vmem:[%s1184 + $0x1e8] sm:$0xff]
    %v1247 = vld [vmem:[%s1184 + $0x1f0] sm:$0xff]
    %v1248 = vld [vmem:[%s1184 + $0x1f8] sm:$0xff]
    %v1249 = vld [vmem:[#allocation2] sm:$0xfe]
    %v1250 = vld [vmem:[#allocation2 + $0x8] sm:$0xfe]
    %v1251 = vld [vmem:[#allocation2 + $0x40] sm:$0x1]
    %v1252 = vld [vmem:[#allocation2 + $0x48] sm:$0x1]
    %v1253 = vld [vmem:[#allocation2 + $0x50] sm:$0xfe]
    %v1254 = vld [vmem:[#allocation2 + $0x58] sm:$0xfe]
    %v1255 = vld [vmem:[#allocation2 + $0x90] sm:$0x1]
    %v1256 = vld [vmem:[#allocation2 + $0x98] sm:$0x1]
    %v1277 = vrot.slane %v1249, 1
    %v1278 = vrot.slane %v1170, 1
    %v1279 = vsel %vm285, %v1277, %v1278
    %v1280 = vrot.slane %v1250, 1
    %v1281 = vrot.slane %v1171, 1
    %v1282 = vsel %vm285, %v1280, %v1281
    %v1283 = vrot.slane %v1172, 1
    %v1284 = vsel %vm285, %v1278, %v1283
    %v1285 = vrot.slane %v1173, 1
    %v1286 = vsel %vm285, %v1281, %v1285
    %v1287 = vrot.slane %v1174, 1
    %v1288 = vsel %vm285, %v1283, %v1287
    %v1289 = vrot.slane %v1175, 1
    %v1290 = vsel %vm285, %v1285, %v1289
    %v1291 = vrot.slane %v1251, 1
    %v1292 = vsel %vm285, %v1287, %v1291
    %v1293 = vrot.slane %v1252, 1
    %v1294 = vsel %vm285, %v1289, %v1293
    %v1295 = vrot.slane %v1253, 1
    %v1296 = vrot.slane %v1178, 1
    %v1297 = vsel %vm285, %v1295, %v1296
    %v1298 = vrot.slane %v1254, 1
    %v1299 = vrot.slane %v1179, 1
    %v1300 = vsel %vm285, %v1298, %v1299
    %v1301 = vrot.slane %v1180, 1
    %v1302 = vsel %vm285, %v1296, %v1301
    %v1303 = vrot.slane %v1181, 1
    %v1304 = vsel %vm285, %v1299, %v1303
    %v1305 = vrot.slane %v1182, 1
    %v1306 = vsel %vm285, %v1301, %v1305
    %v1307 = vrot.slane %v1183, 1
    %v1308 = vsel %vm285, %v1303, %v1307
    %v1309 = vrot.slane %v1255, 1
    %v1310 = vsel %vm285, %v1305, %v1309
    %v1311 = vrot.slane %v1256, 1
    %v1312 = vsel %vm285, %v1307, %v1311
    %s1329 = scalar_lea.vmem [#allocation4], 2048
    %v1330 = vld [vmem:[%s1329] sm:$0xff]
    %v1331 = vld [vmem:[%s1329 + $0x8] sm:$0xff]
    %v1332 = vld [vmem:[%s1329 + $0x10] sm:$0xff]
    %v1333 = vld [vmem:[%s1329 + $0x18] sm:$0xff]
    %v1334 = vld [vmem:[%s1329 + $0x20] sm:$0xff]
    %v1335 = vld [vmem:[%s1329 + $0x28] sm:$0xff]
    %v1336 = vld [vmem:[%s1329 + $0x30] sm:$0xff]
    %v1337 = vld [vmem:[%s1329 + $0x38] sm:$0xff]
    %v1338 = vld [vmem:[%s1329 + $0x40] sm:$0xff]
    %v1339 = vld [vmem:[%s1329 + $0x48] sm:$0xff]
    %v1340 = vld [vmem:[%s1329 + $0x50] sm:$0xff]
    %v1341 = vld [vmem:[%s1329 + $0x58] sm:$0xff]
    %v1342 = vld [vmem:[%s1329 + $0x60] sm:$0xff]
    %v1343 = vld [vmem:[%s1329 + $0x68] sm:$0xff]
    %v1344 = vld [vmem:[%s1329 + $0x70] sm:$0xff]
    %v1345 = vld [vmem:[%s1329 + $0x78] sm:$0xff]
    %v1346 = vld [vmem:[%s1329 + $0x80] sm:$0xff]
    %v1347 = vld [vmem:[%s1329 + $0x88] sm:$0xff]
    %v1348 = vld [vmem:[%s1329 + $0x90] sm:$0xff]
    %v1349 = vld [vmem:[%s1329 + $0x98] sm:$0xff]
    %v1350 = vld [vmem:[%s1329 + $0xa0] sm:$0xff]
    %v1351 = vld [vmem:[%s1329 + $0xa8] sm:$0xff]
    %v1352 = vld [vmem:[%s1329 + $0xb0] sm:$0xff]
    %v1353 = vld [vmem:[%s1329 + $0xb8] sm:$0xff]
    %v1354 = vld [vmem:[%s1329 + $0xc0] sm:$0xff]
    %v1355 = vld [vmem:[%s1329 + $0xc8] sm:$0xff]
    %v1356 = vld [vmem:[%s1329 + $0xd0] sm:$0xff]
    %v1357 = vld [vmem:[%s1329 + $0xd8] sm:$0xff]
    %v1358 = vld [vmem:[%s1329 + $0xe0] sm:$0xff]
    %v1359 = vld [vmem:[%s1329 + $0xe8] sm:$0xff]
    %v1360 = vld [vmem:[%s1329 + $0xf0] sm:$0xff]
    %v1361 = vld [vmem:[%s1329 + $0xf8] sm:$0xff]
    %v1362 = vld [vmem:[%s1329 + $0x100] sm:$0xff]
    %v1363 = vld [vmem:[%s1329 + $0x108] sm:$0xff]
    %v1364 = vld [vmem:[%s1329 + $0x110] sm:$0xff]
    %v1365 = vld [vmem:[%s1329 + $0x118] sm:$0xff]
    %v1366 = vld [vmem:[%s1329 + $0x120] sm:$0xff]
    %v1367 = vld [vmem:[%s1329 + $0x128] sm:$0xff]
    %v1368 = vld [vmem:[%s1329 + $0x130] sm:$0xff]
    %v1369 = vld [vmem:[%s1329 + $0x138] sm:$0xff]
    %v1370 = vld [vmem:[%s1329 + $0x140] sm:$0xff]
    %v1371 = vld [vmem:[%s1329 + $0x148] sm:$0xff]
    %v1372 = vld [vmem:[%s1329 + $0x150] sm:$0xff]
    %v1373 = vld [vmem:[%s1329 + $0x158] sm:$0xff]
    %v1374 = vld [vmem:[%s1329 + $0x160] sm:$0xff]
    %v1375 = vld [vmem:[%s1329 + $0x168] sm:$0xff]
    %v1376 = vld [vmem:[%s1329 + $0x170] sm:$0xff]
    %v1377 = vld [vmem:[%s1329 + $0x178] sm:$0xff]
    %v1378 = vld [vmem:[%s1329 + $0x180] sm:$0xff]
    %v1379 = vld [vmem:[%s1329 + $0x188] sm:$0xff]
    %v1380 = vld [vmem:[%s1329 + $0x190] sm:$0xff]
    %v1381 = vld [vmem:[%s1329 + $0x198] sm:$0xff]
    %v1382 = vld [vmem:[%s1329 + $0x1a0] sm:$0xff]
    %v1383 = vld [vmem:[%s1329 + $0x1a8] sm:$0xff]
    %v1384 = vld [vmem:[%s1329 + $0x1b0] sm:$0xff]
    %v1385 = vld [vmem:[%s1329 + $0x1b8] sm:$0xff]
    %v1386 = vld [vmem:[%s1329 + $0x1c0] sm:$0xff]
    %v1387 = vld [vmem:[%s1329 + $0x1c8] sm:$0xff]
    %v1388 = vld [vmem:[%s1329 + $0x1d0] sm:$0xff]
    %v1389 = vld [vmem:[%s1329 + $0x1d8] sm:$0xff]
    %v1390 = vld [vmem:[%s1329 + $0x1e0] sm:$0xff]
    %v1391 = vld [vmem:[%s1329 + $0x1e8] sm:$0xff]
    %v1392 = vld [vmem:[%s1329 + $0x1f0] sm:$0xff]
    %v1393 = vld [vmem:[%s1329 + $0x1f8] sm:$0xff]
    %1394 = vmatpush.msra.mxu0 %v1360
    %1395 = vmatpush.msra.mxu0 %v1358
    %1396 = vmatpush.msra.mxu0 %v1356
    %1397 = vmatpush.msra.mxu0 %v1354
    %1398 = vmatpush.msra.mxu0 %v1352
    %1399 = vmatpush.msra.mxu0 %v1350
    %1400 = vmatpush.msra.mxu0 %v1348
    %1401 = vmatpush.msra.mxu0 %v1346
    %1402 = vmatpush.msra.mxu0 %v1344
    %1403 = vmatpush.msra.mxu0 %v1342
    %1404 = vmatpush.msra.mxu0 %v1340
    %1405 = vmatpush.msra.mxu0 %v1338
    %1406 = vmatpush.msra.mxu0 %v1336
    %1407 = vmatpush.msra.mxu0 %v1334
    %1408 = vmatpush.msra.mxu0 %v1332
    %1409 = vmatpush.msra.mxu0 %v1330
    %1410 = vmatmul.f32.gmra.mxu0 %v1279
    %v1411 = vpop.f32.mrf.mxu0
    %v1412 = vadd.f32 0.0, %v1411
    %1413 = vmatmul.f32.gmra.mxu0 %v1284
    %v1414 = vpop.f32.mrf.mxu0
    %v1415 = vadd.f32 0.0, %v1414
    %1416 = vmatmul.f32.gmra.mxu0 %v1288
    %v1417 = vpop.f32.mrf.mxu0
    %v1418 = vadd.f32 0.0, %v1417
    %1419 = vmatmul.f32.gmra.mxu0 %v1292
    %v1420 = vpop.f32.mrf.mxu0
    %v1421 = vadd.f32 0.0, %v1420
    %1422 = vmatmul.f32.gmra.mxu0 %v1297
    %v1423 = vpop.f32.mrf.mxu0
    %v1424 = vadd.f32 0.0, %v1423
    %1425 = vmatmul.f32.gmra.mxu0 %v1302
    %v1426 = vpop.f32.mrf.mxu0
    %v1427 = vadd.f32 0.0, %v1426
    %1428 = vmatmul.f32.gmra.mxu0 %v1306
    %v1429 = vpop.f32.mrf.mxu0
    %v1430 = vadd.f32 0.0, %v1429
    %1431 = vmatmul.f32.gmra.mxu0 %v1310
    %v1432 = vpop.f32.mrf.mxu0
    %v1433 = vadd.f32 0.0, %v1432
    %1434 = vdwg.mxu0
    %1435 = vmatpush.msra.mxu0 %v1392
    %1436 = vmatpush.msra.mxu0 %v1390
    %1437 = vmatpush.msra.mxu0 %v1388
    %1438 = vmatpush.msra.mxu0 %v1386
    %1439 = vmatpush.msra.mxu0 %v1384
    %1440 = vmatpush.msra.mxu0 %v1382
    %1441 = vmatpush.msra.mxu0 %v1380
    %1442 = vmatpush.msra.mxu0 %v1378
    %1443 = vmatpush.msra.mxu0 %v1376
    %1444 = vmatpush.msra.mxu0 %v1374
    %1445 = vmatpush.msra.mxu0 %v1372
    %1446 = vmatpush.msra.mxu0 %v1370
    %1447 = vmatpush.msra.mxu0 %v1368
    %1448 = vmatpush.msra.mxu0 %v1366
    %1449 = vmatpush.msra.mxu0 %v1364
    %1450 = vmatpush.msra.mxu0 %v1362
    %1451 = vmatmul.f32.gmra.mxu0 %v1282
    %v1452 = vpop.f32.mrf.mxu0
    %v1453 = vadd.f32 %v1412, %v1452
    %1454 = vmatmul.f32.gmra.mxu0 %v1286
    %v1455 = vpop.f32.mrf.mxu0
    %v1456 = vadd.f32 %v1415, %v1455
    %1457 = vmatmul.f32.gmra.mxu0 %v1290
    %v1458 = vpop.f32.mrf.mxu0
    %v1459 = vadd.f32 %v1418, %v1458
    %1460 = vmatmul.f32.gmra.mxu0 %v1294
    %v1461 = vpop.f32.mrf.mxu0
    %v1462 = vadd.f32 %v1421, %v1461
    %1463 = vmatmul.f32.gmra.mxu0 %v1300
    %v1464 = vpop.f32.mrf.mxu0
    %v1465 = vadd.f32 %v1424, %v1464
    %1466 = vmatmul.f32.gmra.mxu0 %v1304
    %v1467 = vpop.f32.mrf.mxu0
    %v1468 = vadd.f32 %v1427, %v1467
    %1469 = vmatmul.f32.gmra.mxu0 %v1308
    %v1470 = vpop.f32.mrf.mxu0
    %v1471 = vadd.f32 %v1430, %v1470
    %1472 = vmatmul.f32.gmra.mxu0 %v1312
    %v1473 = vpop.f32.mrf.mxu0
    %v1474 = vadd.f32 %v1433, %v1473
    %1475 = vdwg.mxu0
    %1476 = vmatpush.msra.mxu0 %v1361
    %1477 = vmatpush.msra.mxu0 %v1359
    %1478 = vmatpush.msra.mxu0 %v1357
    %1479 = vmatpush.msra.mxu0 %v1355
    %1480 = vmatpush.msra.mxu0 %v1353
    %1481 = vmatpush.msra.mxu0 %v1351
    %1482 = vmatpush.msra.mxu0 %v1349
    %1483 = vmatpush.msra.mxu0 %v1347
    %1484 = vmatpush.msra.mxu0 %v1345
    %1485 = vmatpush.msra.mxu0 %v1343
    %1486 = vmatpush.msra.mxu0 %v1341
    %1487 = vmatpush.msra.mxu0 %v1339
    %1488 = vmatpush.msra.mxu0 %v1337
    %1489 = vmatpush.msra.mxu0 %v1335
    %1490 = vmatpush.msra.mxu0 %v1333
    %1491 = vmatpush.msra.mxu0 %v1331
    %1492 = vmatmul.f32.gmra.mxu0 %v1279
    %v1493 = vpop.f32.mrf.mxu0
    %v1494 = vadd.f32 0.0, %v1493
    %1495 = vmatmul.f32.gmra.mxu0 %v1284
    %v1496 = vpop.f32.mrf.mxu0
    %v1497 = vadd.f32 0.0, %v1496
    %1498 = vmatmul.f32.gmra.mxu0 %v1288
    %v1499 = vpop.f32.mrf.mxu0
    %v1500 = vadd.f32 0.0, %v1499
    %1501 = vmatmul.f32.gmra.mxu0 %v1292
    %v1502 = vpop.f32.mrf.mxu0
    %v1503 = vadd.f32 0.0, %v1502
    %1504 = vmatmul.f32.gmra.mxu0 %v1297
    %v1505 = vpop.f32.mrf.mxu0
    %v1506 = vadd.f32 0.0, %v1505
    %1507 = vmatmul.f32.gmra.mxu0 %v1302
    %v1508 = vpop.f32.mrf.mxu0
    %v1509 = vadd.f32 0.0, %v1508
    %1510 = vmatmul.f32.gmra.mxu0 %v1306
    %v1511 = vpop.f32.mrf.mxu0
    %v1512 = vadd.f32 0.0, %v1511
    %1513 = vmatmul.f32.gmra.mxu0 %v1310
    %v1514 = vpop.f32.mrf.mxu0
    %v1515 = vadd.f32 0.0, %v1514
    %1516 = vdwg.mxu0
    %1517 = vmatpush.msra.mxu0 %v1393
    %1518 = vmatpush.msra.mxu0 %v1391
    %1519 = vmatpush.msra.mxu0 %v1389
    %1520 = vmatpush.msra.mxu0 %v1387
    %1521 = vmatpush.msra.mxu0 %v1385
    %1522 = vmatpush.msra.mxu0 %v1383
    %1523 = vmatpush.msra.mxu0 %v1381
    %1524 = vmatpush.msra.mxu0 %v1379
    %1525 = vmatpush.msra.mxu0 %v1377
    %1526 = vmatpush.msra.mxu0 %v1375
    %1527 = vmatpush.msra.mxu0 %v1373
    %1528 = vmatpush.msra.mxu0 %v1371
    %1529 = vmatpush.msra.mxu0 %v1369
    %1530 = vmatpush.msra.mxu0 %v1367
    %1531 = vmatpush.msra.mxu0 %v1365
    %1532 = vmatpush.msra.mxu0 %v1363
    %1533 = vmatmul.f32.gmra.mxu0 %v1282
    %v1534 = vpop.f32.mrf.mxu0
    %v1535 = vadd.f32 %v1494, %v1534
    %1536 = vmatmul.f32.gmra.mxu0 %v1286
    %v1537 = vpop.f32.mrf.mxu0
    %v1538 = vadd.f32 %v1497, %v1537
    %1539 = vmatmul.f32.gmra.mxu0 %v1290
    %v1540 = vpop.f32.mrf.mxu0
    %v1541 = vadd.f32 %v1500, %v1540
    %1542 = vmatmul.f32.gmra.mxu0 %v1294
    %v1543 = vpop.f32.mrf.mxu0
    %v1544 = vadd.f32 %v1503, %v1543
    %1545 = vmatmul.f32.gmra.mxu0 %v1300
    %v1546 = vpop.f32.mrf.mxu0
    %v1547 = vadd.f32 %v1506, %v1546
    %1548 = vmatmul.f32.gmra.mxu0 %v1304
    %v1549 = vpop.f32.mrf.mxu0
    %v1550 = vadd.f32 %v1509, %v1549
    %1551 = vmatmul.f32.gmra.mxu0 %v1308
    %v1552 = vpop.f32.mrf.mxu0
    %v1553 = vadd.f32 %v1512, %v1552
    %1554 = vmatmul.f32.gmra.mxu0 %v1312
    %v1555 = vpop.f32.mrf.mxu0
    %v1556 = vadd.f32 %v1515, %v1555
    %1557 = vdwg.mxu0
    %1558 = vmatpush.msra.mxu0 %v1215
    %1559 = vmatpush.msra.mxu0 %v1213
    %1560 = vmatpush.msra.mxu0 %v1211
    %1561 = vmatpush.msra.mxu0 %v1209
    %1562 = vmatpush.msra.mxu0 %v1207
    %1563 = vmatpush.msra.mxu0 %v1205
    %1564 = vmatpush.msra.mxu0 %v1203
    %1565 = vmatpush.msra.mxu0 %v1201
    %1566 = vmatpush.msra.mxu0 %v1199
    %1567 = vmatpush.msra.mxu0 %v1197
    %1568 = vmatpush.msra.mxu0 %v1195
    %1569 = vmatpush.msra.mxu0 %v1193
    %1570 = vmatpush.msra.mxu0 %v1191
    %1571 = vmatpush.msra.mxu0 %v1189
    %1572 = vmatpush.msra.mxu0 %v1187
    %1573 = vmatpush.msra.mxu0 %v1185
    %1574 = vmatmul.f32.gmra.mxu0 %v1168
    %v1575 = vpop.f32.mrf.mxu0
    %v1576 = vadd.f32 %v1453, %v1575
    %1577 = vmatmul.f32.gmra.mxu0 %v1170
    %v1578 = vpop.f32.mrf.mxu0
    %v1579 = vadd.f32 %v1456, %v1578
    %1580 = vmatmul.f32.gmra.mxu0 %v1172
    %v1581 = vpop.f32.mrf.mxu0
    %v1582 = vadd.f32 %v1459, %v1581
    %1583 = vmatmul.f32.gmra.mxu0 %v1174
    %v1584 = vpop.f32.mrf.mxu0
    %v1585 = vadd.f32 %v1462, %v1584
    %1586 = vmatmul.f32.gmra.mxu0 %v1176
    %v1587 = vpop.f32.mrf.mxu0
    %v1588 = vadd.f32 %v1465, %v1587
    %1589 = vmatmul.f32.gmra.mxu0 %v1178
    %v1590 = vpop.f32.mrf.mxu0
    %v1591 = vadd.f32 %v1468, %v1590
    %1592 = vmatmul.f32.gmra.mxu0 %v1180
    %v1593 = vpop.f32.mrf.mxu0
    %v1594 = vadd.f32 %v1471, %v1593
    %1595 = vmatmul.f32.gmra.mxu0 %v1182
    %v1596 = vpop.f32.mrf.mxu0
    %v1597 = vadd.f32 %v1474, %v1596
    %1598 = vdwg.mxu0
    %1599 = vmatpush.msra.mxu0 %v1247
    %1600 = vmatpush.msra.mxu0 %v1245
    %1601 = vmatpush.msra.mxu0 %v1243
    %1602 = vmatpush.msra.mxu0 %v1241
    %1603 = vmatpush.msra.mxu0 %v1239
    %1604 = vmatpush.msra.mxu0 %v1237
    %1605 = vmatpush.msra.mxu0 %v1235
    %1606 = vmatpush.msra.mxu0 %v1233
    %1607 = vmatpush.msra.mxu0 %v1231
    %1608 = vmatpush.msra.mxu0 %v1229
    %1609 = vmatpush.msra.mxu0 %v1227
    %1610 = vmatpush.msra.mxu0 %v1225
    %1611 = vmatpush.msra.mxu0 %v1223
    %1612 = vmatpush.msra.mxu0 %v1221
    %1613 = vmatpush.msra.mxu0 %v1219
    %1614 = vmatpush.msra.mxu0 %v1217
    %1615 = vmatmul.f32.gmra.mxu0 %v1169
    %v1616 = vpop.f32.mrf.mxu0
    %v1617 = vadd.f32 %v1576, %v1616
    %1618 = vmatmul.f32.gmra.mxu0 %v1171
    %v1619 = vpop.f32.mrf.mxu0
    %v1620 = vadd.f32 %v1579, %v1619
    %1621 = vmatmul.f32.gmra.mxu0 %v1173
    %v1622 = vpop.f32.mrf.mxu0
    %v1623 = vadd.f32 %v1582, %v1622
    %1624 = vmatmul.f32.gmra.mxu0 %v1175
    %v1625 = vpop.f32.mrf.mxu0
    %v1626 = vadd.f32 %v1585, %v1625
    %1627 = vmatmul.f32.gmra.mxu0 %v1177
    %v1628 = vpop.f32.mrf.mxu0
    %v1629 = vadd.f32 %v1588, %v1628
    %1630 = vmatmul.f32.gmra.mxu0 %v1179
    %v1631 = vpop.f32.mrf.mxu0
    %v1632 = vadd.f32 %v1591, %v1631
    %1633 = vmatmul.f32.gmra.mxu0 %v1181
    %v1634 = vpop.f32.mrf.mxu0
    %v1635 = vadd.f32 %v1594, %v1634
    %1636 = vmatmul.f32.gmra.mxu0 %v1183
    %v1637 = vpop.f32.mrf.mxu0
    %v1638 = vadd.f32 %v1597, %v1637
    %1639 = vdwg.mxu0
    %1640 = vmatpush.msra.mxu0 %v1216
    %1641 = vmatpush.msra.mxu0 %v1214
    %1642 = vmatpush.msra.mxu0 %v1212
    %1643 = vmatpush.msra.mxu0 %v1210
    %1644 = vmatpush.msra.mxu0 %v1208
    %1645 = vmatpush.msra.mxu0 %v1206
    %1646 = vmatpush.msra.mxu0 %v1204
    %1647 = vmatpush.msra.mxu0 %v1202
    %1648 = vmatpush.msra.mxu0 %v1200
    %1649 = vmatpush.msra.mxu0 %v1198
    %1650 = vmatpush.msra.mxu0 %v1196
    %1651 = vmatpush.msra.mxu0 %v1194
    %1652 = vmatpush.msra.mxu0 %v1192
    %1653 = vmatpush.msra.mxu0 %v1190
    %1654 = vmatpush.msra.mxu0 %v1188
    %1655 = vmatpush.msra.mxu0 %v1186
    %1656 = vmatmul.f32.gmra.mxu0 %v1168
    %v1657 = vpop.f32.mrf.mxu0
    %v1658 = vadd.f32 %v1535, %v1657
    %1659 = vmatmul.f32.gmra.mxu0 %v1170
    %v1660 = vpop.f32.mrf.mxu0
    %v1661 = vadd.f32 %v1538, %v1660
    %1662 = vmatmul.f32.gmra.mxu0 %v1172
    %v1663 = vpop.f32.mrf.mxu0
    %v1664 = vadd.f32 %v1541, %v1663
    %1665 = vmatmul.f32.gmra.mxu0 %v1174
    %v1666 = vpop.f32.mrf.mxu0
    %v1667 = vadd.f32 %v1544, %v1666
    %1668 = vmatmul.f32.gmra.mxu0 %v1176
    %v1669 = vpop.f32.mrf.mxu0
    %v1670 = vadd.f32 %v1547, %v1669
    %1671 = vmatmul.f32.gmra.mxu0 %v1178
    %v1672 = vpop.f32.mrf.mxu0
    %v1673 = vadd.f32 %v1550, %v1672
    %1674 = vmatmul.f32.gmra.mxu0 %v1180
    %v1675 = vpop.f32.mrf.mxu0
    %v1676 = vadd.f32 %v1553, %v1675
    %1677 = vmatmul.f32.gmra.mxu0 %v1182
    %v1678 = vpop.f32.mrf.mxu0
    %v1679 = vadd.f32 %v1556, %v1678
    %1680 = vdwg.mxu0
    %1681 = vmatpush.msra.mxu0 %v1248
    %1682 = vmatpush.msra.mxu0 %v1246
    %1683 = vmatpush.msra.mxu0 %v1244
    %1684 = vmatpush.msra.mxu0 %v1242
    %1685 = vmatpush.msra.mxu0 %v1240
    %1686 = vmatpush.msra.mxu0 %v1238
    %1687 = vmatpush.msra.mxu0 %v1236
    %1688 = vmatpush.msra.mxu0 %v1234
    %1689 = vmatpush.msra.mxu0 %v1232
    %1690 = vmatpush.msra.mxu0 %v1230
    %1691 = vmatpush.msra.mxu0 %v1228
    %1692 = vmatpush.msra.mxu0 %v1226
    %1693 = vmatpush.msra.mxu0 %v1224
    %1694 = vmatpush.msra.mxu0 %v1222
    %1695 = vmatpush.msra.mxu0 %v1220
    %1696 = vmatpush.msra.mxu0 %v1218
    %1697 = vmatmul.f32.gmra.mxu0 %v1169
    %v1698 = vpop.f32.mrf.mxu0
    %v1699 = vadd.f32 %v1658, %v1698
    %1700 = vmatmul.f32.gmra.mxu0 %v1171
    %v1701 = vpop.f32.mrf.mxu0
    %v1702 = vadd.f32 %v1661, %v1701
    %1703 = vmatmul.f32.gmra.mxu0 %v1173
    %v1704 = vpop.f32.mrf.mxu0
    %v1705 = vadd.f32 %v1664, %v1704
    %1706 = vmatmul.f32.gmra.mxu0 %v1175
    %v1707 = vpop.f32.mrf.mxu0
    %v1708 = vadd.f32 %v1667, %v1707
    %1709 = vmatmul.f32.gmra.mxu0 %v1177
    %v1710 = vpop.f32.mrf.mxu0
    %v1711 = vadd.f32 %v1670, %v1710
    %1712 = vmatmul.f32.gmra.mxu0 %v1179
    %v1713 = vpop.f32.mrf.mxu0
    %v1714 = vadd.f32 %v1673, %v1713
    %1715 = vmatmul.f32.gmra.mxu0 %v1181
    %v1716 = vpop.f32.mrf.mxu0
    %v1717 = vadd.f32 %v1676, %v1716
    %1718 = vmatmul.f32.gmra.mxu0 %v1183
    %v1719 = vpop.f32.mrf.mxu0
    %v1720 = vadd.f32 %v1679, %v1719
    %1721 = vdwg.mxu0
    %v1722 = vld [vmem:[#allocation2] sm:$0xfc]
    %v1723 = vld [vmem:[#allocation2 + $0x8] sm:$0xfc]
    %v1724 = vld [vmem:[#allocation2 + $0x40] sm:$0x3]
    %v1725 = vld [vmem:[#allocation2 + $0x48] sm:$0x3]
    %v1726 = vld [vmem:[#allocation2 + $0x50] sm:$0xfc]
    %v1727 = vld [vmem:[#allocation2 + $0x58] sm:$0xfc]
    %v1728 = vld [vmem:[#allocation2 + $0x90] sm:$0x3]
    %v1729 = vld [vmem:[#allocation2 + $0x98] sm:$0x3]
    %v1738 = vrot.slane %v1722, 2
    %v1739 = vrot.slane %v1170, 2
    %v1740 = vsel %vm747, %v1738, %v1739
    %v1741 = vrot.slane %v1723, 2
    %v1742 = vrot.slane %v1171, 2
    %v1743 = vsel %vm747, %v1741, %v1742
    %v1744 = vrot.slane %v1172, 2
    %v1745 = vsel %vm747, %v1739, %v1744
    %v1746 = vrot.slane %v1173, 2
    %v1747 = vsel %vm747, %v1742, %v1746
    %v1748 = vrot.slane %v1174, 2
    %v1749 = vsel %vm747, %v1744, %v1748
    %v1750 = vrot.slane %v1175, 2
    %v1751 = vsel %vm747, %v1746, %v1750
    %v1752 = vrot.slane %v1724, 2
    %v1753 = vsel %vm747, %v1748, %v1752
    %v1754 = vrot.slane %v1725, 2
    %v1755 = vsel %vm747, %v1750, %v1754
    %v1756 = vrot.slane %v1726, 2
    %v1757 = vrot.slane %v1178, 2
    %v1758 = vsel %vm747, %v1756, %v1757
    %v1759 = vrot.slane %v1727, 2
    %v1760 = vrot.slane %v1179, 2
    %v1761 = vsel %vm747, %v1759, %v1760
    %v1762 = vrot.slane %v1180, 2
    %v1763 = vsel %vm747, %v1757, %v1762
    %v1764 = vrot.slane %v1181, 2
    %v1765 = vsel %vm747, %v1760, %v1764
    %v1766 = vrot.slane %v1182, 2
    %v1767 = vsel %vm747, %v1762, %v1766
    %v1768 = vrot.slane %v1183, 2
    %v1769 = vsel %vm747, %v1764, %v1768
    %v1770 = vrot.slane %v1728, 2
    %v1771 = vsel %vm747, %v1766, %v1770
    %v1772 = vrot.slane %v1729, 2
    %v1773 = vsel %vm747, %v1768, %v1772
    %s1790 = scalar_lea.vmem [#allocation4], 2560
    %v1791 = vld [vmem:[%s1790] sm:$0xff]
    %v1792 = vld [vmem:[%s1790 + $0x8] sm:$0xff]
    %v1793 = vld [vmem:[%s1790 + $0x10] sm:$0xff]
    %v1794 = vld [vmem:[%s1790 + $0x18] sm:$0xff]
    %v1795 = vld [vmem:[%s1790 + $0x20] sm:$0xff]
    %v1796 = vld [vmem:[%s1790 + $0x28] sm:$0xff]
    %v1797 = vld [vmem:[%s1790 + $0x30] sm:$0xff]
    %v1798 = vld [vmem:[%s1790 + $0x38] sm:$0xff]
    %v1799 = vld [vmem:[%s1790 + $0x40] sm:$0xff]
    %v1800 = vld [vmem:[%s1790 + $0x48] sm:$0xff]
    %v1801 = vld [vmem:[%s1790 + $0x50] sm:$0xff]
    %v1802 = vld [vmem:[%s1790 + $0x58] sm:$0xff]
    %v1803 = vld [vmem:[%s1790 + $0x60] sm:$0xff]
    %v1804 = vld [vmem:[%s1790 + $0x68] sm:$0xff]
    %v1805 = vld [vmem:[%s1790 + $0x70] sm:$0xff]
    %v1806 = vld [vmem:[%s1790 + $0x78] sm:$0xff]
    %v1807 = vld [vmem:[%s1790 + $0x80] sm:$0xff]
    %v1808 = vld [vmem:[%s1790 + $0x88] sm:$0xff]
    %v1809 = vld [vmem:[%s1790 + $0x90] sm:$0xff]
    %v1810 = vld [vmem:[%s1790 + $0x98] sm:$0xff]
    %v1811 = vld [vmem:[%s1790 + $0xa0] sm:$0xff]
    %v1812 = vld [vmem:[%s1790 + $0xa8] sm:$0xff]
    %v1813 = vld [vmem:[%s1790 + $0xb0] sm:$0xff]
    %v1814 = vld [vmem:[%s1790 + $0xb8] sm:$0xff]
    %v1815 = vld [vmem:[%s1790 + $0xc0] sm:$0xff]
    %v1816 = vld [vmem:[%s1790 + $0xc8] sm:$0xff]
    %v1817 = vld [vmem:[%s1790 + $0xd0] sm:$0xff]
    %v1818 = vld [vmem:[%s1790 + $0xd8] sm:$0xff]
    %v1819 = vld [vmem:[%s1790 + $0xe0] sm:$0xff]
    %v1820 = vld [vmem:[%s1790 + $0xe8] sm:$0xff]
    %v1821 = vld [vmem:[%s1790 + $0xf0] sm:$0xff]
    %v1822 = vld [vmem:[%s1790 + $0xf8] sm:$0xff]
    %v1823 = vld [vmem:[%s1790 + $0x100] sm:$0xff]
    %v1824 = vld [vmem:[%s1790 + $0x108] sm:$0xff]
    %v1825 = vld [vmem:[%s1790 + $0x110] sm:$0xff]
    %v1826 = vld [vmem:[%s1790 + $0x118] sm:$0xff]
    %v1827 = vld [vmem:[%s1790 + $0x120] sm:$0xff]
    %v1828 = vld [vmem:[%s1790 + $0x128] sm:$0xff]
    %v1829 = vld [vmem:[%s1790 + $0x130] sm:$0xff]
    %v1830 = vld [vmem:[%s1790 + $0x138] sm:$0xff]
    %v1831 = vld [vmem:[%s1790 + $0x140] sm:$0xff]
    %v1832 = vld [vmem:[%s1790 + $0x148] sm:$0xff]
    %v1833 = vld [vmem:[%s1790 + $0x150] sm:$0xff]
    %v1834 = vld [vmem:[%s1790 + $0x158] sm:$0xff]
    %v1835 = vld [vmem:[%s1790 + $0x160] sm:$0xff]
    %v1836 = vld [vmem:[%s1790 + $0x168] sm:$0xff]
    %v1837 = vld [vmem:[%s1790 + $0x170] sm:$0xff]
    %v1838 = vld [vmem:[%s1790 + $0x178] sm:$0xff]
    %v1839 = vld [vmem:[%s1790 + $0x180] sm:$0xff]
    %v1840 = vld [vmem:[%s1790 + $0x188] sm:$0xff]
    %v1841 = vld [vmem:[%s1790 + $0x190] sm:$0xff]
    %v1842 = vld [vmem:[%s1790 + $0x198] sm:$0xff]
    %v1843 = vld [vmem:[%s1790 + $0x1a0] sm:$0xff]
    %v1844 = vld [vmem:[%s1790 + $0x1a8] sm:$0xff]
    %v1845 = vld [vmem:[%s1790 + $0x1b0] sm:$0xff]
    %v1846 = vld [vmem:[%s1790 + $0x1b8] sm:$0xff]
    %v1847 = vld [vmem:[%s1790 + $0x1c0] sm:$0xff]
    %v1848 = vld [vmem:[%s1790 + $0x1c8] sm:$0xff]
    %v1849 = vld [vmem:[%s1790 + $0x1d0] sm:$0xff]
    %v1850 = vld [vmem:[%s1790 + $0x1d8] sm:$0xff]
    %v1851 = vld [vmem:[%s1790 + $0x1e0] sm:$0xff]
    %v1852 = vld [vmem:[%s1790 + $0x1e8] sm:$0xff]
    %v1853 = vld [vmem:[%s1790 + $0x1f0] sm:$0xff]
    %v1854 = vld [vmem:[%s1790 + $0x1f8] sm:$0xff]
    %1855 = vmatpush.msra.mxu0 %v1821
    %1856 = vmatpush.msra.mxu0 %v1819
    %1857 = vmatpush.msra.mxu0 %v1817
    %1858 = vmatpush.msra.mxu0 %v1815
    %1859 = vmatpush.msra.mxu0 %v1813
    %1860 = vmatpush.msra.mxu0 %v1811
    %1861 = vmatpush.msra.mxu0 %v1809
    %1862 = vmatpush.msra.mxu0 %v1807
    %1863 = vmatpush.msra.mxu0 %v1805
    %1864 = vmatpush.msra.mxu0 %v1803
    %1865 = vmatpush.msra.mxu0 %v1801
    %1866 = vmatpush.msra.mxu0 %v1799
    %1867 = vmatpush.msra.mxu0 %v1797
    %1868 = vmatpush.msra.mxu0 %v1795
    %1869 = vmatpush.msra.mxu0 %v1793
    %1870 = vmatpush.msra.mxu0 %v1791
    %1871 = vmatmul.f32.gmra.mxu0 %v1740
    %v1872 = vpop.f32.mrf.mxu0
    %v1873 = vadd.f32 0.0, %v1872
    %1874 = vmatmul.f32.gmra.mxu0 %v1745
    %v1875 = vpop.f32.mrf.mxu0
    %v1876 = vadd.f32 0.0, %v1875
    %1877 = vmatmul.f32.gmra.mxu0 %v1749
    %v1878 = vpop.f32.mrf.mxu0
    %v1879 = vadd.f32 0.0, %v1878
    %1880 = vmatmul.f32.gmra.mxu0 %v1753
    %v1881 = vpop.f32.mrf.mxu0
    %v1882 = vadd.f32 0.0, %v1881
    %1883 = vmatmul.f32.gmra.mxu0 %v1758
    %v1884 = vpop.f32.mrf.mxu0
    %v1885 = vadd.f32 0.0, %v1884
    %1886 = vmatmul.f32.gmra.mxu0 %v1763
    %v1887 = vpop.f32.mrf.mxu0
    %v1888 = vadd.f32 0.0, %v1887
    %1889 = vmatmul.f32.gmra.mxu0 %v1767
    %v1890 = vpop.f32.mrf.mxu0
    %v1891 = vadd.f32 0.0, %v1890
    %1892 = vmatmul.f32.gmra.mxu0 %v1771
    %v1893 = vpop.f32.mrf.mxu0
    %v1894 = vadd.f32 0.0, %v1893
    %1895 = vdwg.mxu0
    %1896 = vmatpush.msra.mxu0 %v1853
    %1897 = vmatpush.msra.mxu0 %v1851
    %1898 = vmatpush.msra.mxu0 %v1849
    %1899 = vmatpush.msra.mxu0 %v1847
    %1900 = vmatpush.msra.mxu0 %v1845
    %1901 = vmatpush.msra.mxu0 %v1843
    %1902 = vmatpush.msra.mxu0 %v1841
    %1903 = vmatpush.msra.mxu0 %v1839
    %1904 = vmatpush.msra.mxu0 %v1837
    %1905 = vmatpush.msra.mxu0 %v1835
    %1906 = vmatpush.msra.mxu0 %v1833
    %1907 = vmatpush.msra.mxu0 %v1831
    %1908 = vmatpush.msra.mxu0 %v1829
    %1909 = vmatpush.msra.mxu0 %v1827
    %1910 = vmatpush.msra.mxu0 %v1825
    %1911 = vmatpush.msra.mxu0 %v1823
    %1912 = vmatmul.f32.gmra.mxu0 %v1743
    %v1913 = vpop.f32.mrf.mxu0
    %v1914 = vadd.f32 %v1873, %v1913
    %1915 = vmatmul.f32.gmra.mxu0 %v1747
    %v1916 = vpop.f32.mrf.mxu0
    %v1917 = vadd.f32 %v1876, %v1916
    %1918 = vmatmul.f32.gmra.mxu0 %v1751
    %v1919 = vpop.f32.mrf.mxu0
    %v1920 = vadd.f32 %v1879, %v1919
    %1921 = vmatmul.f32.gmra.mxu0 %v1755
    %v1922 = vpop.f32.mrf.mxu0
    %v1923 = vadd.f32 %v1882, %v1922
    %1924 = vmatmul.f32.gmra.mxu0 %v1761
    %v1925 = vpop.f32.mrf.mxu0
    %v1926 = vadd.f32 %v1885, %v1925
    %1927 = vmatmul.f32.gmra.mxu0 %v1765
    %v1928 = vpop.f32.mrf.mxu0
    %v1929 = vadd.f32 %v1888, %v1928
    %1930 = vmatmul.f32.gmra.mxu0 %v1769
    %v1931 = vpop.f32.mrf.mxu0
    %v1932 = vadd.f32 %v1891, %v1931
    %1933 = vmatmul.f32.gmra.mxu0 %v1773
    %v1934 = vpop.f32.mrf.mxu0
    %v1935 = vadd.f32 %v1894, %v1934
    %1936 = vdwg.mxu0
    %1937 = vmatpush.msra.mxu0 %v1822
    %1938 = vmatpush.msra.mxu0 %v1820
    %1939 = vmatpush.msra.mxu0 %v1818
    %1940 = vmatpush.msra.mxu0 %v1816
    %1941 = vmatpush.msra.mxu0 %v1814
    %1942 = vmatpush.msra.mxu0 %v1812
    %1943 = vmatpush.msra.mxu0 %v1810
    %1944 = vmatpush.msra.mxu0 %v1808
    %1945 = vmatpush.msra.mxu0 %v1806
    %1946 = vmatpush.msra.mxu0 %v1804
    %1947 = vmatpush.msra.mxu0 %v1802
    %1948 = vmatpush.msra.mxu0 %v1800
    %1949 = vmatpush.msra.mxu0 %v1798
    %1950 = vmatpush.msra.mxu0 %v1796
    %1951 = vmatpush.msra.mxu0 %v1794
    %1952 = vmatpush.msra.mxu0 %v1792
    %1953 = vmatmul.f32.gmra.mxu0 %v1740
    %v1954 = vpop.f32.mrf.mxu0
    %v1955 = vadd.f32 0.0, %v1954
    %1956 = vmatmul.f32.gmra.mxu0 %v1745
    %v1957 = vpop.f32.mrf.mxu0
    %v1958 = vadd.f32 0.0, %v1957
    %1959 = vmatmul.f32.gmra.mxu0 %v1749
    %v1960 = vpop.f32.mrf.mxu0
    %v1961 = vadd.f32 0.0, %v1960
    %1962 = vmatmul.f32.gmra.mxu0 %v1753
    %v1963 = vpop.f32.mrf.mxu0
    %v1964 = vadd.f32 0.0, %v1963
    %1965 = vmatmul.f32.gmra.mxu0 %v1758
    %v1966 = vpop.f32.mrf.mxu0
    %v1967 = vadd.f32 0.0, %v1966
    %1968 = vmatmul.f32.gmra.mxu0 %v1763
    %v1969 = vpop.f32.mrf.mxu0
    %v1970 = vadd.f32 0.0, %v1969
    %1971 = vmatmul.f32.gmra.mxu0 %v1767
    %v1972 = vpop.f32.mrf.mxu0
    %v1973 = vadd.f32 0.0, %v1972
    %1974 = vmatmul.f32.gmra.mxu0 %v1771
    %v1975 = vpop.f32.mrf.mxu0
    %v1976 = vadd.f32 0.0, %v1975
    %1977 = vdwg.mxu0
    %1978 = vmatpush.msra.mxu0 %v1854
    %1979 = vmatpush.msra.mxu0 %v1852
    %1980 = vmatpush.msra.mxu0 %v1850
    %1981 = vmatpush.msra.mxu0 %v1848
    %1982 = vmatpush.msra.mxu0 %v1846
    %1983 = vmatpush.msra.mxu0 %v1844
    %1984 = vmatpush.msra.mxu0 %v1842
    %1985 = vmatpush.msra.mxu0 %v1840
    %1986 = vmatpush.msra.mxu0 %v1838
    %1987 = vmatpush.msra.mxu0 %v1836
    %1988 = vmatpush.msra.mxu0 %v1834
    %1989 = vmatpush.msra.mxu0 %v1832
    %1990 = vmatpush.msra.mxu0 %v1830
    %1991 = vmatpush.msra.mxu0 %v1828
    %1992 = vmatpush.msra.mxu0 %v1826
    %1993 = vmatpush.msra.mxu0 %v1824
    %1994 = vmatmul.f32.gmra.mxu0 %v1743
    %v1995 = vpop.f32.mrf.mxu0
    %v1996 = vadd.f32 %v1955, %v1995
    %1997 = vmatmul.f32.gmra.mxu0 %v1747
    %v1998 = vpop.f32.mrf.mxu0
    %v1999 = vadd.f32 %v1958, %v1998
    %2000 = vmatmul.f32.gmra.mxu0 %v1751
    %v2001 = vpop.f32.mrf.mxu0
    %v2002 = vadd.f32 %v1961, %v2001
    %2003 = vmatmul.f32.gmra.mxu0 %v1755
    %v2004 = vpop.f32.mrf.mxu0
    %v2005 = vadd.f32 %v1964, %v2004
    %2006 = vmatmul.f32.gmra.mxu0 %v1761
    %v2007 = vpop.f32.mrf.mxu0
    %v2008 = vadd.f32 %v1967, %v2007
    %2009 = vmatmul.f32.gmra.mxu0 %v1765
    %v2010 = vpop.f32.mrf.mxu0
    %v2011 = vadd.f32 %v1970, %v2010
    %2012 = vmatmul.f32.gmra.mxu0 %v1769
    %v2013 = vpop.f32.mrf.mxu0
    %v2014 = vadd.f32 %v1973, %v2013
    %2015 = vmatmul.f32.gmra.mxu0 %v1773
    %v2016 = vpop.f32.mrf.mxu0
    %v2017 = vadd.f32 %v1976, %v2016
    %2018 = vdwg.mxu0
    %v2019 = vadd.f32 %v1617, %v1914
    %v2020 = vadd.f32 %v1699, %v1996
    %v2021 = vadd.f32 %v1620, %v1917
    %v2022 = vadd.f32 %v1702, %v1999
    %v2023 = vadd.f32 %v1623, %v1920
    %v2024 = vadd.f32 %v1705, %v2002
    %v2025 = vadd.f32 %v1626, %v1923
    %v2026 = vadd.f32 %v1708, %v2005
    %v2027 = vadd.f32 %v1629, %v1926
    %v2028 = vadd.f32 %v1711, %v2008
    %v2029 = vadd.f32 %v1632, %v1929
    %v2030 = vadd.f32 %v1714, %v2011
    %v2031 = vadd.f32 %v1635, %v1932
    %v2032 = vadd.f32 %v1717, %v2014
    %v2033 = vadd.f32 %v1638, %v1935
    %v2034 = vadd.f32 %v1720, %v2017
    %s2035 = scalar_lea.vmem [#allocation7], 1
    %v2036 = vld [vmem:[%s2035] ss:$2 sm:$0x3]
    %v2038 = vperm.slane %v2036, 0
    %v2039 = vperm.slane %v2036, 1
    %v2042 = vadd.f32 %v2019, %v2038
    %v2043 = vadd.f32 %v2020, %v2039
    %v2044 = vadd.f32 %v2021, %v2038
    %v2045 = vadd.f32 %v2022, %v2039
    %v2046 = vadd.f32 %v2023, %v2038
    %v2047 = vadd.f32 %v2024, %v2039
    %v2048 = vadd.f32 %v2025, %v2038
    %v2049 = vadd.f32 %v2026, %v2039
    %v2050 = vadd.f32 %v2027, %v2038
    %v2051 = vadd.f32 %v2028, %v2039
    %v2052 = vadd.f32 %v2029, %v2038
    %v2053 = vadd.f32 %v2030, %v2039
    %v2054 = vadd.f32 %v2031, %v2038
    %v2055 = vadd.f32 %v2032, %v2039
    %v2056 = vadd.f32 %v2033, %v2038
    %v2057 = vadd.f32 %v2034, %v2039
    %v2058 = vmax.f32 %v2042, 0.0
    %v2059 = vmax.f32 %v2043, 0.0
    %v2060 = vmax.f32 %v2044, 0.0
    %v2061 = vmax.f32 %v2045, 0.0
    %v2062 = vmax.f32 %v2046, 0.0
    %v2063 = vmax.f32 %v2047, 0.0
    %v2064 = vmax.f32 %v2048, 0.0
    %v2065 = vmax.f32 %v2049, 0.0
    %v2066 = vmax.f32 %v2050, 0.0
    %v2067 = vmax.f32 %v2051, 0.0
    %v2068 = vmax.f32 %v2052, 0.0
    %v2069 = vmax.f32 %v2053, 0.0
    %v2070 = vmax.f32 %v2054, 0.0
    %v2071 = vmax.f32 %v2055, 0.0
    %v2072 = vmax.f32 %v2056, 0.0
    %v2073 = vmax.f32 %v2057, 0.0
    %v2074 = vld [vmem:[#allocation12] sm:$0xff]
    %v2075 = vld [vmem:[#allocation12 + $0x8] sm:$0xff]
    %v2076 = vld [vmem:[#allocation12 + $0x10] sm:$0xff]
    %v2077 = vld [vmem:[#allocation12 + $0x18] sm:$0xff]
    %v2078 = vld [vmem:[#allocation12 + $0x20] sm:$0xff]
    %v2079 = vld [vmem:[#allocation12 + $0x28] sm:$0xff]
    %v2080 = vld [vmem:[#allocation12 + $0x30] sm:$0xff]
    %v2081 = vld [vmem:[#allocation12 + $0x38] sm:$0xff]
    %v2082 = vld [vmem:[#allocation12 + $0x40] sm:$0xff]
    %v2083 = vld [vmem:[#allocation12 + $0x48] sm:$0xff]
    %v2084 = vld [vmem:[#allocation12 + $0x50] sm:$0xff]
    %v2085 = vld [vmem:[#allocation12 + $0x58] sm:$0xff]
    %v2086 = vld [vmem:[#allocation12 + $0x60] sm:$0xff]
    %v2087 = vld [vmem:[#allocation12 + $0x68] sm:$0xff]
    %v2088 = vld [vmem:[#allocation12 + $0x70] sm:$0xff]
    %v2089 = vld [vmem:[#allocation12 + $0x78] sm:$0xff]
    %v2090 = vld [vmem:[#allocation12 + $0x80] sm:$0xff]
    %v2091 = vld [vmem:[#allocation12 + $0x88] sm:$0xff]
    %v2092 = vld [vmem:[#allocation12 + $0x90] sm:$0xff]
    %v2093 = vld [vmem:[#allocation12 + $0x98] sm:$0xff]
    %v2094 = vld [vmem:[#allocation12 + $0xa0] sm:$0xff]
    %v2095 = vld [vmem:[#allocation12 + $0xa8] sm:$0xff]
    %v2096 = vld [vmem:[#allocation12 + $0xb0] sm:$0xff]
    %v2097 = vld [vmem:[#allocation12 + $0xb8] sm:$0xff]
    %v2098 = vld [vmem:[#allocation12 + $0xc0] sm:$0xff]
    %v2099 = vld [vmem:[#allocation12 + $0xc8] sm:$0xff]
    %v2100 = vld [vmem:[#allocation12 + $0xd0] sm:$0xff]
    %v2101 = vld [vmem:[#allocation12 + $0xd8] sm:$0xff]
    %v2102 = vld [vmem:[#allocation12 + $0xe0] sm:$0xff]
    %v2103 = vld [vmem:[#allocation12 + $0xe8] sm:$0xff]
    %v2104 = vld [vmem:[#allocation12 + $0xf0] sm:$0xff]
    %v2105 = vld [vmem:[#allocation12 + $0xf8] sm:$0xff]
    %2106 = vmatpush.msra.mxu0 %v2089
    %2107 = vmatpush.msra.mxu0 %v2088
    %2108 = vmatpush.msra.mxu0 %v2087
    %2109 = vmatpush.msra.mxu0 %v2086
    %2110 = vmatpush.msra.mxu0 %v2085
    %2111 = vmatpush.msra.mxu0 %v2084
    %2112 = vmatpush.msra.mxu0 %v2083
    %2113 = vmatpush.msra.mxu0 %v2082
    %2114 = vmatpush.msra.mxu0 %v2081
    %2115 = vmatpush.msra.mxu0 %v2080
    %2116 = vmatpush.msra.mxu0 %v2079
    %2117 = vmatpush.msra.mxu0 %v2078
    %2118 = vmatpush.msra.mxu0 %v2077
    %2119 = vmatpush.msra.mxu0 %v2076
    %2120 = vmatpush.msra.mxu0 %v2075
    %2121 = vmatpush.msra.mxu0 %v2074
    %2122 = vmatmul.f32.gmra.mxu0 %v2058
    %v2123 = vpop.f32.mrf.mxu0
    %v2124 = vadd.f32 0.0, %v2123
    %2125 = vmatmul.f32.gmra.mxu0 %v2060
    %v2126 = vpop.f32.mrf.mxu0
    %v2127 = vadd.f32 0.0, %v2126
    %2128 = vmatmul.f32.gmra.mxu0 %v2062
    %v2129 = vpop.f32.mrf.mxu0
    %v2130 = vadd.f32 0.0, %v2129
    %2131 = vmatmul.f32.gmra.mxu0 %v2064
    %v2132 = vpop.f32.mrf.mxu0
    %v2133 = vadd.f32 0.0, %v2132
    %2134 = vmatmul.f32.gmra.mxu0 %v2066
    %v2135 = vpop.f32.mrf.mxu0
    %v2136 = vadd.f32 0.0, %v2135
    %2137 = vmatmul.f32.gmra.mxu0 %v2068
    %v2138 = vpop.f32.mrf.mxu0
    %v2139 = vadd.f32 0.0, %v2138
    %2140 = vmatmul.f32.gmra.mxu0 %v2070
    %v2141 = vpop.f32.mrf.mxu0
    %v2142 = vadd.f32 0.0, %v2141
    %2143 = vmatmul.f32.gmra.mxu0 %v2072
    %v2144 = vpop.f32.mrf.mxu0
    %v2145 = vadd.f32 0.0, %v2144
    %2146 = vdwg.mxu0
    %2147 = vmatpush.msra.mxu0 %v2105
    %2148 = vmatpush.msra.mxu0 %v2104
    %2149 = vmatpush.msra.mxu0 %v2103
    %2150 = vmatpush.msra.mxu0 %v2102
    %2151 = vmatpush.msra.mxu0 %v2101
    %2152 = vmatpush.msra.mxu0 %v2100
    %2153 = vmatpush.msra.mxu0 %v2099
    %2154 = vmatpush.msra.mxu0 %v2098
    %2155 = vmatpush.msra.mxu0 %v2097
    %2156 = vmatpush.msra.mxu0 %v2096
    %2157 = vmatpush.msra.mxu0 %v2095
    %2158 = vmatpush.msra.mxu0 %v2094
    %2159 = vmatpush.msra.mxu0 %v2093
    %2160 = vmatpush.msra.mxu0 %v2092
    %2161 = vmatpush.msra.mxu0 %v2091
    %2162 = vmatpush.msra.mxu0 %v2090
    %2163 = vmatmul.f32.gmra.mxu0 %v2059
    %v2164 = vpop.f32.mrf.mxu0
    %v2165 = vadd.f32 %v2124, %v2164
    %2166 = vmatmul.f32.gmra.mxu0 %v2061
    %v2167 = vpop.f32.mrf.mxu0
    %v2168 = vadd.f32 %v2127, %v2167
    %2169 = vmatmul.f32.gmra.mxu0 %v2063
    %v2170 = vpop.f32.mrf.mxu0
    %v2171 = vadd.f32 %v2130, %v2170
    %2172 = vmatmul.f32.gmra.mxu0 %v2065
    %v2173 = vpop.f32.mrf.mxu0
    %v2174 = vadd.f32 %v2133, %v2173
    %2175 = vmatmul.f32.gmra.mxu0 %v2067
    %v2176 = vpop.f32.mrf.mxu0
    %v2177 = vadd.f32 %v2136, %v2176
    %2178 = vmatmul.f32.gmra.mxu0 %v2069
    %v2179 = vpop.f32.mrf.mxu0
    %v2180 = vadd.f32 %v2139, %v2179
    %2181 = vmatmul.f32.gmra.mxu0 %v2071
    %v2182 = vpop.f32.mrf.mxu0
    %v2183 = vadd.f32 %v2142, %v2182
    %2184 = vmatmul.f32.gmra.mxu0 %v2073
    %v2185 = vpop.f32.mrf.mxu0
    %v2186 = vadd.f32 %v2145, %v2185
    %2187 = vdwg.mxu0
    %s2188 = scalar_lea.vmem [#allocation12], 256
    %v2189 = vld [vmem:[%s2188] sm:$0xff]
    %v2190 = vld [vmem:[%s2188 + $0x8] sm:$0xff]
    %v2191 = vld [vmem:[%s2188 + $0x10] sm:$0xff]
    %v2192 = vld [vmem:[%s2188 + $0x18] sm:$0xff]
    %v2193 = vld [vmem:[%s2188 + $0x20] sm:$0xff]
    %v2194 = vld [vmem:[%s2188 + $0x28] sm:$0xff]
    %v2195 = vld [vmem:[%s2188 + $0x30] sm:$0xff]
    %v2196 = vld [vmem:[%s2188 + $0x38] sm:$0xff]
    %v2197 = vld [vmem:[%s2188 + $0x40] sm:$0xff]
    %v2198 = vld [vmem:[%s2188 + $0x48] sm:$0xff]
    %v2199 = vld [vmem:[%s2188 + $0x50] sm:$0xff]
    %v2200 = vld [vmem:[%s2188 + $0x58] sm:$0xff]
    %v2201 = vld [vmem:[%s2188 + $0x60] sm:$0xff]
    %v2202 = vld [vmem:[%s2188 + $0x68] sm:$0xff]
    %v2203 = vld [vmem:[%s2188 + $0x70] sm:$0xff]
    %v2204 = vld [vmem:[%s2188 + $0x78] sm:$0xff]
    %v2205 = vld [vmem:[%s2188 + $0x80] sm:$0xff]
    %v2206 = vld [vmem:[%s2188 + $0x88] sm:$0xff]
    %v2207 = vld [vmem:[%s2188 + $0x90] sm:$0xff]
    %v2208 = vld [vmem:[%s2188 + $0x98] sm:$0xff]
    %v2209 = vld [vmem:[%s2188 + $0xa0] sm:$0xff]
    %v2210 = vld [vmem:[%s2188 + $0xa8] sm:$0xff]
    %v2211 = vld [vmem:[%s2188 + $0xb0] sm:$0xff]
    %v2212 = vld [vmem:[%s2188 + $0xb8] sm:$0xff]
    %v2213 = vld [vmem:[%s2188 + $0xc0] sm:$0xff]
    %v2214 = vld [vmem:[%s2188 + $0xc8] sm:$0xff]
    %v2215 = vld [vmem:[%s2188 + $0xd0] sm:$0xff]
    %v2216 = vld [vmem:[%s2188 + $0xd8] sm:$0xff]
    %v2217 = vld [vmem:[%s2188 + $0xe0] sm:$0xff]
    %v2218 = vld [vmem:[%s2188 + $0xe8] sm:$0xff]
    %v2219 = vld [vmem:[%s2188 + $0xf0] sm:$0xff]
    %v2220 = vld [vmem:[%s2188 + $0xf8] sm:$0xff]
    %2221 = vmatpush.msra.mxu0 %v2204
    %2222 = vmatpush.msra.mxu0 %v2203
    %2223 = vmatpush.msra.mxu0 %v2202
    %2224 = vmatpush.msra.mxu0 %v2201
    %2225 = vmatpush.msra.mxu0 %v2200
    %2226 = vmatpush.msra.mxu0 %v2199
    %2227 = vmatpush.msra.mxu0 %v2198
    %2228 = vmatpush.msra.mxu0 %v2197
    %2229 = vmatpush.msra.mxu0 %v2196
    %2230 = vmatpush.msra.mxu0 %v2195
    %2231 = vmatpush.msra.mxu0 %v2194
    %2232 = vmatpush.msra.mxu0 %v2193
    %2233 = vmatpush.msra.mxu0 %v2192
    %2234 = vmatpush.msra.mxu0 %v2191
    %2235 = vmatpush.msra.mxu0 %v2190
    %2236 = vmatpush.msra.mxu0 %v2189
    %2237 = vmatmul.f32.gmra.mxu0 %v2058
    %v2238 = vpop.f32.mrf.mxu0
    %v2239 = vadd.f32 0.0, %v2238
    %2240 = vmatmul.f32.gmra.mxu0 %v2060
    %v2241 = vpop.f32.mrf.mxu0
    %v2242 = vadd.f32 0.0, %v2241
    %2243 = vmatmul.f32.gmra.mxu0 %v2062
    %v2244 = vpop.f32.mrf.mxu0
    %v2245 = vadd.f32 0.0, %v2244
    %2246 = vmatmul.f32.gmra.mxu0 %v2064
    %v2247 = vpop.f32.mrf.mxu0
    %v2248 = vadd.f32 0.0, %v2247
    %2249 = vmatmul.f32.gmra.mxu0 %v2066
    %v2250 = vpop.f32.mrf.mxu0
    %v2251 = vadd.f32 0.0, %v2250
    %2252 = vmatmul.f32.gmra.mxu0 %v2068
    %v2253 = vpop.f32.mrf.mxu0
    %v2254 = vadd.f32 0.0, %v2253
    %2255 = vmatmul.f32.gmra.mxu0 %v2070
    %v2256 = vpop.f32.mrf.mxu0
    %v2257 = vadd.f32 0.0, %v2256
    %2258 = vmatmul.f32.gmra.mxu0 %v2072
    %v2259 = vpop.f32.mrf.mxu0
    %v2260 = vadd.f32 0.0, %v2259
    %2261 = vdwg.mxu0
    %2262 = vmatpush.msra.mxu0 %v2220
    %2263 = vmatpush.msra.mxu0 %v2219
    %2264 = vmatpush.msra.mxu0 %v2218
    %2265 = vmatpush.msra.mxu0 %v2217
    %2266 = vmatpush.msra.mxu0 %v2216
    %2267 = vmatpush.msra.mxu0 %v2215
    %2268 = vmatpush.msra.mxu0 %v2214
    %2269 = vmatpush.msra.mxu0 %v2213
    %2270 = vmatpush.msra.mxu0 %v2212
    %2271 = vmatpush.msra.mxu0 %v2211
    %2272 = vmatpush.msra.mxu0 %v2210
    %2273 = vmatpush.msra.mxu0 %v2209
    %2274 = vmatpush.msra.mxu0 %v2208
    %2275 = vmatpush.msra.mxu0 %v2207
    %2276 = vmatpush.msra.mxu0 %v2206
    %2277 = vmatpush.msra.mxu0 %v2205
    %2278 = vmatmul.f32.gmra.mxu0 %v2059
    %v2279 = vpop.f32.mrf.mxu0
    %v2280 = vadd.f32 %v2239, %v2279
    %2281 = vmatmul.f32.gmra.mxu0 %v2061
    %v2282 = vpop.f32.mrf.mxu0
    %v2283 = vadd.f32 %v2242, %v2282
    %2284 = vmatmul.f32.gmra.mxu0 %v2063
    %v2285 = vpop.f32.mrf.mxu0
    %v2286 = vadd.f32 %v2245, %v2285
    %2287 = vmatmul.f32.gmra.mxu0 %v2065
    %v2288 = vpop.f32.mrf.mxu0
    %v2289 = vadd.f32 %v2248, %v2288
    %2290 = vmatmul.f32.gmra.mxu0 %v2067
    %v2291 = vpop.f32.mrf.mxu0
    %v2292 = vadd.f32 %v2251, %v2291
    %2293 = vmatmul.f32.gmra.mxu0 %v2069
    %v2294 = vpop.f32.mrf.mxu0
    %v2295 = vadd.f32 %v2254, %v2294
    %2296 = vmatmul.f32.gmra.mxu0 %v2071
    %v2297 = vpop.f32.mrf.mxu0
    %v2298 = vadd.f32 %v2257, %v2297
    %2299 = vmatmul.f32.gmra.mxu0 %v2073
    %v2300 = vpop.f32.mrf.mxu0
    %v2301 = vadd.f32 %v2260, %v2300
    %2302 = vdwg.mxu0
    %v2303 = vmax.f32 %v2165, %v2280
    %v2304 = vmax.f32 %v2168, %v2283
    %v2305 = vmax.f32 %v2171, %v2286
    %v2306 = vmax.f32 %v2174, %v2289
    %v2307 = vmax.f32 %v2177, %v2292
    %v2308 = vmax.f32 %v2180, %v2295
    %v2309 = vmax.f32 %v2183, %v2298
    %v2310 = vmax.f32 %v2186, %v2301
    %v2311 = vld [vmem:[#allocation13] sm:$0xff]
    %v2312 = vld [vmem:[#allocation13 + $0x8] sm:$0xff]
    %v2313 = vld [vmem:[#allocation13 + $0x10] sm:$0xff]
    %v2314 = vld [vmem:[#allocation13 + $0x18] sm:$0xff]
    %vm2315 = vcmask 523264
    %v2317 = vsel %vm2315, %v2311, 0
    %v2320 = vsel %vm2315, %v2312, 0
    %v2323 = vsel %vm2315, %v2313, 0
    %v2326 = vsel %vm2315, %v2314, 0
    %2328 = vmatpush.msra.mxu0 0.0
    %2329 = vmatpush.msra.mxu0 0.0
    %2330 = vmatpush.msra.mxu0 0.0
    %2331 = vmatpush.msra.mxu0 0.0
    %2332 = vmatpush.msra.mxu0 0.0
    %2333 = vmatpush.msra.mxu0 0.0
    %2334 = vmatpush.msra.mxu0 0.0
    %2335 = vmatpush.msra.mxu0 0.0
    %2336 = vmatpush.msra.mxu0 %v2310
    %2337 = vmatpush.msra.mxu0 %v2309
    %2338 = vmatpush.msra.mxu0 %v2308
    %2339 = vmatpush.msra.mxu0 %v2307
    %2340 = vmatpush.msra.mxu0 %v2306
    %2341 = vmatpush.msra.mxu0 %v2305
    %2342 = vmatpush.msra.mxu0 %v2304
    %2343 = vmatpush.msra.mxu0 %v2303
    %2344 = vmatmul.f32.gmra.mxu0 %v2317
    %v2345 = vpop.f32.mrf.mxu0
    %v2346 = vadd.f32 0.0, %v2345
    %2347 = vmatmul.f32.gmra.mxu0 %v2320
    %v2348 = vpop.f32.mrf.mxu0
    %v2349 = vadd.f32 0.0, %v2348
    %2350 = vmatmul.f32.gmra.mxu0 %v2323
    %v2351 = vpop.f32.mrf.mxu0
    %v2352 = vadd.f32 0.0, %v2351
    %2353 = vmatmul.f32.gmra.mxu0 %v2326
    %v2354 = vpop.f32.mrf.mxu0
    %v2355 = vadd.f32 0.0, %v2354
    %2356 = vdwg.mxu0
    %s2357 = scalar_lea.vmem [#allocation13], 32
    %v2358 = vld [vmem:[%s2357] sm:$0xff]
    %v2359 = vld [vmem:[%s2357 + $0x8] sm:$0xff]
    %v2360 = vld [vmem:[%s2357 + $0x10] sm:$0xff]
    %v2361 = vld [vmem:[%s2357 + $0x18] sm:$0xff]
    %v2363 = vsel %vm2315, %v2358, 0
    %v2366 = vsel %vm2315, %v2359, 0
    %v2369 = vsel %vm2315, %v2360, 0
    %v2372 = vsel %vm2315, %v2361, 0
    %2374 = vmatpush.msra.mxu0 0.0
    %2375 = vmatpush.msra.mxu0 0.0
    %2376 = vmatpush.msra.mxu0 0.0
    %2377 = vmatpush.msra.mxu0 0.0
    %2378 = vmatpush.msra.mxu0 0.0
    %2379 = vmatpush.msra.mxu0 0.0
    %2380 = vmatpush.msra.mxu0 0.0
    %2381 = vmatpush.msra.mxu0 0.0
    %2382 = vmatpush.msra.mxu0 %v2310
    %2383 = vmatpush.msra.mxu0 %v2309
    %2384 = vmatpush.msra.mxu0 %v2308
    %2385 = vmatpush.msra.mxu0 %v2307
    %2386 = vmatpush.msra.mxu0 %v2306
    %2387 = vmatpush.msra.mxu0 %v2305
    %2388 = vmatpush.msra.mxu0 %v2304
    %2389 = vmatpush.msra.mxu0 %v2303
    %2390 = vmatmul.f32.gmra.mxu0 %v2363
    %v2391 = vpop.f32.mrf.mxu0
    %v2392 = vadd.f32 0.0, %v2391
    %2393 = vmatmul.f32.gmra.mxu0 %v2366
    %v2394 = vpop.f32.mrf.mxu0
    %v2395 = vadd.f32 0.0, %v2394
    %2396 = vmatmul.f32.gmra.mxu0 %v2369
    %v2397 = vpop.f32.mrf.mxu0
    %v2398 = vadd.f32 0.0, %v2397
    %2399 = vmatmul.f32.gmra.mxu0 %v2372
    %v2400 = vpop.f32.mrf.mxu0
    %v2401 = vadd.f32 0.0, %v2400
    %2402 = vdwg.mxu0
    %v2403 = vmax.f32 %v2346, %v2392
    %v2404 = vmax.f32 %v2349, %v2395
    %v2405 = vmax.f32 %v2352, %v2398
    %v2406 = vmax.f32 %v2355, %v2401
    %2407 = vst [vmem:[#allocation3 + $0x1] sm:$0xff] %v2403
    %2408 = vst [vmem:[#allocation3 + $0x9] sm:$0xff] %v2404
    %2409 = vst [vmem:[#allocation3 + $0x19] sm:$0xff] %v2405
    %2410 = vst [vmem:[#allocation3 + $0x21] sm:$0xff] %v2406
    %v2411 = vld [vmem:[#allocation3] sm:$0xff]
    %v2412 = vld [vmem:[#allocation3 + $0x8] sm:$0xff]
    %v2413 = vld [vmem:[#allocation3 + $0x18] sm:$0xff]
    %v2414 = vld [vmem:[#allocation3 + $0x20] sm:$0xff]
    %v2415 = vld [vmem:[#allocation9] sm:$0xff]
    %v2416 = vld [vmem:[#allocation9 + $0x8] sm:$0xff]
    %v2417 = vld [vmem:[#allocation9 + $0x10] sm:$0xff]
    %v2418 = vld [vmem:[#allocation9 + $0x18] sm:$0xff]
    %v2419 = vld [vmem:[#allocation9 + $0x20] sm:$0xff]
    %v2420 = vld [vmem:[#allocation9 + $0x28] sm:$0xff]
    %v2421 = vld [vmem:[#allocation9 + $0x30] sm:$0xff]
    %v2422 = vld [vmem:[#allocation9 + $0x38] sm:$0xff]
    %v2423 = vld [vmem:[#allocation9 + $0x40] sm:$0xff]
    %v2424 = vld [vmem:[#allocation9 + $0x48] sm:$0xff]
    %v2425 = vld [vmem:[#allocation9 + $0x50] sm:$0xff]
    %v2426 = vld [vmem:[#allocation9 + $0x58] sm:$0xff]
    %v2427 = vld [vmem:[#allocation9 + $0x60] sm:$0xff]
    %v2428 = vld [vmem:[#allocation9 + $0x68] sm:$0xff]
    %v2429 = vld [vmem:[#allocation9 + $0x70] sm:$0xff]
    %v2430 = vld [vmem:[#allocation9 + $0x78] sm:$0xff]
    %v2431 = vld [vmem:[#allocation3 + $0x1] sm:$0xff]
    %v2432 = vld [vmem:[#allocation3 + $0x9] sm:$0xff]
    %v2433 = vld [vmem:[#allocation3 + $0x19] sm:$0xff]
    %v2434 = vld [vmem:[#allocation3 + $0x21] sm:$0xff]
    %s2435 = scalar_lea.vmem [#allocation9], 128
    %v2436 = vld [vmem:[%s2435] sm:$0xff]
    %v2437 = vld [vmem:[%s2435 + $0x8] sm:$0xff]
    %v2438 = vld [vmem:[%s2435 + $0x10] sm:$0xff]
    %v2439 = vld [vmem:[%s2435 + $0x18] sm:$0xff]
    %v2440 = vld [vmem:[%s2435 + $0x20] sm:$0xff]
    %v2441 = vld [vmem:[%s2435 + $0x28] sm:$0xff]
    %v2442 = vld [vmem:[%s2435 + $0x30] sm:$0xff]
    %v2443 = vld [vmem:[%s2435 + $0x38] sm:$0xff]
    %v2444 = vld [vmem:[%s2435 + $0x40] sm:$0xff]
    %v2445 = vld [vmem:[%s2435 + $0x48] sm:$0xff]
    %v2446 = vld [vmem:[%s2435 + $0x50] sm:$0xff]
    %v2447 = vld [vmem:[%s2435 + $0x58] sm:$0xff]
    %v2448 = vld [vmem:[%s2435 + $0x60] sm:$0xff]
    %v2449 = vld [vmem:[%s2435 + $0x68] sm:$0xff]
    %v2450 = vld [vmem:[%s2435 + $0x70] sm:$0xff]
    %v2451 = vld [vmem:[%s2435 + $0x78] sm:$0xff]
    %2452 = vmatpush.msra.mxu0 %v2451
    %2453 = vmatpush.msra.mxu0 %v2450
    %2454 = vmatpush.msra.mxu0 %v2449
    %2455 = vmatpush.msra.mxu0 %v2448
    %2456 = vmatpush.msra.mxu0 %v2447
    %2457 = vmatpush.msra.mxu0 %v2446
    %2458 = vmatpush.msra.mxu0 %v2445
    %2459 = vmatpush.msra.mxu0 %v2444
    %2460 = vmatpush.msra.mxu0 %v2443
    %2461 = vmatpush.msra.mxu0 %v2442
    %2462 = vmatpush.msra.mxu0 %v2441
    %2463 = vmatpush.msra.mxu0 %v2440
    %2464 = vmatpush.msra.mxu0 %v2439
    %2465 = vmatpush.msra.mxu0 %v2438
    %2466 = vmatpush.msra.mxu0 %v2437
    %2467 = vmatpush.msra.mxu0 %v2436
    %2468 = vmatmul.f32.gmra.mxu0 %v2431
    %v2469 = vpop.f32.mrf.mxu0
    %v2470 = vadd.f32 0.0, %v2469
    %2471 = vmatmul.f32.gmra.mxu0 %v2432
    %v2472 = vpop.f32.mrf.mxu0
    %v2473 = vadd.f32 0.0, %v2472
    %2474 = vmatmul.f32.gmra.mxu0 %v2433
    %v2475 = vpop.f32.mrf.mxu0
    %v2476 = vadd.f32 0.0, %v2475
    %2477 = vmatmul.f32.gmra.mxu0 %v2434
    %v2478 = vpop.f32.mrf.mxu0
    %v2479 = vadd.f32 0.0, %v2478
    %2480 = vdwg.mxu0
    %2481 = vmatpush.msra.mxu0 %v2430
    %2482 = vmatpush.msra.mxu0 %v2429
    %2483 = vmatpush.msra.mxu0 %v2428
    %2484 = vmatpush.msra.mxu0 %v2427
    %2485 = vmatpush.msra.mxu0 %v2426
    %2486 = vmatpush.msra.mxu0 %v2425
    %2487 = vmatpush.msra.mxu0 %v2424
    %2488 = vmatpush.msra.mxu0 %v2423
    %2489 = vmatpush.msra.mxu0 %v2422
    %2490 = vmatpush.msra.mxu0 %v2421
    %2491 = vmatpush.msra.mxu0 %v2420
    %2492 = vmatpush.msra.mxu0 %v2419
    %2493 = vmatpush.msra.mxu0 %v2418
    %2494 = vmatpush.msra.mxu0 %v2417
    %2495 = vmatpush.msra.mxu0 %v2416
    %2496 = vmatpush.msra.mxu0 %v2415
    %2497 = vmatmul.f32.gmra.mxu0 %v2411
    %v2498 = vpop.f32.mrf.mxu0
    %v2499 = vadd.f32 %v2470, %v2498
    %2500 = vmatmul.f32.gmra.mxu0 %v2412
    %v2501 = vpop.f32.mrf.mxu0
    %v2502 = vadd.f32 %v2473, %v2501
    %2503 = vmatmul.f32.gmra.mxu0 %v2413
    %v2504 = vpop.f32.mrf.mxu0
    %v2505 = vadd.f32 %v2476, %v2504
    %2506 = vmatmul.f32.gmra.mxu0 %v2414
    %v2507 = vpop.f32.mrf.mxu0
    %v2508 = vadd.f32 %v2479, %v2507
    %2509 = vdwg.mxu0
    %v2510 = vld [vmem:[#allocation3 + $0x2] sm:$0xff]
    %v2511 = vld [vmem:[#allocation3 + $0xa] sm:$0xff]
    %v2512 = vld [vmem:[#allocation3 + $0x1a] sm:$0xff]
    %v2513 = vld [vmem:[#allocation3 + $0x22] sm:$0xff]
    %s2514 = scalar_lea.vmem [#allocation9], 256
    %v2515 = vld [vmem:[%s2514] sm:$0xff]
    %v2516 = vld [vmem:[%s2514 + $0x8] sm:$0xff]
    %v2517 = vld [vmem:[%s2514 + $0x10] sm:$0xff]
    %v2518 = vld [vmem:[%s2514 + $0x18] sm:$0xff]
    %v2519 = vld [vmem:[%s2514 + $0x20] sm:$0xff]
    %v2520 = vld [vmem:[%s2514 + $0x28] sm:$0xff]
    %v2521 = vld [vmem:[%s2514 + $0x30] sm:$0xff]
    %v2522 = vld [vmem:[%s2514 + $0x38] sm:$0xff]
    %v2523 = vld [vmem:[%s2514 + $0x40] sm:$0xff]
    %v2524 = vld [vmem:[%s2514 + $0x48] sm:$0xff]
    %v2525 = vld [vmem:[%s2514 + $0x50] sm:$0xff]
    %v2526 = vld [vmem:[%s2514 + $0x58] sm:$0xff]
    %v2527 = vld [vmem:[%s2514 + $0x60] sm:$0xff]
    %v2528 = vld [vmem:[%s2514 + $0x68] sm:$0xff]
    %v2529 = vld [vmem:[%s2514 + $0x70] sm:$0xff]
    %v2530 = vld [vmem:[%s2514 + $0x78] sm:$0xff]
    %2531 = vmatpush.msra.mxu0 %v2530
    %2532 = vmatpush.msra.mxu0 %v2529
    %2533 = vmatpush.msra.mxu0 %v2528
    %2534 = vmatpush.msra.mxu0 %v2527
    %2535 = vmatpush.msra.mxu0 %v2526
    %2536 = vmatpush.msra.mxu0 %v2525
    %2537 = vmatpush.msra.mxu0 %v2524
    %2538 = vmatpush.msra.mxu0 %v2523
    %2539 = vmatpush.msra.mxu0 %v2522
    %2540 = vmatpush.msra.mxu0 %v2521
    %2541 = vmatpush.msra.mxu0 %v2520
    %2542 = vmatpush.msra.mxu0 %v2519
    %2543 = vmatpush.msra.mxu0 %v2518
    %2544 = vmatpush.msra.mxu0 %v2517
    %2545 = vmatpush.msra.mxu0 %v2516
    %2546 = vmatpush.msra.mxu0 %v2515
    %2547 = vmatmul.f32.gmra.mxu0 %v2510
    %v2548 = vpop.f32.mrf.mxu0
    %v2549 = vadd.f32 0.0, %v2548
    %2550 = vmatmul.f32.gmra.mxu0 %v2511
    %v2551 = vpop.f32.mrf.mxu0
    %v2552 = vadd.f32 0.0, %v2551
    %2553 = vmatmul.f32.gmra.mxu0 %v2512
    %v2554 = vpop.f32.mrf.mxu0
    %v2555 = vadd.f32 0.0, %v2554
    %2556 = vmatmul.f32.gmra.mxu0 %v2513
    %v2557 = vpop.f32.mrf.mxu0
    %v2558 = vadd.f32 0.0, %v2557
    %2559 = vdwg.mxu0
    %v2560 = vadd.f32 %v2499, %v2549
    %v2561 = vadd.f32 %v2502, %v2552
    %v2562 = vadd.f32 %v2505, %v2555
    %v2563 = vadd.f32 %v2508, %v2558
    %v2564 = vld [vmem:[#allocation10] sm:$0x1]
    %v2565 = vperm.slane %v2564, 0
    %v2566 = vadd.f32 %v2560, %v2565
    %v2567 = vadd.f32 %v2561, %v2565
    %v2568 = vadd.f32 %v2562, %v2565
    %v2569 = vadd.f32 %v2563, %v2565
    %v2570 = vmax.f32 %v2566, 0.0
    %v2571 = vmax.f32 %v2567, 0.0
    %v2572 = vmax.f32 %v2568, 0.0
    %v2573 = vmax.f32 %v2569, 0.0
    %2574 = vst [vmem:[#allocation3 + $0x1] sm:$0xff] %v2570
    %2575 = vst [vmem:[#allocation3 + $0x9] sm:$0xff] %v2571
    %2576 = vst [vmem:[#allocation3 + $0x19] sm:$0xff] %v2572
    %2577 = vst [vmem:[#allocation3 + $0x21] sm:$0xff] %v2573
    %v2578 = vld [vmem:[#allocation3] sm:$0xff]
    %v2579 = vld [vmem:[#allocation3 + $0x8] sm:$0xff]
    %v2580 = vld [vmem:[#allocation3 + $0x18] sm:$0xff]
    %v2581 = vld [vmem:[#allocation3 + $0x20] sm:$0xff]
    %s2582 = scalar_lea.vmem [#allocation9], 384
    %v2583 = vld [vmem:[%s2582] sm:$0xff]
    %v2584 = vld [vmem:[%s2582 + $0x8] sm:$0xff]
    %v2585 = vld [vmem:[%s2582 + $0x10] sm:$0xff]
    %v2586 = vld [vmem:[%s2582 + $0x18] sm:$0xff]
    %v2587 = vld [vmem:[%s2582 + $0x20] sm:$0xff]
    %v2588 = vld [vmem:[%s2582 + $0x28] sm:$0xff]
    %v2589 = vld [vmem:[%s2582 + $0x30] sm:$0xff]
    %v2590 = vld [vmem:[%s2582 + $0x38] sm:$0xff]
    %v2591 = vld [vmem:[%s2582 + $0x40] sm:$0xff]
    %v2592 = vld [vmem:[%s2582 + $0x48] sm:$0xff]
    %v2593 = vld [vmem:[%s2582 + $0x50] sm:$0xff]
    %v2594 = vld [vmem:[%s2582 + $0x58] sm:$0xff]
    %v2595 = vld [vmem:[%s2582 + $0x60] sm:$0xff]
    %v2596 = vld [vmem:[%s2582 + $0x68] sm:$0xff]
    %v2597 = vld [vmem:[%s2582 + $0x70] sm:$0xff]
    %v2598 = vld [vmem:[%s2582 + $0x78] sm:$0xff]
    %v2599 = vld [vmem:[#allocation3 + $0x1] sm:$0xff]
    %v2600 = vld [vmem:[#allocation3 + $0x9] sm:$0xff]
    %v2601 = vld [vmem:[#allocation3 + $0x19] sm:$0xff]
    %v2602 = vld [vmem:[#allocation3 + $0x21] sm:$0xff]
    %s2603 = scalar_lea.vmem [#allocation9], 512
    %v2604 = vld [vmem:[%s2603] sm:$0xff]
    %v2605 = vld [vmem:[%s2603 + $0x8] sm:$0xff]
    %v2606 = vld [vmem:[%s2603 + $0x10] sm:$0xff]
    %v2607 = vld [vmem:[%s2603 + $0x18] sm:$0xff]
    %v2608 = vld [vmem:[%s2603 + $0x20] sm:$0xff]
    %v2609 = vld [vmem:[%s2603 + $0x28] sm:$0xff]
    %v2610 = vld [vmem:[%s2603 + $0x30] sm:$0xff]
    %v2611 = vld [vmem:[%s2603 + $0x38] sm:$0xff]
    %v2612 = vld [vmem:[%s2603 + $0x40] sm:$0xff]
    %v2613 = vld [vmem:[%s2603 + $0x48] sm:$0xff]
    %v2614 = vld [vmem:[%s2603 + $0x50] sm:$0xff]
    %v2615 = vld [vmem:[%s2603 + $0x58] sm:$0xff]
    %v2616 = vld [vmem:[%s2603 + $0x60] sm:$0xff]
    %v2617 = vld [vmem:[%s2603 + $0x68] sm:$0xff]
    %v2618 = vld [vmem:[%s2603 + $0x70] sm:$0xff]
    %v2619 = vld [vmem:[%s2603 + $0x78] sm:$0xff]
    %2620 = vmatpush.msra.mxu0 %v2619
    %2621 = vmatpush.msra.mxu0 %v2618
    %2622 = vmatpush.msra.mxu0 %v2617
    %2623 = vmatpush.msra.mxu0 %v2616
    %2624 = vmatpush.msra.mxu0 %v2615
    %2625 = vmatpush.msra.mxu0 %v2614
    %2626 = vmatpush.msra.mxu0 %v2613
    %2627 = vmatpush.msra.mxu0 %v2612
    %2628 = vmatpush.msra.mxu0 %v2611
    %2629 = vmatpush.msra.mxu0 %v2610
    %2630 = vmatpush.msra.mxu0 %v2609
    %2631 = vmatpush.msra.mxu0 %v2608
    %2632 = vmatpush.msra.mxu0 %v2607
    %2633 = vmatpush.msra.mxu0 %v2606
    %2634 = vmatpush.msra.mxu0 %v2605
    %2635 = vmatpush.msra.mxu0 %v2604
    %2636 = vmatmul.f32.gmra.mxu0 %v2599
    %v2637 = vpop.f32.mrf.mxu0
    %v2638 = vadd.f32 0.0, %v2637
    %2639 = vmatmul.f32.gmra.mxu0 %v2600
    %v2640 = vpop.f32.mrf.mxu0
    %v2641 = vadd.f32 0.0, %v2640
    %2642 = vmatmul.f32.gmra.mxu0 %v2601
    %v2643 = vpop.f32.mrf.mxu0
    %v2644 = vadd.f32 0.0, %v2643
    %2645 = vmatmul.f32.gmra.mxu0 %v2602
    %v2646 = vpop.f32.mrf.mxu0
    %v2647 = vadd.f32 0.0, %v2646
    %2648 = vdwg.mxu0
    %2649 = vmatpush.msra.mxu0 %v2598
    %2650 = vmatpush.msra.mxu0 %v2597
    %2651 = vmatpush.msra.mxu0 %v2596
    %2652 = vmatpush.msra.mxu0 %v2595
    %2653 = vmatpush.msra.mxu0 %v2594
    %2654 = vmatpush.msra.mxu0 %v2593
    %2655 = vmatpush.msra.mxu0 %v2592
    %2656 = vmatpush.msra.mxu0 %v2591
    %2657 = vmatpush.msra.mxu0 %v2590
    %2658 = vmatpush.msra.mxu0 %v2589
    %2659 = vmatpush.msra.mxu0 %v2588
    %2660 = vmatpush.msra.mxu0 %v2587
    %2661 = vmatpush.msra.mxu0 %v2586
    %2662 = vmatpush.msra.mxu0 %v2585
    %2663 = vmatpush.msra.mxu0 %v2584
    %2664 = vmatpush.msra.mxu0 %v2583
    %2665 = vmatmul.f32.gmra.mxu0 %v2578
    %v2666 = vpop.f32.mrf.mxu0
    %v2667 = vadd.f32 %v2638, %v2666
    %2668 = vmatmul.f32.gmra.mxu0 %v2579
    %v2669 = vpop.f32.mrf.mxu0
    %v2670 = vadd.f32 %v2641, %v2669
    %2671 = vmatmul.f32.gmra.mxu0 %v2580
    %v2672 = vpop.f32.mrf.mxu0
    %v2673 = vadd.f32 %v2644, %v2672
    %2674 = vmatmul.f32.gmra.mxu0 %v2581
    %v2675 = vpop.f32.mrf.mxu0
    %v2676 = vadd.f32 %v2647, %v2675
    %2677 = vdwg.mxu0
    %v2678 = vld [vmem:[#allocation3 + $0x2] sm:$0xff]
    %v2679 = vld [vmem:[#allocation3 + $0xa] sm:$0xff]
    %v2680 = vld [vmem:[#allocation3 + $0x1a] sm:$0xff]
    %v2681 = vld [vmem:[#allocation3 + $0x22] sm:$0xff]
    %s2682 = scalar_lea.vmem [#allocation9], 640
    %v2683 = vld [vmem:[%s2682] sm:$0xff]
    %v2684 = vld [vmem:[%s2682 + $0x8] sm:$0xff]
    %v2685 = vld [vmem:[%s2682 + $0x10] sm:$0xff]
    %v2686 = vld [vmem:[%s2682 + $0x18] sm:$0xff]
    %v2687 = vld [vmem:[%s2682 + $0x20] sm:$0xff]
    %v2688 = vld [vmem:[%s2682 + $0x28] sm:$0xff]
    %v2689 = vld [vmem:[%s2682 + $0x30] sm:$0xff]
    %v2690 = vld [vmem:[%s2682 + $0x38] sm:$0xff]
    %v2691 = vld [vmem:[%s2682 + $0x40] sm:$0xff]
    %v2692 = vld [vmem:[%s2682 + $0x48] sm:$0xff]
    %v2693 = vld [vmem:[%s2682 + $0x50] sm:$0xff]
    %v2694 = vld [vmem:[%s2682 + $0x58] sm:$0xff]
    %v2695 = vld [vmem:[%s2682 + $0x60] sm:$0xff]
    %v2696 = vld [vmem:[%s2682 + $0x68] sm:$0xff]
    %v2697 = vld [vmem:[%s2682 + $0x70] sm:$0xff]
    %v2698 = vld [vmem:[%s2682 + $0x78] sm:$0xff]
    %2699 = vmatpush.msra.mxu0 %v2698
    %2700 = vmatpush.msra.mxu0 %v2697
    %2701 = vmatpush.msra.mxu0 %v2696
    %2702 = vmatpush.msra.mxu0 %v2695
    %2703 = vmatpush.msra.mxu0 %v2694
    %2704 = vmatpush.msra.mxu0 %v2693
    %2705 = vmatpush.msra.mxu0 %v2692
    %2706 = vmatpush.msra.mxu0 %v2691
    %2707 = vmatpush.msra.mxu0 %v2690
    %2708 = vmatpush.msra.mxu0 %v2689
    %2709 = vmatpush.msra.mxu0 %v2688
    %2710 = vmatpush.msra.mxu0 %v2687
    %2711 = vmatpush.msra.mxu0 %v2686
    %2712 = vmatpush.msra.mxu0 %v2685
    %2713 = vmatpush.msra.mxu0 %v2684
    %2714 = vmatpush.msra.mxu0 %v2683
    %2715 = vmatmul.f32.gmra.mxu0 %v2678
    %v2716 = vpop.f32.mrf.mxu0
    %v2717 = vadd.f32 0.0, %v2716
    %2718 = vmatmul.f32.gmra.mxu0 %v2679
    %v2719 = vpop.f32.mrf.mxu0
    %v2720 = vadd.f32 0.0, %v2719
    %2721 = vmatmul.f32.gmra.mxu0 %v2680
    %v2722 = vpop.f32.mrf.mxu0
    %v2723 = vadd.f32 0.0, %v2722
    %2724 = vmatmul.f32.gmra.mxu0 %v2681
    %v2725 = vpop.f32.mrf.mxu0
    %v2726 = vadd.f32 0.0, %v2725
    %2727 = vdwg.mxu0
    %v2728 = vadd.f32 %v2667, %v2717
    %v2729 = vadd.f32 %v2670, %v2720
    %v2730 = vadd.f32 %v2673, %v2723
    %v2731 = vadd.f32 %v2676, %v2726
    %v2732 = vld [vmem:[#allocation10 + $0x1] sm:$0x1]
    %v2733 = vperm.slane %v2732, 0
    %v2734 = vadd.f32 %v2728, %v2733
    %v2735 = vadd.f32 %v2729, %v2733
    %v2736 = vadd.f32 %v2730, %v2733
    %v2737 = vadd.f32 %v2731, %v2733
    %v2738 = vmax.f32 %v2734, 0.0
    %v2739 = vmax.f32 %v2735, 0.0
    %v2740 = vmax.f32 %v2736, 0.0
    %v2741 = vmax.f32 %v2737, 0.0
    %v2742 = vld [vmem:[%s6] sm:$0xff]
    %v2743 = vld [vmem:[%s6 + $0x8] sm:$0xff]
    %v2744 = vld [vmem:[%s6 + $0x10] sm:$0xff]
    %v2745 = vld [vmem:[%s6 + $0x18] sm:$0xff]
    %v2746 = vld [vmem:[%s6 + $0x20] sm:$0xff]
    %v2747 = vld [vmem:[%s6 + $0x28] sm:$0xff]
    %v2748 = vld [vmem:[%s6 + $0x30] sm:$0xff]
    %v2749 = vld [vmem:[%s6 + $0x38] sm:$0xff]
    %v2750 = vld [vmem:[%s6 + $0x40] sm:$0xff]
    %v2751 = vld [vmem:[%s6 + $0x48] sm:$0xff]
    %v2752 = vld [vmem:[%s6 + $0x50] sm:$0xff]
    %v2753 = vld [vmem:[%s6 + $0x58] sm:$0xff]
    %v2754 = vld [vmem:[%s6 + $0x60] sm:$0xff]
    %v2755 = vld [vmem:[%s6 + $0x68] sm:$0xff]
    %v2756 = vld [vmem:[%s6 + $0x70] sm:$0xff]
    %v2757 = vld [vmem:[%s6 + $0x78] sm:$0xff]
    %2758 = vmatpush.msra.mxu0 %v2757
    %2759 = vmatpush.msra.mxu0 %v2756
    %2760 = vmatpush.msra.mxu0 %v2755
    %2761 = vmatpush.msra.mxu0 %v2754
    %2762 = vmatpush.msra.mxu0 %v2753
    %2763 = vmatpush.msra.mxu0 %v2752
    %2764 = vmatpush.msra.mxu0 %v2751
    %2765 = vmatpush.msra.mxu0 %v2750
    %2766 = vmatpush.msra.mxu0 %v2749
    %2767 = vmatpush.msra.mxu0 %v2748
    %2768 = vmatpush.msra.mxu0 %v2747
    %2769 = vmatpush.msra.mxu0 %v2746
    %2770 = vmatpush.msra.mxu0 %v2745
    %2771 = vmatpush.msra.mxu0 %v2744
    %2772 = vmatpush.msra.mxu0 %v2743
    %2773 = vmatpush.msra.mxu0 %v2742
    %2774 = vmatmul.f32.gmra.mxu0 %v2738
    %v2775 = vpop.f32.mrf.mxu0
    %v2776 = vadd.f32 0.0, %v2775
    %2777 = vmatmul.f32.gmra.mxu0 %v2739
    %v2778 = vpop.f32.mrf.mxu0
    %v2779 = vadd.f32 0.0, %v2778
    %2780 = vmatmul.f32.gmra.mxu0 %v2740
    %v2781 = vpop.f32.mrf.mxu0
    %v2782 = vadd.f32 0.0, %v2781
    %2783 = vmatmul.f32.gmra.mxu0 %v2741
    %v2784 = vpop.f32.mrf.mxu0
    %v2785 = vadd.f32 0.0, %v2784
    %2786 = vdwg.mxu0
    %s2787 = scalar_lea.vmem %s6, 128
    %v2788 = vld [vmem:[%s2787] sm:$0xff]
    %v2789 = vld [vmem:[%s2787 + $0x8] sm:$0xff]
    %v2790 = vld [vmem:[%s2787 + $0x10] sm:$0xff]
    %v2791 = vld [vmem:[%s2787 + $0x18] sm:$0xff]
    %v2792 = vld [vmem:[%s2787 + $0x20] sm:$0xff]
    %v2793 = vld [vmem:[%s2787 + $0x28] sm:$0xff]
    %v2794 = vld [vmem:[%s2787 + $0x30] sm:$0xff]
    %v2795 = vld [vmem:[%s2787 + $0x38] sm:$0xff]
    %v2796 = vld [vmem:[%s2787 + $0x40] sm:$0xff]
    %v2797 = vld [vmem:[%s2787 + $0x48] sm:$0xff]
    %v2798 = vld [vmem:[%s2787 + $0x50] sm:$0xff]
    %v2799 = vld [vmem:[%s2787 + $0x58] sm:$0xff]
    %v2800 = vld [vmem:[%s2787 + $0x60] sm:$0xff]
    %v2801 = vld [vmem:[%s2787 + $0x68] sm:$0xff]
    %v2802 = vld [vmem:[%s2787 + $0x70] sm:$0xff]
    %v2803 = vld [vmem:[%s2787 + $0x78] sm:$0xff]
    %2804 = vmatpush.msra.mxu0 %v2803
    %2805 = vmatpush.msra.mxu0 %v2802
    %2806 = vmatpush.msra.mxu0 %v2801
    %2807 = vmatpush.msra.mxu0 %v2800
    %2808 = vmatpush.msra.mxu0 %v2799
    %2809 = vmatpush.msra.mxu0 %v2798
    %2810 = vmatpush.msra.mxu0 %v2797
    %2811 = vmatpush.msra.mxu0 %v2796
    %2812 = vmatpush.msra.mxu0 %v2795
    %2813 = vmatpush.msra.mxu0 %v2794
    %2814 = vmatpush.msra.mxu0 %v2793
    %2815 = vmatpush.msra.mxu0 %v2792
    %2816 = vmatpush.msra.mxu0 %v2791
    %2817 = vmatpush.msra.mxu0 %v2790
    %2818 = vmatpush.msra.mxu0 %v2789
    %2819 = vmatpush.msra.mxu0 %v2788
    %2820 = vmatmul.f32.gmra.mxu0 %v2738
    %v2821 = vpop.f32.mrf.mxu0
    %v2822 = vadd.f32 0.0, %v2821
    %2823 = vmatmul.f32.gmra.mxu0 %v2739
    %v2824 = vpop.f32.mrf.mxu0
    %v2825 = vadd.f32 0.0, %v2824
    %2826 = vmatmul.f32.gmra.mxu0 %v2740
    %v2827 = vpop.f32.mrf.mxu0
    %v2828 = vadd.f32 0.0, %v2827
    %2829 = vmatmul.f32.gmra.mxu0 %v2741
    %v2830 = vpop.f32.mrf.mxu0
    %v2831 = vadd.f32 0.0, %v2830
    %2832 = vdwg.mxu0
    %v2833 = vmax.f32 %v2776, %v2822
    %v2834 = vmax.f32 %v2779, %v2825
    %v2835 = vmax.f32 %v2782, %v2828
    %v2836 = vmax.f32 %v2785, %v2831
    %v2837 = vld [vmem:[#allocation15] sm:$0xff]
    %v2838 = vld [vmem:[#allocation15 + $0x8] sm:$0xff]
    %vm2839 = vcmask 261120
    %v2841 = vsel %vm2839, %v2837, 0
    %v2844 = vsel %vm2839, %v2838, 0
    %2846 = vmatpush.msra.mxu0 0.0
    %2847 = vmatpush.msra.mxu0 0.0
    %2848 = vmatpush.msra.mxu0 0.0
    %2849 = vmatpush.msra.mxu0 0.0
    %2850 = vmatpush.msra.mxu0 0.0
    %2851 = vmatpush.msra.mxu0 0.0
    %2852 = vmatpush.msra.mxu0 0.0
    %2853 = vmatpush.msra.mxu0 0.0
    %2854 = vmatpush.msra.mxu0 0.0
    %2855 = vmatpush.msra.mxu0 0.0
    %2856 = vmatpush.msra.mxu0 0.0
    %2857 = vmatpush.msra.mxu0 0.0
    %2858 = vmatpush.msra.mxu0 %v2836
    %2859 = vmatpush.msra.mxu0 %v2835
    %2860 = vmatpush.msra.mxu0 %v2834
    %2861 = vmatpush.msra.mxu0 %v2833
    %2862 = vmatmul.f32.gmra.mxu0 %v2841
    %v2863 = vpop.f32.mrf.mxu0
    %v2864 = vadd.f32 0.0, %v2863
    %2865 = vmatmul.f32.gmra.mxu0 %v2844
    %v2866 = vpop.f32.mrf.mxu0
    %v2867 = vadd.f32 0.0, %v2866
    %2868 = vdwg.mxu0
    %s2869 = scalar_lea.vmem [#allocation15], 16
    %v2870 = vld [vmem:[%s2869] sm:$0xff]
    %v2871 = vld [vmem:[%s2869 + $0x8] sm:$0xff]
    %v2873 = vsel %vm2839, %v2870, 0
    %v2876 = vsel %vm2839, %v2871, 0
    %2878 = vmatpush.msra.mxu0 0.0
    %2879 = vmatpush.msra.mxu0 0.0
    %2880 = vmatpush.msra.mxu0 0.0
    %2881 = vmatpush.msra.mxu0 0.0
    %2882 = vmatpush.msra.mxu0 0.0
    %2883 = vmatpush.msra.mxu0 0.0
    %2884 = vmatpush.msra.mxu0 0.0
    %2885 = vmatpush.msra.mxu0 0.0
    %2886 = vmatpush.msra.mxu0 0.0
    %2887 = vmatpush.msra.mxu0 0.0
    %2888 = vmatpush.msra.mxu0 0.0
    %2889 = vmatpush.msra.mxu0 0.0
    %2890 = vmatpush.msra.mxu0 %v2836
    %2891 = vmatpush.msra.mxu0 %v2835
    %2892 = vmatpush.msra.mxu0 %v2834
    %2893 = vmatpush.msra.mxu0 %v2833
    %2894 = vmatmul.f32.gmra.mxu0 %v2873
    %v2895 = vpop.f32.mrf.mxu0
    %v2896 = vadd.f32 0.0, %v2895
    %2897 = vmatmul.f32.gmra.mxu0 %v2876
    %v2898 = vpop.f32.mrf.mxu0
    %v2899 = vadd.f32 0.0, %v2898
    %2900 = vdwg.mxu0
    %v2901 = vmax.f32 %v2864, %v2896
    %v2902 = vmax.f32 %v2867, %v2899
    %v2903 = vld [vmem:[%s9] sm:$0xff]
    %v2904 = vld [vmem:[%s9 + $0x8] sm:$0xff]
    %v2905 = vld [vmem:[%s9 + $0x10] sm:$0xff]
    %v2906 = vld [vmem:[%s9 + $0x18] sm:$0xff]
    %v2907 = vld [vmem:[%s9 + $0x20] sm:$0xff]
    %v2908 = vld [vmem:[%s9 + $0x28] sm:$0xff]
    %v2909 = vld [vmem:[%s9 + $0x30] sm:$0xff]
    %v2910 = vld [vmem:[%s9 + $0x38] sm:$0xff]
    %s2911 = scalar_lea.vmem %s9, 64
    %v2912 = vld [vmem:[%s2911] sm:$0xff]
    %v2913 = vld [vmem:[%s2911 + $0x8] sm:$0xff]
    %v2914 = vld [vmem:[%s2911 + $0x10] sm:$0xff]
    %v2915 = vld [vmem:[%s2911 + $0x18] sm:$0xff]
    %v2916 = vld [vmem:[%s2911 + $0x20] sm:$0xff]
    %v2917 = vld [vmem:[%s2911 + $0x28] sm:$0xff]
    %v2918 = vld [vmem:[%s2911 + $0x30] sm:$0xff]
    %v2919 = vld [vmem:[%s2911 + $0x38] sm:$0xff]
    %v2922 = vrot.slane %v2901, 1
    %vm2923 = vcmask 1041409
    %v2924 = vsel %vm2923, %v2902, %v2922
    %v2925 = vsel %vm2315, %v2924, 0
    %2927 = vmatpush.msra.mxu0 0.0
    %2928 = vmatpush.msra.mxu0 0.0
    %2929 = vmatpush.msra.mxu0 0.0
    %2930 = vmatpush.msra.mxu0 0.0
    %2931 = vmatpush.msra.mxu0 0.0
    %2932 = vmatpush.msra.mxu0 0.0
    %2933 = vmatpush.msra.mxu0 0.0
    %2934 = vmatpush.msra.mxu0 0.0
    %2935 = vmatpush.msra.mxu0 %v2919
    %2936 = vmatpush.msra.mxu0 %v2918
    %2937 = vmatpush.msra.mxu0 %v2917
    %2938 = vmatpush.msra.mxu0 %v2916
    %2939 = vmatpush.msra.mxu0 %v2915
    %2940 = vmatpush.msra.mxu0 %v2914
    %2941 = vmatpush.msra.mxu0 %v2913
    %2942 = vmatpush.msra.mxu0 %v2912
    %2943 = vmatmul.f32.gmra.mxu0 %v2925
    %v2944 = vpop.f32.mrf.mxu0
    %v2945 = vadd.f32 0.0, %v2944
    %2946 = vdwg.mxu0
    %v2947 = vrot.slane %v2902, 7
    %v2948 = vsel %vm2923, %v2947, %v2901
    %v2949 = vsel %vm2315, %v2948, 0
    %2951 = vmatpush.msra.mxu0 0.0
    %2952 = vmatpush.msra.mxu0 0.0
    %2953 = vmatpush.msra.mxu0 0.0
    %2954 = vmatpush.msra.mxu0 0.0
    %2955 = vmatpush.msra.mxu0 0.0
    %2956 = vmatpush.msra.mxu0 0.0
    %2957 = vmatpush.msra.mxu0 0.0
    %2958 = vmatpush.msra.mxu0 0.0
    %2959 = vmatpush.msra.mxu0 %v2910
    %2960 = vmatpush.msra.mxu0 %v2909
    %2961 = vmatpush.msra.mxu0 %v2908
    %2962 = vmatpush.msra.mxu0 %v2907
    %2963 = vmatpush.msra.mxu0 %v2906
    %2964 = vmatpush.msra.mxu0 %v2905
    %2965 = vmatpush.msra.mxu0 %v2904
    %2966 = vmatpush.msra.mxu0 %v2903
    %2967 = vmatmul.f32.gmra.mxu0 %v2949
    %v2968 = vpop.f32.mrf.mxu0
    %v2969 = vadd.f32 %v2945, %v2968
    %2970 = vdwg.mxu0
    %s2971 = scalar_lea.vmem %s9, 128
    %v2972 = vld [vmem:[%s2971] sm:$0xff]
    %v2973 = vld [vmem:[%s2971 + $0x8] sm:$0xff]
    %v2974 = vld [vmem:[%s2971 + $0x10] sm:$0xff]
    %v2975 = vld [vmem:[%s2971 + $0x18] sm:$0xff]
    %v2976 = vld [vmem:[%s2971 + $0x20] sm:$0xff]
    %v2977 = vld [vmem:[%s2971 + $0x28] sm:$0xff]
    %v2978 = vld [vmem:[%s2971 + $0x30] sm:$0xff]
    %v2979 = vld [vmem:[%s2971 + $0x38] sm:$0xff]
    %v2980 = vrot.slane %v2901, 2
    %v2981 = vrot.slane %v2902, 1
    %v2982 = vsel %vm2923, %v2981, %v2980
    %v2983 = vsel %vm2315, %v2982, 0
    %2985 = vmatpush.msra.mxu0 0.0
    %2986 = vmatpush.msra.mxu0 0.0
    %2987 = vmatpush.msra.mxu0 0.0
    %2988 = vmatpush.msra.mxu0 0.0
    %2989 = vmatpush.msra.mxu0 0.0
    %2990 = vmatpush.msra.mxu0 0.0
    %2991 = vmatpush.msra.mxu0 0.0
    %2992 = vmatpush.msra.mxu0 0.0
    %2993 = vmatpush.msra.mxu0 %v2979
    %2994 = vmatpush.msra.mxu0 %v2978
    %2995 = vmatpush.msra.mxu0 %v2977
    %2996 = vmatpush.msra.mxu0 %v2976
    %2997 = vmatpush.msra.mxu0 %v2975
    %2998 = vmatpush.msra.mxu0 %v2974
    %2999 = vmatpush.msra.mxu0 %v2973
    %3000 = vmatpush.msra.mxu0 %v2972
    %3001 = vmatmul.f32.gmra.mxu0 %v2983
    %v3002 = vpop.f32.mrf.mxu0
    %v3003 = vadd.f32 0.0, %v3002
    %3004 = vdwg.mxu0
    %v3005 = vadd.f32 %v2969, %v3003
    %s3006 = scalar_lea.vmem %s9, 192
    %v3007 = vld [vmem:[%s3006] sm:$0xff]
    %v3008 = vld [vmem:[%s3006 + $0x8] sm:$0xff]
    %v3009 = vld [vmem:[%s3006 + $0x10] sm:$0xff]
    %v3010 = vld [vmem:[%s3006 + $0x18] sm:$0xff]
    %v3011 = vld [vmem:[%s3006 + $0x20] sm:$0xff]
    %v3012 = vld [vmem:[%s3006 + $0x28] sm:$0xff]
    %v3013 = vld [vmem:[%s3006 + $0x30] sm:$0xff]
    %v3014 = vld [vmem:[%s3006 + $0x38] sm:$0xff]
    %v3015 = vrot.slane %v2901, 3
    %v3016 = vrot.slane %v2902, 2
    %v3017 = vsel %vm2923, %v3016, %v3015
    %v3018 = vsel %vm2315, %v3017, 0
    %3020 = vmatpush.msra.mxu0 0.0
    %3021 = vmatpush.msra.mxu0 0.0
    %3022 = vmatpush.msra.mxu0 0.0
    %3023 = vmatpush.msra.mxu0 0.0
    %3024 = vmatpush.msra.mxu0 0.0
    %3025 = vmatpush.msra.mxu0 0.0
    %3026 = vmatpush.msra.mxu0 0.0
    %3027 = vmatpush.msra.mxu0 0.0
    %3028 = vmatpush.msra.mxu0 %v3014
    %3029 = vmatpush.msra.mxu0 %v3013
    %3030 = vmatpush.msra.mxu0 %v3012
    %3031 = vmatpush.msra.mxu0 %v3011
    %3032 = vmatpush.msra.mxu0 %v3010
    %3033 = vmatpush.msra.mxu0 %v3009
    %3034 = vmatpush.msra.mxu0 %v3008
    %3035 = vmatpush.msra.mxu0 %v3007
    %3036 = vmatmul.f32.gmra.mxu0 %v3018
    %v3037 = vpop.f32.mrf.mxu0
    %v3038 = vadd.f32 0.0, %v3037
    %3039 = vdwg.mxu0
    %v3040 = vadd.f32 %v3005, %v3038
    %s3041 = scalar_lea.vmem %s9, 256
    %v3042 = vld [vmem:[%s3041] sm:$0xff]
    %v3043 = vld [vmem:[%s3041 + $0x8] sm:$0xff]
    %v3044 = vld [vmem:[%s3041 + $0x10] sm:$0xff]
    %v3045 = vld [vmem:[%s3041 + $0x18] sm:$0xff]
    %v3046 = vld [vmem:[%s3041 + $0x20] sm:$0xff]
    %v3047 = vld [vmem:[%s3041 + $0x28] sm:$0xff]
    %v3048 = vld [vmem:[%s3041 + $0x30] sm:$0xff]
    %v3049 = vld [vmem:[%s3041 + $0x38] sm:$0xff]
    %v3050 = vrot.slane %v2901, 4
    %v3051 = vrot.slane %v2902, 3
    %v3052 = vsel %vm2923, %v3051, %v3050
    %v3053 = vsel %vm2315, %v3052, 0
    %3055 = vmatpush.msra.mxu0 0.0
    %3056 = vmatpush.msra.mxu0 0.0
    %3057 = vmatpush.msra.mxu0 0.0
    %3058 = vmatpush.msra.mxu0 0.0
    %3059 = vmatpush.msra.mxu0 0.0
    %3060 = vmatpush.msra.mxu0 0.0
    %3061 = vmatpush.msra.mxu0 0.0
    %3062 = vmatpush.msra.mxu0 0.0
    %3063 = vmatpush.msra.mxu0 %v3049
    %3064 = vmatpush.msra.mxu0 %v3048
    %3065 = vmatpush.msra.mxu0 %v3047
    %3066 = vmatpush.msra.mxu0 %v3046
    %3067 = vmatpush.msra.mxu0 %v3045
    %3068 = vmatpush.msra.mxu0 %v3044
    %3069 = vmatpush.msra.mxu0 %v3043
    %3070 = vmatpush.msra.mxu0 %v3042
    %3071 = vmatmul.f32.gmra.mxu0 %v3053
    %v3072 = vpop.f32.mrf.mxu0
    %v3073 = vadd.f32 0.0, %v3072
    %3074 = vdwg.mxu0
    %v3075 = vadd.f32 %v3040, %v3073
    %s3076 = scalar_lea.vmem %s9, 320
    %v3077 = vld [vmem:[%s3076] sm:$0xff]
    %v3078 = vld [vmem:[%s3076 + $0x8] sm:$0xff]
    %v3079 = vld [vmem:[%s3076 + $0x10] sm:$0xff]
    %v3080 = vld [vmem:[%s3076 + $0x18] sm:$0xff]
    %v3081 = vld [vmem:[%s3076 + $0x20] sm:$0xff]
    %v3082 = vld [vmem:[%s3076 + $0x28] sm:$0xff]
    %v3083 = vld [vmem:[%s3076 + $0x30] sm:$0xff]
    %v3084 = vld [vmem:[%s3076 + $0x38] sm:$0xff]
    %v3085 = vrot.slane %v2901, 5
    %v3086 = vrot.slane %v2902, 4
    %v3087 = vsel %vm2923, %v3086, %v3085
    %v3088 = vsel %vm2315, %v3087, 0
    %3090 = vmatpush.msra.mxu0 0.0
    %3091 = vmatpush.msra.mxu0 0.0
    %3092 = vmatpush.msra.mxu0 0.0
    %3093 = vmatpush.msra.mxu0 0.0
    %3094 = vmatpush.msra.mxu0 0.0
    %3095 = vmatpush.msra.mxu0 0.0
    %3096 = vmatpush.msra.mxu0 0.0
    %3097 = vmatpush.msra.mxu0 0.0
    %3098 = vmatpush.msra.mxu0 %v3084
    %3099 = vmatpush.msra.mxu0 %v3083
    %3100 = vmatpush.msra.mxu0 %v3082
    %3101 = vmatpush.msra.mxu0 %v3081
    %3102 = vmatpush.msra.mxu0 %v3080
    %3103 = vmatpush.msra.mxu0 %v3079
    %3104 = vmatpush.msra.mxu0 %v3078
    %3105 = vmatpush.msra.mxu0 %v3077
    %3106 = vmatmul.f32.gmra.mxu0 %v3088
    %v3107 = vpop.f32.mrf.mxu0
    %v3108 = vadd.f32 0.0, %v3107
    %3109 = vdwg.mxu0
    %v3110 = vadd.f32 %v3075, %v3108
    %s3111 = scalar_lea.vmem %s9, 384
    %v3112 = vld [vmem:[%s3111] sm:$0xff]
    %v3113 = vld [vmem:[%s3111 + $0x8] sm:$0xff]
    %v3114 = vld [vmem:[%s3111 + $0x10] sm:$0xff]
    %v3115 = vld [vmem:[%s3111 + $0x18] sm:$0xff]
    %v3116 = vld [vmem:[%s3111 + $0x20] sm:$0xff]
    %v3117 = vld [vmem:[%s3111 + $0x28] sm:$0xff]
    %v3118 = vld [vmem:[%s3111 + $0x30] sm:$0xff]
    %v3119 = vld [vmem:[%s3111 + $0x38] sm:$0xff]
    %v3120 = vrot.slane %v2901, 6
    %v3121 = vrot.slane %v2902, 5
    %v3122 = vsel %vm2923, %v3121, %v3120
    %v3123 = vsel %vm2315, %v3122, 0
    %3125 = vmatpush.msra.mxu0 0.0
    %3126 = vmatpush.msra.mxu0 0.0
    %3127 = vmatpush.msra.mxu0 0.0
    %3128 = vmatpush.msra.mxu0 0.0
    %3129 = vmatpush.msra.mxu0 0.0
    %3130 = vmatpush.msra.mxu0 0.0
    %3131 = vmatpush.msra.mxu0 0.0
    %3132 = vmatpush.msra.mxu0 0.0
    %3133 = vmatpush.msra.mxu0 %v3119
    %3134 = vmatpush.msra.mxu0 %v3118
    %3135 = vmatpush.msra.mxu0 %v3117
    %3136 = vmatpush.msra.mxu0 %v3116
    %3137 = vmatpush.msra.mxu0 %v3115
    %3138 = vmatpush.msra.mxu0 %v3114
    %3139 = vmatpush.msra.mxu0 %v3113
    %3140 = vmatpush.msra.mxu0 %v3112
    %3141 = vmatmul.f32.gmra.mxu0 %v3123
    %v3142 = vpop.f32.mrf.mxu0
    %v3143 = vadd.f32 0.0, %v3142
    %3144 = vdwg.mxu0
    %v3145 = vadd.f32 %v3110, %v3143
    %s3146 = scalar_lea.vmem %s9, 448
    %v3147 = vld [vmem:[%s3146] sm:$0xff]
    %v3148 = vld [vmem:[%s3146 + $0x8] sm:$0xff]
    %v3149 = vld [vmem:[%s3146 + $0x10] sm:$0xff]
    %v3150 = vld [vmem:[%s3146 + $0x18] sm:$0xff]
    %v3151 = vld [vmem:[%s3146 + $0x20] sm:$0xff]
    %v3152 = vld [vmem:[%s3146 + $0x28] sm:$0xff]
    %v3153 = vld [vmem:[%s3146 + $0x30] sm:$0xff]
    %v3154 = vld [vmem:[%s3146 + $0x38] sm:$0xff]
    %v3155 = vrot.slane %v2901, 7
    %v3156 = vrot.slane %v2902, 6
    %v3157 = vsel %vm2923, %v3156, %v3155
    %v3158 = vsel %vm2315, %v3157, 0
    %3160 = vmatpush.msra.mxu0 0.0
    %3161 = vmatpush.msra.mxu0 0.0
    %3162 = vmatpush.msra.mxu0 0.0
    %3163 = vmatpush.msra.mxu0 0.0
    %3164 = vmatpush.msra.mxu0 0.0
    %3165 = vmatpush.msra.mxu0 0.0
    %3166 = vmatpush.msra.mxu0 0.0
    %3167 = vmatpush.msra.mxu0 0.0
    %3168 = vmatpush.msra.mxu0 %v3154
    %3169 = vmatpush.msra.mxu0 %v3153
    %3170 = vmatpush.msra.mxu0 %v3152
    %3171 = vmatpush.msra.mxu0 %v3151
    %3172 = vmatpush.msra.mxu0 %v3150
    %3173 = vmatpush.msra.mxu0 %v3149
    %3174 = vmatpush.msra.mxu0 %v3148
    %3175 = vmatpush.msra.mxu0 %v3147
    %3176 = vmatmul.f32.gmra.mxu0 %v3158
    %v3177 = vpop.f32.mrf.mxu0
    %v3178 = vadd.f32 0.0, %v3177
    %3179 = vdwg.mxu0
    %v3180 = vadd.f32 %v3145, %v3178
    %v3181 = vld [vmem:[#allocation16] sm:$0x1]
    %v3183 = vperm.slane %v3181, 0
    %v3185 = vadd.f32 %v3180, %v3183
    %vm3186 = vcmask 74752
    %3187 = vst.msk [vmem:[#allocation18] sm:$0x3] %vm3186, %v3185
    // Predicated region
    $region78: #{tinyvgg_forward.1} parent=1 // pred_check
      _
    $region79: #{tinyvgg_forward.1} parent=1 // pred_check_branch
      %3189 = sbr.rel (0) target = $region81
    $region80: #{tinyvgg_forward.1} parent=1 // pred_region
      %3191 = vsyncadd [#allocation6], 0
      %s3193 = sshll.u32 [#allocation18], 4
      %s3194 = int_to_ptr.vmem [resolvable:$true] %s3193
      %s3195 = sshll.u32 %s11, 4
      %s3196 = int_to_ptr.hbm [resolvable:$true] %s3195
      %3198 = dma.vmem_to_hbm [thread:$0]  %s3194, 32, %s3196, [#allocation6]
    $region81: #{tinyvgg_forward.1} parent=1 // pred_fallthru
      _
    // Predicated region
    $region82: #{tinyvgg_forward.1} parent=1 // pred_check
      _
    $region83: #{tinyvgg_forward.1} parent=1 // pred_check_branch
      %3200 = sbr.rel (0) target = $region85
    $region84: #{tinyvgg_forward.1} parent=1 // pred_region
      %3202 = dma.done [#allocation6], 32
    $region85: #{tinyvgg_forward.1} parent=1 // pred_fallthru
      _
    %3203 = vsyncpa [#allocation5], 1
    %3204 = vsyncpa [#allocation8], 1
    %3205 = vsyncpa [#allocation11], 1
    %3206 = vsyncpa [#allocation14], 1
    %3207 = vsyncpa [#allocation17], 1
    %3208 = vsyncpa [#allocation6], 1

</llo_original>
